<compile_context>
chip_gen: v7x
topology: tpu7x:2x2x1
jax: 0.10.0
libtpu: 0.0.40
codegen_flags: <defaults>
</compile_context>

<pallas_src>
import jax
import jax.numpy as jnp
from jax.experimental import pallas as pl
from jax.experimental.pallas import tpu as pltpu


LANE = 128            # TPU vreg lane width
EL_PAD = LANE         # src-score (el) block is zero-padded to a full lane width
SEM_HIDDEN = 128      # hidden width of the semantic-attention MLP
LEAKY_SLOPE = 0.2     # GATConv LeakyReLU slope
MASK_SCALE = 1e9      # additive-mask magnitude; exp of masked entries -> exactly 0
ROWMAX_FLOOR = -1e4   # keeps the softmax row-max finite for zero-in-degree rows


# ----------------------------------------------------------------------------
# Fused whole-model kernel: (fc + GAT + semantic attention) x L + predict
# ----------------------------------------------------------------------------

def make_han_forward_kernel(layer_cfg, N):
    """layer_cfg: static list of (M, H, D) per HANLayer."""
    L = len(layer_cfg)

    def kernel(*refs):
        h_ref, adj_ref = refs[0], refs[1]
        pred_w_ref, pred_b_ref = refs[2 + 7 * L], refs[3 + 7 * L]
        o_ref = refs[4 + 7 * L]

        x = h_ref[...]                                        # (N, F0) f32, stays on-chip
        for l, (M, H, D) in enumerate(layer_cfg):
            MH = M * H
            (w_ref, bproj_ref, acat_ref, gbias_ref,
             w1_ref, b1_ref, w2_ref) = refs[2 + 7 * l: 2 + 7 * (l + 1)]

            # ---- fused feature projection for ALL metapaths & heads (bf16 MXU, f32 acc)
            z_full = (jnp.dot(x.astype(jnp.bfloat16), w_ref[...],
                              preferred_element_type=jnp.float32)
                      + bproj_ref[...])                       # (N, M*H*D)

            # ---- one matmul for BOTH attention-score families: [el (128-pad) | er]
            scores = jnp.dot(z_full, acat_ref[...],
                             preferred_element_type=jnp.float32)     # (N, 128 + MH) f32
            # only a lane-aligned (N, 128) block goes through the XLU transpose
            el_all = scores[:, :EL_PAD].T                     # (128, N): row j = src scores
            er_all = scores[:, EL_PAD:EL_PAD + MH]            # (N, MH):  col j = dst scores

            embeds = []
            for m in range(M):                                # tiny static loops -> unrolled
                # additive mask from the int8 adjacency: 0 where edge, -1e9 where not (FMA)
                adj_f = adj_ref[m].astype(jnp.float32)        # adj[dst, src] in {0, 1}
                neg = (adj_f - 1.0) * MASK_SCALE
                head_outs = []
                for hh in range(H):
                    j = m * H + hh
                    z = z_full[:, j * D:(j + 1) * D]          # (N, D)
                    e = er_all[:, j:j + 1] + el_all[j:j + 1, :]        # (N_dst, N_src)
                    e = jnp.where(e > 0, e, LEAKY_SLOPE * e)           # LeakyReLU(0.2)
                    e = e + neg
                    # edge softmax over src: masked entries underflow to exactly 0;
                    # the floor keeps zero-in-degree rows finite (denom 0 -> alpha 0).
                    mrow = jnp.maximum(jnp.max(e, axis=1, keepdims=True), ROWMAX_FLOOR)
                    p = jnp.exp(e - mrow)                              # (N, N)
                    denom = jnp.sum(p, axis=1, keepdims=True)
                    inv = 1.0 / jnp.where(denom == 0.0, 1.0, denom)    # exact: rows sum to 1
                    alpha = p * inv
                    agg = jnp.dot(alpha.astype(jnp.bfloat16), z.astype(jnp.bfloat16),
                                  preferred_element_type=jnp.float32)  # (N, D)
                    agg = agg + gbias_ref[:, j * D:(j + 1) * D]         # per-head bias
                    head_outs.append(jnp.where(agg > 0, agg,
                                               jnp.exp(jnp.minimum(agg, 0.0)) - 1.0))  # ELU
                embeds.append(jnp.concatenate(head_outs, axis=1))      # (N, H*D)

            # ---- semantic attention: one batched (M*N, H*D) projection
            z_stack = jnp.concatenate(embeds, axis=0)                  # (M*N, H*D)
            hproj = jnp.tanh(
                jnp.dot(z_stack.astype(jnp.bfloat16), w1_ref[...],
                        preferred_element_type=jnp.float32) + b1_ref[...])   # (M*N, 128)
            # per-row score: VPU multiply + lane reduction (no 1-lane MXU matmul)
            sc = jnp.sum(hproj * w2_ref[...], axis=1, keepdims=True)   # (M*N, 1)
            w_m = [jnp.sum(sc[m * N:(m + 1) * N], axis=0, keepdims=True) * (1.0 / N)
                   for m in range(M)]                                  # per-metapath mean (1,1)
            wmax = w_m[0]
            for m in range(1, M):
                wmax = jnp.maximum(wmax, w_m[m])
            ex = [jnp.exp(v - wmax) for v in w_m]
            zsum = ex[0]
            for m in range(1, M):
                zsum = zsum + ex[m]
            inv_zsum = 1.0 / zsum
            out = (ex[0] * inv_zsum) * embeds[0]
            for m in range(1, M):
                out = out + (ex[m] * inv_zsum) * embeds[m]             # (N, H*D)
            x = out                                                    # never leaves VMEM

        # ---- fused predict linear (tiny, f32)
        o_ref[...] = (jnp.dot(x, pred_w_ref[...], preferred_element_type=jnp.float32)
                      + pred_b_ref[...])

    return kernel


def _full_spec(arr):
    zeros = (0,) * arr.ndim
    return pl.BlockSpec(arr.shape, lambda i, _z=zeros: _z)


def han_freebase_forward(h, adj_stack, packed):
    """Whole HAN_freebase forward (fc + HANLayers + predict) in ONE pallas_call."""
    N = h.shape[0]
    layers = packed["layers"]
    out_size = packed["pred_W"].shape[1]
    layer_cfg = [(lp["M"], lp["H"], lp["D"]) for lp in layers]

    inputs = [h, adj_stack]
    for lp in layers:
        for name in ("W", "b_proj", "A_cat", "gbias", "sem_W1", "sem_b1", "sem_W2"):
            inputs.append(lp[name])
    inputs += [packed["pred_W"], packed["pred_b"]]
    in_specs = [_full_spec(a) for a in inputs]

    # advisory cost estimate for XLA's scheduler
    flops = 2 * N * packed["pred_W"].shape[0] * out_size
    trans = 0
    for (M, H, D), lp in zip(layer_cfg, layers):
        HD, MH, MHD = H * D, M * H, M * H * D
        F_in = lp["W"].shape[0]
        flops += (2 * N * F_in * MHD + 2 * N * MHD * (EL_PAD + MH)
                  + M * H * (8 * N * N + 2 * N * N * D)
                  + 2 * M * N * HD * SEM_HIDDEN + 4 * M * N * SEM_HIDDEN + 2 * M * N * HD)
        trans += M * H * N * N + M * N * SEM_HIDDEN
    bytes_accessed = sum(int(a.size) * a.dtype.itemsize for a in inputs) + 4 * N * out_size

    return pl.pallas_call(
        make_han_forward_kernel(layer_cfg, N),
        out_shape=jax.ShapeDtypeStruct((N, out_size), jnp.float32),
        grid=(1,),
        in_specs=in_specs,
        out_specs=pl.BlockSpec((N, out_size), lambda i: (0, 0)),
        compiler_params=pltpu.CompilerParams(
            dimension_semantics=("arbitrary",),
            vmem_limit_bytes=32 * 1024 * 1024),
        cost_estimate=pl.CostEstimate(flops=int(flops), transcendentals=int(trans),
                                      bytes_accessed=int(bytes_accessed)),
    )(*inputs)


# ----------------------------------------------------------------------------
# Parameter init (mirrors the PyTorch module) + one-time host-side packing
# ----------------------------------------------------------------------------

def init_params(key, in_size, hidden, out_size, num_heads, num_metapaths):
    def nxt():
        nonlocal key
        key, sub = jax.random.split(key)
        return sub

    p = {"fc_W": 0.1 * jax.random.normal(nxt(), (in_size, hidden), jnp.float32),
         "fc_b": 0.1 * jax.random.normal(nxt(), (hidden,), jnp.float32)}
    layers = []
    layer_in = hidden
    for H in num_heads:
        D = hidden
        gats = []
        for _ in range(num_metapaths):
            gats.append({
                "W": 0.1 * jax.random.normal(nxt(), (layer_in, H * D), jnp.float32),
                "al": 0.1 * jax.random.normal(nxt(), (H, D), jnp.float32),
                "ar": 0.1 * jax.random.normal(nxt(), (H, D), jnp.float32),
                "bias": 0.1 * jax.random.normal(nxt(), (H * D,), jnp.float32)})
        layers.append({
            "num_heads": H, "out_dim": D, "gat": gats,
            "sem_W1": 0.1 * jax.random.normal(nxt(), (H * D, SEM_HIDDEN), jnp.float32),
            "sem_b1": 0.1 * jax.random.normal(nxt(), (SEM_HIDDEN,), jnp.float32),
            "sem_W2": 0.1 * jax.random.normal(nxt(), (SEM_HIDDEN, 1), jnp.float32)})
        layer_in = H * D
    p["layers"] = layers
    p["pred_W"] = 0.1 * jax.random.normal(nxt(), (layer_in, out_size), jnp.float32)
    p["pred_b"] = 0.1 * jax.random.normal(nxt(), (out_size,), jnp.float32)
    return p


def pack_params(params):
    """Concat per-metapath projections, fold self.fc into layer 0, pack the
    attention vectors as [A_l (128-pad) | A_r], and pre-cast the big matmul
    weights to bf16 (f32 accumulation in-kernel keeps the math stable)."""
    packed_layers = []
    for li, lp in enumerate(params["layers"]):
        H, D = lp["num_heads"], lp["out_dim"]
        M = len(lp["gat"])
        HD, MHD, MH = H * D, M * H * D, M * H
        assert MH <= EL_PAD

        W = jnp.concatenate([g["W"] for g in lp["gat"]], axis=1)        # (F_in, MHD)
        if li == 0:
            # fold self.fc (no nonlinearity between fc and the GAT projection)
            b_proj = (params["fc_b"][None, :] @ W).astype(jnp.float32)  # (1, MHD)
            W = params["fc_W"] @ W                                      # (in_size, MHD)
        else:
            b_proj = jnp.zeros((1, MHD), jnp.float32)

        A_cat = jnp.zeros((MHD, EL_PAD + MH), jnp.float32)
        gbias = jnp.zeros((1, MHD), jnp.float32)
        for m, g in enumerate(lp["gat"]):
            for hh in range(H):
                j = m * H + hh
                A_cat = A_cat.at[j * D:(j + 1) * D, j].set(g["al"][hh])           # el (src)
                A_cat = A_cat.at[j * D:(j + 1) * D, EL_PAD + j].set(g["ar"][hh])  # er (dst)
            gbias = gbias.at[0, m * HD:(m + 1) * HD].set(g["bias"])

        packed_layers.append(dict(
            M=M, H=H, D=D,
            W=W.astype(jnp.bfloat16),                    # pre-cast: halves weight DMA/VMEM
            b_proj=b_proj, A_cat=A_cat, gbias=gbias,
            sem_W1=lp["sem_W1"].astype(jnp.bfloat16),
            sem_b1=lp["sem_b1"].reshape(1, -1),
            sem_W2=lp["sem_W2"].reshape(1, -1)))         # row form: VPU mul + lane reduce
    return {"layers": packed_layers,
            "pred_W": params["pred_W"],
            "pred_b": params["pred_b"].reshape(1, -1)}


# ----------------------------------------------------------------------------
# Pure-JAX (f32) reference of the PyTorch module (inference, dropout = identity)
# ----------------------------------------------------------------------------

def reference_forward(h, adj_stack, params):
    leaky = lambda v: jnp.where(v > 0, v, LEAKY_SLOPE * v)
    elu = lambda v: jnp.where(v > 0, v, jnp.exp(jnp.minimum(v, 0.0)) - 1.0)
    adj = adj_stack.astype(jnp.float32)
    x = h @ params["fc_W"] + params["fc_b"]                      # self.fc
    for lp in params["layers"]:
        H, D = lp["num_heads"], lp["out_dim"]
        embeds = []
        for m, g in enumerate(lp["gat"]):
            z = (x @ g["W"]).reshape(-1, H, D)                   # (N, H, D)
            el = jnp.einsum("nhd,hd->nh", z, g["al"])
            er = jnp.einsum("nhd,hd->nh", z, g["ar"])
            e = leaky(er[:, None, :] + el[None, :, :])           # (dst, src, H)
            mask = adj[m][:, :, None] > 0
            e = jnp.where(mask, e, -jnp.inf)
            emax = jnp.max(e, axis=1, keepdims=True)
            emax = jnp.where(jnp.isfinite(emax), emax, 0.0)
            p = jnp.where(mask, jnp.exp(e - emax), 0.0)
            den = jnp.sum(p, axis=1, keepdims=True)
            alpha = p / jnp.where(den == 0.0, 1.0, den)          # allow_zero_in_degree=True
            agg = jnp.einsum("dsh,she->dhe", alpha, z) + g["bias"].reshape(1, H, D)
            embeds.append(elu(agg).reshape(-1, H * D))
        zst = jnp.stack(embeds, axis=1)                          # (N, M, H*D)
        w = (jnp.tanh(zst @ lp["sem_W1"] + lp["sem_b1"]) @ lp["sem_W2"]).mean(0)  # (M, 1)
        beta = jax.nn.softmax(w, axis=0)
        x = jnp.sum(beta[None] * zst, axis=1)                    # (N, H*D)
    return x @ params["pred_W"] + params["pred_b"]


# ----------------------------------------------------------------------------

if __name__ == "__main__":
    N = 64          # number of nodes
    IN_SIZE = 64    # raw input feature dim
    HIDDEN = 32     # hidden size
    OUT_SIZE = 4    # number of classes
    NUM_HEADS = [2, 2]
    NUM_METAPATHS = 2

    key = jax.random.PRNGKey(0)
    k_feat, k_adj, k_param = jax.random.split(key, 3)

    h = jax.random.normal(k_feat, (N, IN_SIZE), jnp.float32)
    adj_keys = jax.random.split(k_adj, NUM_METAPATHS)
    adj_stack = jnp.stack(
        [(jax.random.uniform(k, (N, N)) < 0.15).astype(jnp.int8) for k in adj_keys],
        axis=0)                                     # (M, N, N) int8 dense adjacency
    # force one zero-in-degree dst row to exercise the allow_zero_in_degree path
    adj_stack = adj_stack.at[0, 0, :].set(0)

    params = init_params(k_param, IN_SIZE, HIDDEN, OUT_SIZE, NUM_HEADS, NUM_METAPATHS)
    packed = pack_params(params)                    # one-time host-side packing / fc folding

    out = han_freebase_forward(h, adj_stack, packed)
    out = jax.block_until_ready(out)

    assert out.shape == (N, OUT_SIZE)
    assert bool(jnp.all(jnp.isfinite(out)))

    ref = reference_forward(h, adj_stack, params)   # f32 reference (kernel uses bf16 MXU)
    max_err = float(jnp.max(jnp.abs(out - ref)))
    assert max_err < 5e-2, f"max |kernel - reference| = {max_err}"

    print("KERNEL_OK")
</pallas_src>

<mosaic_0001>
module attributes {stable_mosaic.version = 11 : i64} {
  func.func @kernel(%arg0: i32, %arg1: memref<64x64xf32, #tpu.memory_space<vmem>>, %arg2: memref<2x64x64xi8, #tpu.memory_space<vmem>>, %arg3: memref<64x128xbf16, #tpu.memory_space<vmem>>, %arg4: memref<1x128xf32, #tpu.memory_space<vmem>>, %arg5: memref<128x132xf32, #tpu.memory_space<vmem>>, %arg6: memref<1x128xf32, #tpu.memory_space<vmem>>, %arg7: memref<64x128xbf16, #tpu.memory_space<vmem>>, %arg8: memref<1x128xf32, #tpu.memory_space<vmem>>, %arg9: memref<1x128xf32, #tpu.memory_space<vmem>>, %arg10: memref<64x128xbf16, #tpu.memory_space<vmem>>, %arg11: memref<1x128xf32, #tpu.memory_space<vmem>>, %arg12: memref<128x132xf32, #tpu.memory_space<vmem>>, %arg13: memref<1x128xf32, #tpu.memory_space<vmem>>, %arg14: memref<64x128xbf16, #tpu.memory_space<vmem>>, %arg15: memref<1x128xf32, #tpu.memory_space<vmem>>, %arg16: memref<1x128xf32, #tpu.memory_space<vmem>>, %arg17: memref<64x4xf32, #tpu.memory_space<vmem>>, %arg18: memref<1x4xf32, #tpu.memory_space<vmem>>, %arg19: memref<64x4xf32, #tpu.memory_space<vmem>>) attributes {dimension_semantics = [#tpu.dimension_semantics<arbitrary>], iteration_bounds = array<i64: 1>, scalar_prefetch = 0 : i64, scratch_operands = 0 : i64, tpu.core_type = #tpu.core_type<tc>, window_params = [{pipeline_mode = #tpu.pipeline_mode<synchronous>, transform_indices = @transform_0, window_bounds = array<i64: 64, 64>}, {pipeline_mode = #tpu.pipeline_mode<synchronous>, transform_indices = @transform_1, window_bounds = array<i64: 2, 64, 64>}, {pipeline_mode = #tpu.pipeline_mode<synchronous>, transform_indices = @transform_2, window_bounds = array<i64: 64, 128>}, {pipeline_mode = #tpu.pipeline_mode<synchronous>, transform_indices = @transform_3, window_bounds = array<i64: 1, 128>}, {pipeline_mode = #tpu.pipeline_mode<synchronous>, transform_indices = @transform_4, window_bounds = array<i64: 128, 132>}, {pipeline_mode = #tpu.pipeline_mode<synchronous>, transform_indices = @transform_5, window_bounds = array<i64: 1, 128>}, {pipeline_mode = #tpu.pipeline_mode<synchronous>, transform_indices = @transform_6, window_bounds = array<i64: 64, 128>}, {pipeline_mode = #tpu.pipeline_mode<synchronous>, transform_indices = @transform_7, window_bounds = array<i64: 1, 128>}, {pipeline_mode = #tpu.pipeline_mode<synchronous>, transform_indices = @transform_8, window_bounds = array<i64: 1, 128>}, {pipeline_mode = #tpu.pipeline_mode<synchronous>, transform_indices = @transform_9, window_bounds = array<i64: 64, 128>}, {pipeline_mode = #tpu.pipeline_mode<synchronous>, transform_indices = @transform_10, window_bounds = array<i64: 1, 128>}, {pipeline_mode = #tpu.pipeline_mode<synchronous>, transform_indices = @transform_11, window_bounds = array<i64: 128, 132>}, {pipeline_mode = #tpu.pipeline_mode<synchronous>, transform_indices = @transform_12, window_bounds = array<i64: 1, 128>}, {pipeline_mode = #tpu.pipeline_mode<synchronous>, transform_indices = @transform_13, window_bounds = array<i64: 64, 128>}, {pipeline_mode = #tpu.pipeline_mode<synchronous>, transform_indices = @transform_14, window_bounds = array<i64: 1, 128>}, {pipeline_mode = #tpu.pipeline_mode<synchronous>, transform_indices = @transform_15, window_bounds = array<i64: 1, 128>}, {pipeline_mode = #tpu.pipeline_mode<synchronous>, transform_indices = @transform_16, window_bounds = array<i64: 64, 4>}, {pipeline_mode = #tpu.pipeline_mode<synchronous>, transform_indices = @transform_17, window_bounds = array<i64: 1, 4>}, {pipeline_mode = #tpu.pipeline_mode<synchronous>, transform_indices = @transform_18, window_bounds = array<i64: 64, 4>}]} {
    %c0 = arith.constant 0 : index
    %c0_0 = arith.constant 0 : index
    %0 = vector.load %arg1[%c0, %c0_0] : memref<64x64xf32, #tpu.memory_space<vmem>>, vector<64x64xf32>
    %1 = arith.truncf %0 : vector<64x64xf32> to vector<64x64xbf16>
    %c0_1 = arith.constant 0 : index
    %c0_2 = arith.constant 0 : index
    %2 = vector.load %arg3[%c0_1, %c0_2] : memref<64x128xbf16, #tpu.memory_space<vmem>>, vector<64x128xbf16>
    %cst = arith.constant dense<0.000000e+00> : vector<64x128xf32>
    %3 = tpu.matmul %1, %2, %cst {dimension_numbers = #tpu.dot_dimension_numbers<[1], [0], [0], [1], [0, 0, 1, 1], [], []>} : vector<64x64xbf16>, vector<64x128xbf16>, vector<64x128xf32> -> vector<64x128xf32>
    %c0_3 = arith.constant 0 : index
    %c0_4 = arith.constant 0 : index
    %4 = vector.load %arg4[%c0_3, %c0_4] : memref<1x128xf32, #tpu.memory_space<vmem>>, vector<1x128xf32>
    %5 = vector.broadcast %4 : vector<1x128xf32> to vector<64x128xf32>
    %6 = arith.addf %3, %5 : vector<64x128xf32>
    %c0_5 = arith.constant 0 : index
    %c0_6 = arith.constant 0 : index
    %7 = vector.load %arg5[%c0_5, %c0_6] : memref<128x132xf32, #tpu.memory_space<vmem>>, vector<128x132xf32>
    %cst_7 = arith.constant dense<0.000000e+00> : vector<64x132xf32>
    %8 = tpu.matmul %6, %7, %cst_7 {dimension_numbers = #tpu.dot_dimension_numbers<[1], [0], [0], [1], [0, 0, 1, 1], [], []>} : vector<64x128xf32>, vector<128x132xf32>, vector<64x132xf32> -> vector<64x132xf32>
    %9 = vector.extract_strided_slice %8 {offsets = [0, 0], sizes = [64, 128], strides = [1, 1]} : vector<64x132xf32> to vector<64x128xf32>
    %10 = tpu.transpose %9, [1, 0] : vector<64x128xf32> -> vector<128x64xf32>
    %11 = vector.extract_strided_slice %8 {offsets = [0, 128], sizes = [64, 4], strides = [1, 1]} : vector<64x132xf32> to vector<64x4xf32>
    %c0_8 = arith.constant 0 : index
    %c0_9 = arith.constant 0 : index
    %c0_10 = arith.constant 0 : index
    %12 = vector.load %arg2[%c0_8, %c0_9, %c0_10] : memref<2x64x64xi8, #tpu.memory_space<vmem>>, vector<1x64x64xi8>
    %13 = vector.shape_cast %12 : vector<1x64x64xi8> to vector<64x64xi8>
    %14 = arith.sitofp %13 : vector<64x64xi8> to vector<64x64xf32>
    %cst_11 = arith.constant 1.000000e+00 : f32
    %15 = vector.broadcast %cst_11 : f32 to vector<64x64xf32>
    %16 = arith.subf %14, %15 : vector<64x64xf32>
    %cst_12 = arith.constant 1.000000e+09 : f32
    %17 = vector.broadcast %cst_12 : f32 to vector<64x64xf32>
    %18 = arith.mulf %16, %17 : vector<64x64xf32>
    %19 = vector.extract_strided_slice %6 {offsets = [0, 0], sizes = [64, 32], strides = [1, 1]} : vector<64x128xf32> to vector<64x32xf32>
    %20 = vector.extract_strided_slice %11 {offsets = [0, 0], sizes = [64, 1], strides = [1, 1]} : vector<64x4xf32> to vector<64x1xf32>
    %21 = vector.extract_strided_slice %10 {offsets = [0, 0], sizes = [1, 64], strides = [1, 1]} : vector<128x64xf32> to vector<1x64xf32>
    %22 = vector.broadcast %20 : vector<64x1xf32> to vector<64x64xf32>
    %23 = vector.broadcast %21 : vector<1x64xf32> to vector<64x64xf32>
    %24 = arith.addf %22, %23 : vector<64x64xf32>
    %cst_13 = arith.constant 0.000000e+00 : f32
    %25 = vector.broadcast %cst_13 : f32 to vector<64x64xf32>
    %26 = arith.cmpf ogt, %24, %25 : vector<64x64xf32>
    %cst_14 = arith.constant 2.000000e-01 : f32
    %27 = vector.broadcast %cst_14 : f32 to vector<64x64xf32>
    %28 = arith.mulf %27, %24 : vector<64x64xf32>
    %29 = arith.select %26, %24, %28 : vector<64x64xi1>, vector<64x64xf32>
    %30 = arith.addf %29, %18 : vector<64x64xf32>
    %cst_15 = arith.constant dense<0xFF800000> : vector<64xf32>
    %31 = vector.multi_reduction <maximumf>, %30, %cst_15 [1] : vector<64x64xf32> to vector<64xf32>
    %32 = vector.shape_cast %31 : vector<64xf32> to vector<64x1xf32>
    %cst_16 = arith.constant -1.000000e+04 : f32
    %33 = vector.broadcast %cst_16 : f32 to vector<64x1xf32>
    %34 = arith.maximumf %32, %33 : vector<64x1xf32>
    %35 = vector.broadcast %34 : vector<64x1xf32> to vector<64x64xf32>
    %36 = arith.subf %30, %35 : vector<64x64xf32>
    %37 = math.exp %36 : vector<64x64xf32>
    %cst_17 = arith.constant dense<0.000000e+00> : vector<64xf32>
    %38 = vector.multi_reduction <add>, %37, %cst_17 [1] : vector<64x64xf32> to vector<64xf32>
    %39 = vector.shape_cast %38 : vector<64xf32> to vector<64x1xf32>
    %cst_18 = arith.constant 0.000000e+00 : f32
    %40 = vector.broadcast %cst_18 : f32 to vector<64x1xf32>
    %41 = arith.cmpf oeq, %39, %40 : vector<64x1xf32>
    %cst_19 = arith.constant 1.000000e+00 : f32
    %42 = vector.broadcast %cst_19 : f32 to vector<64x1xf32>
    %43 = arith.select %41, %42, %39 : vector<64x1xi1>, vector<64x1xf32>
    %cst_20 = arith.constant 1.000000e+00 : f32
    %44 = vector.broadcast %cst_20 : f32 to vector<64x1xf32>
    %45 = arith.divf %44, %43 : vector<64x1xf32>
    %46 = vector.broadcast %45 : vector<64x1xf32> to vector<64x64xf32>
    %47 = arith.mulf %37, %46 : vector<64x64xf32>
    %48 = arith.truncf %47 : vector<64x64xf32> to vector<64x64xbf16>
    %49 = arith.truncf %19 : vector<64x32xf32> to vector<64x32xbf16>
    %cst_21 = arith.constant dense<0.000000e+00> : vector<64x32xf32>
    %50 = tpu.matmul %48, %49, %cst_21 {dimension_numbers = #tpu.dot_dimension_numbers<[1], [0], [0], [1], [0, 0, 1, 1], [], []>} : vector<64x64xbf16>, vector<64x32xbf16>, vector<64x32xf32> -> vector<64x32xf32>
    %c0_22 = arith.constant 0 : index
    %c0_23 = arith.constant 0 : index
    %51 = vector.load %arg6[%c0_22, %c0_23] : memref<1x128xf32, #tpu.memory_space<vmem>>, vector<1x32xf32>
    %52 = vector.broadcast %51 : vector<1x32xf32> to vector<64x32xf32>
    %53 = arith.addf %50, %52 : vector<64x32xf32>
    %cst_24 = arith.constant 0.000000e+00 : f32
    %54 = vector.broadcast %cst_24 : f32 to vector<64x32xf32>
    %55 = arith.cmpf ogt, %53, %54 : vector<64x32xf32>
    %cst_25 = arith.constant 0.000000e+00 : f32
    %56 = vector.broadcast %cst_25 : f32 to vector<64x32xf32>
    %57 = arith.minimumf %53, %56 : vector<64x32xf32>
    %58 = math.exp %57 : vector<64x32xf32>
    %cst_26 = arith.constant 1.000000e+00 : f32
    %59 = vector.broadcast %cst_26 : f32 to vector<64x32xf32>
    %60 = arith.subf %58, %59 : vector<64x32xf32>
    %61 = arith.select %55, %53, %60 : vector<64x32xi1>, vector<64x32xf32>
    %62 = vector.extract_strided_slice %6 {offsets = [0, 32], sizes = [64, 32], strides = [1, 1]} : vector<64x128xf32> to vector<64x32xf32>
    %63 = vector.extract_strided_slice %11 {offsets = [0, 1], sizes = [64, 1], strides = [1, 1]} : vector<64x4xf32> to vector<64x1xf32>
    %64 = vector.extract_strided_slice %10 {offsets = [1, 0], sizes = [1, 64], strides = [1, 1]} : vector<128x64xf32> to vector<1x64xf32>
    %65 = vector.broadcast %63 : vector<64x1xf32> to vector<64x64xf32>
    %66 = vector.broadcast %64 : vector<1x64xf32> to vector<64x64xf32>
    %67 = arith.addf %65, %66 : vector<64x64xf32>
    %cst_27 = arith.constant 0.000000e+00 : f32
    %68 = vector.broadcast %cst_27 : f32 to vector<64x64xf32>
    %69 = arith.cmpf ogt, %67, %68 : vector<64x64xf32>
    %cst_28 = arith.constant 2.000000e-01 : f32
    %70 = vector.broadcast %cst_28 : f32 to vector<64x64xf32>
    %71 = arith.mulf %70, %67 : vector<64x64xf32>
    %72 = arith.select %69, %67, %71 : vector<64x64xi1>, vector<64x64xf32>
    %73 = arith.addf %72, %18 : vector<64x64xf32>
    %cst_29 = arith.constant dense<0xFF800000> : vector<64xf32>
    %74 = vector.multi_reduction <maximumf>, %73, %cst_29 [1] : vector<64x64xf32> to vector<64xf32>
    %75 = vector.shape_cast %74 : vector<64xf32> to vector<64x1xf32>
    %cst_30 = arith.constant -1.000000e+04 : f32
    %76 = vector.broadcast %cst_30 : f32 to vector<64x1xf32>
    %77 = arith.maximumf %75, %76 : vector<64x1xf32>
    %78 = vector.broadcast %77 : vector<64x1xf32> to vector<64x64xf32>
    %79 = arith.subf %73, %78 : vector<64x64xf32>
    %80 = math.exp %79 : vector<64x64xf32>
    %cst_31 = arith.constant dense<0.000000e+00> : vector<64xf32>
    %81 = vector.multi_reduction <add>, %80, %cst_31 [1] : vector<64x64xf32> to vector<64xf32>
    %82 = vector.shape_cast %81 : vector<64xf32> to vector<64x1xf32>
    %cst_32 = arith.constant 0.000000e+00 : f32
    %83 = vector.broadcast %cst_32 : f32 to vector<64x1xf32>
    %84 = arith.cmpf oeq, %82, %83 : vector<64x1xf32>
    %cst_33 = arith.constant 1.000000e+00 : f32
    %85 = vector.broadcast %cst_33 : f32 to vector<64x1xf32>
    %86 = arith.select %84, %85, %82 : vector<64x1xi1>, vector<64x1xf32>
    %cst_34 = arith.constant 1.000000e+00 : f32
    %87 = vector.broadcast %cst_34 : f32 to vector<64x1xf32>
    %88 = arith.divf %87, %86 : vector<64x1xf32>
    %89 = vector.broadcast %88 : vector<64x1xf32> to vector<64x64xf32>
    %90 = arith.mulf %80, %89 : vector<64x64xf32>
    %91 = arith.truncf %90 : vector<64x64xf32> to vector<64x64xbf16>
    %92 = arith.truncf %62 : vector<64x32xf32> to vector<64x32xbf16>
    %cst_35 = arith.constant dense<0.000000e+00> : vector<64x32xf32>
    %93 = tpu.matmul %91, %92, %cst_35 {dimension_numbers = #tpu.dot_dimension_numbers<[1], [0], [0], [1], [0, 0, 1, 1], [], []>} : vector<64x64xbf16>, vector<64x32xbf16>, vector<64x32xf32> -> vector<64x32xf32>
    %c0_36 = arith.constant 0 : index
    %c32 = arith.constant 32 : index
    %94 = vector.load %arg6[%c0_36, %c32] : memref<1x128xf32, #tpu.memory_space<vmem>>, vector<1x32xf32>
    %95 = vector.broadcast %94 : vector<1x32xf32> to vector<64x32xf32>
    %96 = arith.addf %93, %95 : vector<64x32xf32>
    %cst_37 = arith.constant 0.000000e+00 : f32
    %97 = vector.broadcast %cst_37 : f32 to vector<64x32xf32>
    %98 = arith.cmpf ogt, %96, %97 : vector<64x32xf32>
    %cst_38 = arith.constant 0.000000e+00 : f32
    %99 = vector.broadcast %cst_38 : f32 to vector<64x32xf32>
    %100 = arith.minimumf %96, %99 : vector<64x32xf32>
    %101 = math.exp %100 : vector<64x32xf32>
    %cst_39 = arith.constant 1.000000e+00 : f32
    %102 = vector.broadcast %cst_39 : f32 to vector<64x32xf32>
    %103 = arith.subf %101, %102 : vector<64x32xf32>
    %104 = arith.select %98, %96, %103 : vector<64x32xi1>, vector<64x32xf32>
    %105 = tpu.concatenate %61, %104 in 1 : vector<64x32xf32>, vector<64x32xf32> -> vector<64x64xf32>
    %c1 = arith.constant 1 : index
    %c0_40 = arith.constant 0 : index
    %c0_41 = arith.constant 0 : index
    %106 = vector.load %arg2[%c1, %c0_40, %c0_41] : memref<2x64x64xi8, #tpu.memory_space<vmem>>, vector<1x64x64xi8>
    %107 = vector.shape_cast %106 : vector<1x64x64xi8> to vector<64x64xi8>
    %108 = arith.sitofp %107 : vector<64x64xi8> to vector<64x64xf32>
    %cst_42 = arith.constant 1.000000e+00 : f32
    %109 = vector.broadcast %cst_42 : f32 to vector<64x64xf32>
    %110 = arith.subf %108, %109 : vector<64x64xf32>
    %cst_43 = arith.constant 1.000000e+09 : f32
    %111 = vector.broadcast %cst_43 : f32 to vector<64x64xf32>
    %112 = arith.mulf %110, %111 : vector<64x64xf32>
    %113 = vector.extract_strided_slice %6 {offsets = [0, 64], sizes = [64, 32], strides = [1, 1]} : vector<64x128xf32> to vector<64x32xf32>
    %114 = vector.extract_strided_slice %11 {offsets = [0, 2], sizes = [64, 1], strides = [1, 1]} : vector<64x4xf32> to vector<64x1xf32>
    %115 = vector.extract_strided_slice %10 {offsets = [2, 0], sizes = [1, 64], strides = [1, 1]} : vector<128x64xf32> to vector<1x64xf32>
    %116 = vector.broadcast %114 : vector<64x1xf32> to vector<64x64xf32>
    %117 = vector.broadcast %115 : vector<1x64xf32> to vector<64x64xf32>
    %118 = arith.addf %116, %117 : vector<64x64xf32>
    %cst_44 = arith.constant 0.000000e+00 : f32
    %119 = vector.broadcast %cst_44 : f32 to vector<64x64xf32>
    %120 = arith.cmpf ogt, %118, %119 : vector<64x64xf32>
    %cst_45 = arith.constant 2.000000e-01 : f32
    %121 = vector.broadcast %cst_45 : f32 to vector<64x64xf32>
    %122 = arith.mulf %121, %118 : vector<64x64xf32>
    %123 = arith.select %120, %118, %122 : vector<64x64xi1>, vector<64x64xf32>
    %124 = arith.addf %123, %112 : vector<64x64xf32>
    %cst_46 = arith.constant dense<0xFF800000> : vector<64xf32>
    %125 = vector.multi_reduction <maximumf>, %124, %cst_46 [1] : vector<64x64xf32> to vector<64xf32>
    %126 = vector.shape_cast %125 : vector<64xf32> to vector<64x1xf32>
    %cst_47 = arith.constant -1.000000e+04 : f32
    %127 = vector.broadcast %cst_47 : f32 to vector<64x1xf32>
    %128 = arith.maximumf %126, %127 : vector<64x1xf32>
    %129 = vector.broadcast %128 : vector<64x1xf32> to vector<64x64xf32>
    %130 = arith.subf %124, %129 : vector<64x64xf32>
    %131 = math.exp %130 : vector<64x64xf32>
    %cst_48 = arith.constant dense<0.000000e+00> : vector<64xf32>
    %132 = vector.multi_reduction <add>, %131, %cst_48 [1] : vector<64x64xf32> to vector<64xf32>
    %133 = vector.shape_cast %132 : vector<64xf32> to vector<64x1xf32>
    %cst_49 = arith.constant 0.000000e+00 : f32
    %134 = vector.broadcast %cst_49 : f32 to vector<64x1xf32>
    %135 = arith.cmpf oeq, %133, %134 : vector<64x1xf32>
    %cst_50 = arith.constant 1.000000e+00 : f32
    %136 = vector.broadcast %cst_50 : f32 to vector<64x1xf32>
    %137 = arith.select %135, %136, %133 : vector<64x1xi1>, vector<64x1xf32>
    %cst_51 = arith.constant 1.000000e+00 : f32
    %138 = vector.broadcast %cst_51 : f32 to vector<64x1xf32>
    %139 = arith.divf %138, %137 : vector<64x1xf32>
    %140 = vector.broadcast %139 : vector<64x1xf32> to vector<64x64xf32>
    %141 = arith.mulf %131, %140 : vector<64x64xf32>
    %142 = arith.truncf %141 : vector<64x64xf32> to vector<64x64xbf16>
    %143 = arith.truncf %113 : vector<64x32xf32> to vector<64x32xbf16>
    %cst_52 = arith.constant dense<0.000000e+00> : vector<64x32xf32>
    %144 = tpu.matmul %142, %143, %cst_52 {dimension_numbers = #tpu.dot_dimension_numbers<[1], [0], [0], [1], [0, 0, 1, 1], [], []>} : vector<64x64xbf16>, vector<64x32xbf16>, vector<64x32xf32> -> vector<64x32xf32>
    %c0_53 = arith.constant 0 : index
    %c64 = arith.constant 64 : index
    %145 = vector.load %arg6[%c0_53, %c64] : memref<1x128xf32, #tpu.memory_space<vmem>>, vector<1x32xf32>
    %146 = vector.broadcast %145 : vector<1x32xf32> to vector<64x32xf32>
    %147 = arith.addf %144, %146 : vector<64x32xf32>
    %cst_54 = arith.constant 0.000000e+00 : f32
    %148 = vector.broadcast %cst_54 : f32 to vector<64x32xf32>
    %149 = arith.cmpf ogt, %147, %148 : vector<64x32xf32>
    %cst_55 = arith.constant 0.000000e+00 : f32
    %150 = vector.broadcast %cst_55 : f32 to vector<64x32xf32>
    %151 = arith.minimumf %147, %150 : vector<64x32xf32>
    %152 = math.exp %151 : vector<64x32xf32>
    %cst_56 = arith.constant 1.000000e+00 : f32
    %153 = vector.broadcast %cst_56 : f32 to vector<64x32xf32>
    %154 = arith.subf %152, %153 : vector<64x32xf32>
    %155 = arith.select %149, %147, %154 : vector<64x32xi1>, vector<64x32xf32>
    %156 = vector.extract_strided_slice %6 {offsets = [0, 96], sizes = [64, 32], strides = [1, 1]} : vector<64x128xf32> to vector<64x32xf32>
    %157 = vector.extract_strided_slice %11 {offsets = [0, 3], sizes = [64, 1], strides = [1, 1]} : vector<64x4xf32> to vector<64x1xf32>
    %158 = vector.extract_strided_slice %10 {offsets = [3, 0], sizes = [1, 64], strides = [1, 1]} : vector<128x64xf32> to vector<1x64xf32>
    %159 = vector.broadcast %157 : vector<64x1xf32> to vector<64x64xf32>
    %160 = vector.broadcast %158 : vector<1x64xf32> to vector<64x64xf32>
    %161 = arith.addf %159, %160 : vector<64x64xf32>
    %cst_57 = arith.constant 0.000000e+00 : f32
    %162 = vector.broadcast %cst_57 : f32 to vector<64x64xf32>
    %163 = arith.cmpf ogt, %161, %162 : vector<64x64xf32>
    %cst_58 = arith.constant 2.000000e-01 : f32
    %164 = vector.broadcast %cst_58 : f32 to vector<64x64xf32>
    %165 = arith.mulf %164, %161 : vector<64x64xf32>
    %166 = arith.select %163, %161, %165 : vector<64x64xi1>, vector<64x64xf32>
    %167 = arith.addf %166, %112 : vector<64x64xf32>
    %cst_59 = arith.constant dense<0xFF800000> : vector<64xf32>
    %168 = vector.multi_reduction <maximumf>, %167, %cst_59 [1] : vector<64x64xf32> to vector<64xf32>
    %169 = vector.shape_cast %168 : vector<64xf32> to vector<64x1xf32>
    %cst_60 = arith.constant -1.000000e+04 : f32
    %170 = vector.broadcast %cst_60 : f32 to vector<64x1xf32>
    %171 = arith.maximumf %169, %170 : vector<64x1xf32>
    %172 = vector.broadcast %171 : vector<64x1xf32> to vector<64x64xf32>
    %173 = arith.subf %167, %172 : vector<64x64xf32>
    %174 = math.exp %173 : vector<64x64xf32>
    %cst_61 = arith.constant dense<0.000000e+00> : vector<64xf32>
    %175 = vector.multi_reduction <add>, %174, %cst_61 [1] : vector<64x64xf32> to vector<64xf32>
    %176 = vector.shape_cast %175 : vector<64xf32> to vector<64x1xf32>
    %cst_62 = arith.constant 0.000000e+00 : f32
    %177 = vector.broadcast %cst_62 : f32 to vector<64x1xf32>
    %178 = arith.cmpf oeq, %176, %177 : vector<64x1xf32>
    %cst_63 = arith.constant 1.000000e+00 : f32
    %179 = vector.broadcast %cst_63 : f32 to vector<64x1xf32>
    %180 = arith.select %178, %179, %176 : vector<64x1xi1>, vector<64x1xf32>
    %cst_64 = arith.constant 1.000000e+00 : f32
    %181 = vector.broadcast %cst_64 : f32 to vector<64x1xf32>
    %182 = arith.divf %181, %180 : vector<64x1xf32>
    %183 = vector.broadcast %182 : vector<64x1xf32> to vector<64x64xf32>
    %184 = arith.mulf %174, %183 : vector<64x64xf32>
    %185 = arith.truncf %184 : vector<64x64xf32> to vector<64x64xbf16>
    %186 = arith.truncf %156 : vector<64x32xf32> to vector<64x32xbf16>
    %cst_65 = arith.constant dense<0.000000e+00> : vector<64x32xf32>
    %187 = tpu.matmul %185, %186, %cst_65 {dimension_numbers = #tpu.dot_dimension_numbers<[1], [0], [0], [1], [0, 0, 1, 1], [], []>} : vector<64x64xbf16>, vector<64x32xbf16>, vector<64x32xf32> -> vector<64x32xf32>
    %c0_66 = arith.constant 0 : index
    %c96 = arith.constant 96 : index
    %188 = vector.load %arg6[%c0_66, %c96] : memref<1x128xf32, #tpu.memory_space<vmem>>, vector<1x32xf32>
    %189 = vector.broadcast %188 : vector<1x32xf32> to vector<64x32xf32>
    %190 = arith.addf %187, %189 : vector<64x32xf32>
    %cst_67 = arith.constant 0.000000e+00 : f32
    %191 = vector.broadcast %cst_67 : f32 to vector<64x32xf32>
    %192 = arith.cmpf ogt, %190, %191 : vector<64x32xf32>
    %cst_68 = arith.constant 0.000000e+00 : f32
    %193 = vector.broadcast %cst_68 : f32 to vector<64x32xf32>
    %194 = arith.minimumf %190, %193 : vector<64x32xf32>
    %195 = math.exp %194 : vector<64x32xf32>
    %cst_69 = arith.constant 1.000000e+00 : f32
    %196 = vector.broadcast %cst_69 : f32 to vector<64x32xf32>
    %197 = arith.subf %195, %196 : vector<64x32xf32>
    %198 = arith.select %192, %190, %197 : vector<64x32xi1>, vector<64x32xf32>
    %199 = tpu.concatenate %155, %198 in 1 : vector<64x32xf32>, vector<64x32xf32> -> vector<64x64xf32>
    %200 = tpu.concatenate %105, %199 in 0 : vector<64x64xf32>, vector<64x64xf32> -> vector<128x64xf32>
    %201 = arith.truncf %200 : vector<128x64xf32> to vector<128x64xbf16>
    %c0_70 = arith.constant 0 : index
    %c0_71 = arith.constant 0 : index
    %202 = vector.load %arg7[%c0_70, %c0_71] : memref<64x128xbf16, #tpu.memory_space<vmem>>, vector<64x128xbf16>
    %cst_72 = arith.constant dense<0.000000e+00> : vector<128x128xf32>
    %203 = tpu.matmul %201, %202, %cst_72 {dimension_numbers = #tpu.dot_dimension_numbers<[1], [0], [0], [1], [0, 0, 1, 1], [], []>} : vector<128x64xbf16>, vector<64x128xbf16>, vector<128x128xf32> -> vector<128x128xf32>
    %c0_73 = arith.constant 0 : index
    %c0_74 = arith.constant 0 : index
    %204 = vector.load %arg8[%c0_73, %c0_74] : memref<1x128xf32, #tpu.memory_space<vmem>>, vector<1x128xf32>
    %205 = vector.broadcast %204 : vector<1x128xf32> to vector<128x128xf32>
    %206 = arith.addf %203, %205 : vector<128x128xf32>
    %207 = math.tanh %206 : vector<128x128xf32>
    %c0_75 = arith.constant 0 : index
    %c0_76 = arith.constant 0 : index
    %208 = vector.load %arg9[%c0_75, %c0_76] : memref<1x128xf32, #tpu.memory_space<vmem>>, vector<1x128xf32>
    %209 = vector.broadcast %208 : vector<1x128xf32> to vector<128x128xf32>
    %210 = arith.mulf %207, %209 : vector<128x128xf32>
    %cst_77 = arith.constant dense<0.000000e+00> : vector<128xf32>
    %211 = vector.multi_reduction <add>, %210, %cst_77 [1] : vector<128x128xf32> to vector<128xf32>
    %212 = vector.shape_cast %211 : vector<128xf32> to vector<128x1xf32>
    %213 = vector.extract_strided_slice %212 {offsets = [0, 0], sizes = [64, 1], strides = [1, 1]} : vector<128x1xf32> to vector<64x1xf32>
    %cst_78 = arith.constant dense<0.000000e+00> : vector<1xf32>
    %214 = vector.multi_reduction <add>, %213, %cst_78 [0] : vector<64x1xf32> to vector<1xf32>
    %215 = vector.shape_cast %214 : vector<1xf32> to vector<1x1xf32>
    %cst_79 = arith.constant 1.562500e-02 : f32
    %216 = vector.broadcast %cst_79 : f32 to vector<1x1xf32>
    %217 = arith.mulf %215, %216 : vector<1x1xf32>
    %218 = vector.extract_strided_slice %212 {offsets = [64, 0], sizes = [64, 1], strides = [1, 1]} : vector<128x1xf32> to vector<64x1xf32>
    %cst_80 = arith.constant dense<0.000000e+00> : vector<1xf32>
    %219 = vector.multi_reduction <add>, %218, %cst_80 [0] : vector<64x1xf32> to vector<1xf32>
    %220 = vector.shape_cast %219 : vector<1xf32> to vector<1x1xf32>
    %cst_81 = arith.constant 1.562500e-02 : f32
    %221 = vector.broadcast %cst_81 : f32 to vector<1x1xf32>
    %222 = arith.mulf %220, %221 : vector<1x1xf32>
    %223 = arith.maximumf %217, %222 : vector<1x1xf32>
    %224 = arith.subf %217, %223 : vector<1x1xf32>
    %225 = math.exp %224 : vector<1x1xf32>
    %226 = arith.subf %222, %223 : vector<1x1xf32>
    %227 = math.exp %226 : vector<1x1xf32>
    %228 = arith.addf %225, %227 : vector<1x1xf32>
    %cst_82 = arith.constant 1.000000e+00 : f32
    %229 = vector.broadcast %cst_82 : f32 to vector<1x1xf32>
    %230 = arith.divf %229, %228 : vector<1x1xf32>
    %231 = arith.mulf %225, %230 : vector<1x1xf32>
    %232 = vector.broadcast %231 : vector<1x1xf32> to vector<64x64xf32>
    %233 = arith.mulf %232, %105 : vector<64x64xf32>
    %234 = arith.mulf %227, %230 : vector<1x1xf32>
    %235 = vector.broadcast %234 : vector<1x1xf32> to vector<64x64xf32>
    %236 = arith.mulf %235, %199 : vector<64x64xf32>
    %237 = arith.addf %233, %236 : vector<64x64xf32>
    %238 = arith.truncf %237 : vector<64x64xf32> to vector<64x64xbf16>
    %c0_83 = arith.constant 0 : index
    %c0_84 = arith.constant 0 : index
    %239 = vector.load %arg10[%c0_83, %c0_84] : memref<64x128xbf16, #tpu.memory_space<vmem>>, vector<64x128xbf16>
    %cst_85 = arith.constant dense<0.000000e+00> : vector<64x128xf32>
    %240 = tpu.matmul %238, %239, %cst_85 {dimension_numbers = #tpu.dot_dimension_numbers<[1], [0], [0], [1], [0, 0, 1, 1], [], []>} : vector<64x64xbf16>, vector<64x128xbf16>, vector<64x128xf32> -> vector<64x128xf32>
    %c0_86 = arith.constant 0 : index
    %c0_87 = arith.constant 0 : index
    %241 = vector.load %arg11[%c0_86, %c0_87] : memref<1x128xf32, #tpu.memory_space<vmem>>, vector<1x128xf32>
    %242 = vector.broadcast %241 : vector<1x128xf32> to vector<64x128xf32>
    %243 = arith.addf %240, %242 : vector<64x128xf32>
    %c0_88 = arith.constant 0 : index
    %c0_89 = arith.constant 0 : index
    %244 = vector.load %arg12[%c0_88, %c0_89] : memref<128x132xf32, #tpu.memory_space<vmem>>, vector<128x132xf32>
    %cst_90 = arith.constant dense<0.000000e+00> : vector<64x132xf32>
    %245 = tpu.matmul %243, %244, %cst_90 {dimension_numbers = #tpu.dot_dimension_numbers<[1], [0], [0], [1], [0, 0, 1, 1], [], []>} : vector<64x128xf32>, vector<128x132xf32>, vector<64x132xf32> -> vector<64x132xf32>
    %246 = vector.extract_strided_slice %245 {offsets = [0, 0], sizes = [64, 128], strides = [1, 1]} : vector<64x132xf32> to vector<64x128xf32>
    %247 = tpu.transpose %246, [1, 0] : vector<64x128xf32> -> vector<128x64xf32>
    %248 = vector.extract_strided_slice %245 {offsets = [0, 128], sizes = [64, 4], strides = [1, 1]} : vector<64x132xf32> to vector<64x4xf32>
    %c0_91 = arith.constant 0 : index
    %c0_92 = arith.constant 0 : index
    %c0_93 = arith.constant 0 : index
    %249 = vector.load %arg2[%c0_91, %c0_92, %c0_93] : memref<2x64x64xi8, #tpu.memory_space<vmem>>, vector<1x64x64xi8>
    %250 = vector.shape_cast %249 : vector<1x64x64xi8> to vector<64x64xi8>
    %251 = arith.sitofp %250 : vector<64x64xi8> to vector<64x64xf32>
    %cst_94 = arith.constant 1.000000e+00 : f32
    %252 = vector.broadcast %cst_94 : f32 to vector<64x64xf32>
    %253 = arith.subf %251, %252 : vector<64x64xf32>
    %cst_95 = arith.constant 1.000000e+09 : f32
    %254 = vector.broadcast %cst_95 : f32 to vector<64x64xf32>
    %255 = arith.mulf %253, %254 : vector<64x64xf32>
    %256 = vector.extract_strided_slice %243 {offsets = [0, 0], sizes = [64, 32], strides = [1, 1]} : vector<64x128xf32> to vector<64x32xf32>
    %257 = vector.extract_strided_slice %248 {offsets = [0, 0], sizes = [64, 1], strides = [1, 1]} : vector<64x4xf32> to vector<64x1xf32>
    %258 = vector.extract_strided_slice %247 {offsets = [0, 0], sizes = [1, 64], strides = [1, 1]} : vector<128x64xf32> to vector<1x64xf32>
    %259 = vector.broadcast %257 : vector<64x1xf32> to vector<64x64xf32>
    %260 = vector.broadcast %258 : vector<1x64xf32> to vector<64x64xf32>
    %261 = arith.addf %259, %260 : vector<64x64xf32>
    %cst_96 = arith.constant 0.000000e+00 : f32
    %262 = vector.broadcast %cst_96 : f32 to vector<64x64xf32>
    %263 = arith.cmpf ogt, %261, %262 : vector<64x64xf32>
    %cst_97 = arith.constant 2.000000e-01 : f32
    %264 = vector.broadcast %cst_97 : f32 to vector<64x64xf32>
    %265 = arith.mulf %264, %261 : vector<64x64xf32>
    %266 = arith.select %263, %261, %265 : vector<64x64xi1>, vector<64x64xf32>
    %267 = arith.addf %266, %255 : vector<64x64xf32>
    %cst_98 = arith.constant dense<0xFF800000> : vector<64xf32>
    %268 = vector.multi_reduction <maximumf>, %267, %cst_98 [1] : vector<64x64xf32> to vector<64xf32>
    %269 = vector.shape_cast %268 : vector<64xf32> to vector<64x1xf32>
    %cst_99 = arith.constant -1.000000e+04 : f32
    %270 = vector.broadcast %cst_99 : f32 to vector<64x1xf32>
    %271 = arith.maximumf %269, %270 : vector<64x1xf32>
    %272 = vector.broadcast %271 : vector<64x1xf32> to vector<64x64xf32>
    %273 = arith.subf %267, %272 : vector<64x64xf32>
    %274 = math.exp %273 : vector<64x64xf32>
    %cst_100 = arith.constant dense<0.000000e+00> : vector<64xf32>
    %275 = vector.multi_reduction <add>, %274, %cst_100 [1] : vector<64x64xf32> to vector<64xf32>
    %276 = vector.shape_cast %275 : vector<64xf32> to vector<64x1xf32>
    %cst_101 = arith.constant 0.000000e+00 : f32
    %277 = vector.broadcast %cst_101 : f32 to vector<64x1xf32>
    %278 = arith.cmpf oeq, %276, %277 : vector<64x1xf32>
    %cst_102 = arith.constant 1.000000e+00 : f32
    %279 = vector.broadcast %cst_102 : f32 to vector<64x1xf32>
    %280 = arith.select %278, %279, %276 : vector<64x1xi1>, vector<64x1xf32>
    %cst_103 = arith.constant 1.000000e+00 : f32
    %281 = vector.broadcast %cst_103 : f32 to vector<64x1xf32>
    %282 = arith.divf %281, %280 : vector<64x1xf32>
    %283 = vector.broadcast %282 : vector<64x1xf32> to vector<64x64xf32>
    %284 = arith.mulf %274, %283 : vector<64x64xf32>
    %285 = arith.truncf %284 : vector<64x64xf32> to vector<64x64xbf16>
    %286 = arith.truncf %256 : vector<64x32xf32> to vector<64x32xbf16>
    %cst_104 = arith.constant dense<0.000000e+00> : vector<64x32xf32>
    %287 = tpu.matmul %285, %286, %cst_104 {dimension_numbers = #tpu.dot_dimension_numbers<[1], [0], [0], [1], [0, 0, 1, 1], [], []>} : vector<64x64xbf16>, vector<64x32xbf16>, vector<64x32xf32> -> vector<64x32xf32>
    %c0_105 = arith.constant 0 : index
    %c0_106 = arith.constant 0 : index
    %288 = vector.load %arg13[%c0_105, %c0_106] : memref<1x128xf32, #tpu.memory_space<vmem>>, vector<1x32xf32>
    %289 = vector.broadcast %288 : vector<1x32xf32> to vector<64x32xf32>
    %290 = arith.addf %287, %289 : vector<64x32xf32>
    %cst_107 = arith.constant 0.000000e+00 : f32
    %291 = vector.broadcast %cst_107 : f32 to vector<64x32xf32>
    %292 = arith.cmpf ogt, %290, %291 : vector<64x32xf32>
    %cst_108 = arith.constant 0.000000e+00 : f32
    %293 = vector.broadcast %cst_108 : f32 to vector<64x32xf32>
    %294 = arith.minimumf %290, %293 : vector<64x32xf32>
    %295 = math.exp %294 : vector<64x32xf32>
    %cst_109 = arith.constant 1.000000e+00 : f32
    %296 = vector.broadcast %cst_109 : f32 to vector<64x32xf32>
    %297 = arith.subf %295, %296 : vector<64x32xf32>
    %298 = arith.select %292, %290, %297 : vector<64x32xi1>, vector<64x32xf32>
    %299 = vector.extract_strided_slice %243 {offsets = [0, 32], sizes = [64, 32], strides = [1, 1]} : vector<64x128xf32> to vector<64x32xf32>
    %300 = vector.extract_strided_slice %248 {offsets = [0, 1], sizes = [64, 1], strides = [1, 1]} : vector<64x4xf32> to vector<64x1xf32>
    %301 = vector.extract_strided_slice %247 {offsets = [1, 0], sizes = [1, 64], strides = [1, 1]} : vector<128x64xf32> to vector<1x64xf32>
    %302 = vector.broadcast %300 : vector<64x1xf32> to vector<64x64xf32>
    %303 = vector.broadcast %301 : vector<1x64xf32> to vector<64x64xf32>
    %304 = arith.addf %302, %303 : vector<64x64xf32>
    %cst_110 = arith.constant 0.000000e+00 : f32
    %305 = vector.broadcast %cst_110 : f32 to vector<64x64xf32>
    %306 = arith.cmpf ogt, %304, %305 : vector<64x64xf32>
    %cst_111 = arith.constant 2.000000e-01 : f32
    %307 = vector.broadcast %cst_111 : f32 to vector<64x64xf32>
    %308 = arith.mulf %307, %304 : vector<64x64xf32>
    %309 = arith.select %306, %304, %308 : vector<64x64xi1>, vector<64x64xf32>
    %310 = arith.addf %309, %255 : vector<64x64xf32>
    %cst_112 = arith.constant dense<0xFF800000> : vector<64xf32>
    %311 = vector.multi_reduction <maximumf>, %310, %cst_112 [1] : vector<64x64xf32> to vector<64xf32>
    %312 = vector.shape_cast %311 : vector<64xf32> to vector<64x1xf32>
    %cst_113 = arith.constant -1.000000e+04 : f32
    %313 = vector.broadcast %cst_113 : f32 to vector<64x1xf32>
    %314 = arith.maximumf %312, %313 : vector<64x1xf32>
    %315 = vector.broadcast %314 : vector<64x1xf32> to vector<64x64xf32>
    %316 = arith.subf %310, %315 : vector<64x64xf32>
    %317 = math.exp %316 : vector<64x64xf32>
    %cst_114 = arith.constant dense<0.000000e+00> : vector<64xf32>
    %318 = vector.multi_reduction <add>, %317, %cst_114 [1] : vector<64x64xf32> to vector<64xf32>
    %319 = vector.shape_cast %318 : vector<64xf32> to vector<64x1xf32>
    %cst_115 = arith.constant 0.000000e+00 : f32
    %320 = vector.broadcast %cst_115 : f32 to vector<64x1xf32>
    %321 = arith.cmpf oeq, %319, %320 : vector<64x1xf32>
    %cst_116 = arith.constant 1.000000e+00 : f32
    %322 = vector.broadcast %cst_116 : f32 to vector<64x1xf32>
    %323 = arith.select %321, %322, %319 : vector<64x1xi1>, vector<64x1xf32>
    %cst_117 = arith.constant 1.000000e+00 : f32
    %324 = vector.broadcast %cst_117 : f32 to vector<64x1xf32>
    %325 = arith.divf %324, %323 : vector<64x1xf32>
    %326 = vector.broadcast %325 : vector<64x1xf32> to vector<64x64xf32>
    %327 = arith.mulf %317, %326 : vector<64x64xf32>
    %328 = arith.truncf %327 : vector<64x64xf32> to vector<64x64xbf16>
    %329 = arith.truncf %299 : vector<64x32xf32> to vector<64x32xbf16>
    %cst_118 = arith.constant dense<0.000000e+00> : vector<64x32xf32>
    %330 = tpu.matmul %328, %329, %cst_118 {dimension_numbers = #tpu.dot_dimension_numbers<[1], [0], [0], [1], [0, 0, 1, 1], [], []>} : vector<64x64xbf16>, vector<64x32xbf16>, vector<64x32xf32> -> vector<64x32xf32>
    %c0_119 = arith.constant 0 : index
    %c32_120 = arith.constant 32 : index
    %331 = vector.load %arg13[%c0_119, %c32_120] : memref<1x128xf32, #tpu.memory_space<vmem>>, vector<1x32xf32>
    %332 = vector.broadcast %331 : vector<1x32xf32> to vector<64x32xf32>
    %333 = arith.addf %330, %332 : vector<64x32xf32>
    %cst_121 = arith.constant 0.000000e+00 : f32
    %334 = vector.broadcast %cst_121 : f32 to vector<64x32xf32>
    %335 = arith.cmpf ogt, %333, %334 : vector<64x32xf32>
    %cst_122 = arith.constant 0.000000e+00 : f32
    %336 = vector.broadcast %cst_122 : f32 to vector<64x32xf32>
    %337 = arith.minimumf %333, %336 : vector<64x32xf32>
    %338 = math.exp %337 : vector<64x32xf32>
    %cst_123 = arith.constant 1.000000e+00 : f32
    %339 = vector.broadcast %cst_123 : f32 to vector<64x32xf32>
    %340 = arith.subf %338, %339 : vector<64x32xf32>
    %341 = arith.select %335, %333, %340 : vector<64x32xi1>, vector<64x32xf32>
    %342 = tpu.concatenate %298, %341 in 1 : vector<64x32xf32>, vector<64x32xf32> -> vector<64x64xf32>
    %c1_124 = arith.constant 1 : index
    %c0_125 = arith.constant 0 : index
    %c0_126 = arith.constant 0 : index
    %343 = vector.load %arg2[%c1_124, %c0_125, %c0_126] : memref<2x64x64xi8, #tpu.memory_space<vmem>>, vector<1x64x64xi8>
    %344 = vector.shape_cast %343 : vector<1x64x64xi8> to vector<64x64xi8>
    %345 = arith.sitofp %344 : vector<64x64xi8> to vector<64x64xf32>
    %cst_127 = arith.constant 1.000000e+00 : f32
    %346 = vector.broadcast %cst_127 : f32 to vector<64x64xf32>
    %347 = arith.subf %345, %346 : vector<64x64xf32>
    %cst_128 = arith.constant 1.000000e+09 : f32
    %348 = vector.broadcast %cst_128 : f32 to vector<64x64xf32>
    %349 = arith.mulf %347, %348 : vector<64x64xf32>
    %350 = vector.extract_strided_slice %243 {offsets = [0, 64], sizes = [64, 32], strides = [1, 1]} : vector<64x128xf32> to vector<64x32xf32>
    %351 = vector.extract_strided_slice %248 {offsets = [0, 2], sizes = [64, 1], strides = [1, 1]} : vector<64x4xf32> to vector<64x1xf32>
    %352 = vector.extract_strided_slice %247 {offsets = [2, 0], sizes = [1, 64], strides = [1, 1]} : vector<128x64xf32> to vector<1x64xf32>
    %353 = vector.broadcast %351 : vector<64x1xf32> to vector<64x64xf32>
    %354 = vector.broadcast %352 : vector<1x64xf32> to vector<64x64xf32>
    %355 = arith.addf %353, %354 : vector<64x64xf32>
    %cst_129 = arith.constant 0.000000e+00 : f32
    %356 = vector.broadcast %cst_129 : f32 to vector<64x64xf32>
    %357 = arith.cmpf ogt, %355, %356 : vector<64x64xf32>
    %cst_130 = arith.constant 2.000000e-01 : f32
    %358 = vector.broadcast %cst_130 : f32 to vector<64x64xf32>
    %359 = arith.mulf %358, %355 : vector<64x64xf32>
    %360 = arith.select %357, %355, %359 : vector<64x64xi1>, vector<64x64xf32>
    %361 = arith.addf %360, %349 : vector<64x64xf32>
    %cst_131 = arith.constant dense<0xFF800000> : vector<64xf32>
    %362 = vector.multi_reduction <maximumf>, %361, %cst_131 [1] : vector<64x64xf32> to vector<64xf32>
    %363 = vector.shape_cast %362 : vector<64xf32> to vector<64x1xf32>
    %cst_132 = arith.constant -1.000000e+04 : f32
    %364 = vector.broadcast %cst_132 : f32 to vector<64x1xf32>
    %365 = arith.maximumf %363, %364 : vector<64x1xf32>
    %366 = vector.broadcast %365 : vector<64x1xf32> to vector<64x64xf32>
    %367 = arith.subf %361, %366 : vector<64x64xf32>
    %368 = math.exp %367 : vector<64x64xf32>
    %cst_133 = arith.constant dense<0.000000e+00> : vector<64xf32>
    %369 = vector.multi_reduction <add>, %368, %cst_133 [1] : vector<64x64xf32> to vector<64xf32>
    %370 = vector.shape_cast %369 : vector<64xf32> to vector<64x1xf32>
    %cst_134 = arith.constant 0.000000e+00 : f32
    %371 = vector.broadcast %cst_134 : f32 to vector<64x1xf32>
    %372 = arith.cmpf oeq, %370, %371 : vector<64x1xf32>
    %cst_135 = arith.constant 1.000000e+00 : f32
    %373 = vector.broadcast %cst_135 : f32 to vector<64x1xf32>
    %374 = arith.select %372, %373, %370 : vector<64x1xi1>, vector<64x1xf32>
    %cst_136 = arith.constant 1.000000e+00 : f32
    %375 = vector.broadcast %cst_136 : f32 to vector<64x1xf32>
    %376 = arith.divf %375, %374 : vector<64x1xf32>
    %377 = vector.broadcast %376 : vector<64x1xf32> to vector<64x64xf32>
    %378 = arith.mulf %368, %377 : vector<64x64xf32>
    %379 = arith.truncf %378 : vector<64x64xf32> to vector<64x64xbf16>
    %380 = arith.truncf %350 : vector<64x32xf32> to vector<64x32xbf16>
    %cst_137 = arith.constant dense<0.000000e+00> : vector<64x32xf32>
    %381 = tpu.matmul %379, %380, %cst_137 {dimension_numbers = #tpu.dot_dimension_numbers<[1], [0], [0], [1], [0, 0, 1, 1], [], []>} : vector<64x64xbf16>, vector<64x32xbf16>, vector<64x32xf32> -> vector<64x32xf32>
    %c0_138 = arith.constant 0 : index
    %c64_139 = arith.constant 64 : index
    %382 = vector.load %arg13[%c0_138, %c64_139] : memref<1x128xf32, #tpu.memory_space<vmem>>, vector<1x32xf32>
    %383 = vector.broadcast %382 : vector<1x32xf32> to vector<64x32xf32>
    %384 = arith.addf %381, %383 : vector<64x32xf32>
    %cst_140 = arith.constant 0.000000e+00 : f32
    %385 = vector.broadcast %cst_140 : f32 to vector<64x32xf32>
    %386 = arith.cmpf ogt, %384, %385 : vector<64x32xf32>
    %cst_141 = arith.constant 0.000000e+00 : f32
    %387 = vector.broadcast %cst_141 : f32 to vector<64x32xf32>
    %388 = arith.minimumf %384, %387 : vector<64x32xf32>
    %389 = math.exp %388 : vector<64x32xf32>
    %cst_142 = arith.constant 1.000000e+00 : f32
    %390 = vector.broadcast %cst_142 : f32 to vector<64x32xf32>
    %391 = arith.subf %389, %390 : vector<64x32xf32>
    %392 = arith.select %386, %384, %391 : vector<64x32xi1>, vector<64x32xf32>
    %393 = vector.extract_strided_slice %243 {offsets = [0, 96], sizes = [64, 32], strides = [1, 1]} : vector<64x128xf32> to vector<64x32xf32>
    %394 = vector.extract_strided_slice %248 {offsets = [0, 3], sizes = [64, 1], strides = [1, 1]} : vector<64x4xf32> to vector<64x1xf32>
    %395 = vector.extract_strided_slice %247 {offsets = [3, 0], sizes = [1, 64], strides = [1, 1]} : vector<128x64xf32> to vector<1x64xf32>
    %396 = vector.broadcast %394 : vector<64x1xf32> to vector<64x64xf32>
    %397 = vector.broadcast %395 : vector<1x64xf32> to vector<64x64xf32>
    %398 = arith.addf %396, %397 : vector<64x64xf32>
    %cst_143 = arith.constant 0.000000e+00 : f32
    %399 = vector.broadcast %cst_143 : f32 to vector<64x64xf32>
    %400 = arith.cmpf ogt, %398, %399 : vector<64x64xf32>
    %cst_144 = arith.constant 2.000000e-01 : f32
    %401 = vector.broadcast %cst_144 : f32 to vector<64x64xf32>
    %402 = arith.mulf %401, %398 : vector<64x64xf32>
    %403 = arith.select %400, %398, %402 : vector<64x64xi1>, vector<64x64xf32>
    %404 = arith.addf %403, %349 : vector<64x64xf32>
    %cst_145 = arith.constant dense<0xFF800000> : vector<64xf32>
    %405 = vector.multi_reduction <maximumf>, %404, %cst_145 [1] : vector<64x64xf32> to vector<64xf32>
    %406 = vector.shape_cast %405 : vector<64xf32> to vector<64x1xf32>
    %cst_146 = arith.constant -1.000000e+04 : f32
    %407 = vector.broadcast %cst_146 : f32 to vector<64x1xf32>
    %408 = arith.maximumf %406, %407 : vector<64x1xf32>
    %409 = vector.broadcast %408 : vector<64x1xf32> to vector<64x64xf32>
    %410 = arith.subf %404, %409 : vector<64x64xf32>
    %411 = math.exp %410 : vector<64x64xf32>
    %cst_147 = arith.constant dense<0.000000e+00> : vector<64xf32>
    %412 = vector.multi_reduction <add>, %411, %cst_147 [1] : vector<64x64xf32> to vector<64xf32>
    %413 = vector.shape_cast %412 : vector<64xf32> to vector<64x1xf32>
    %cst_148 = arith.constant 0.000000e+00 : f32
    %414 = vector.broadcast %cst_148 : f32 to vector<64x1xf32>
    %415 = arith.cmpf oeq, %413, %414 : vector<64x1xf32>
    %cst_149 = arith.constant 1.000000e+00 : f32
    %416 = vector.broadcast %cst_149 : f32 to vector<64x1xf32>
    %417 = arith.select %415, %416, %413 : vector<64x1xi1>, vector<64x1xf32>
    %cst_150 = arith.constant 1.000000e+00 : f32
    %418 = vector.broadcast %cst_150 : f32 to vector<64x1xf32>
    %419 = arith.divf %418, %417 : vector<64x1xf32>
    %420 = vector.broadcast %419 : vector<64x1xf32> to vector<64x64xf32>
    %421 = arith.mulf %411, %420 : vector<64x64xf32>
    %422 = arith.truncf %421 : vector<64x64xf32> to vector<64x64xbf16>
    %423 = arith.truncf %393 : vector<64x32xf32> to vector<64x32xbf16>
    %cst_151 = arith.constant dense<0.000000e+00> : vector<64x32xf32>
    %424 = tpu.matmul %422, %423, %cst_151 {dimension_numbers = #tpu.dot_dimension_numbers<[1], [0], [0], [1], [0, 0, 1, 1], [], []>} : vector<64x64xbf16>, vector<64x32xbf16>, vector<64x32xf32> -> vector<64x32xf32>
    %c0_152 = arith.constant 0 : index
    %c96_153 = arith.constant 96 : index
    %425 = vector.load %arg13[%c0_152, %c96_153] : memref<1x128xf32, #tpu.memory_space<vmem>>, vector<1x32xf32>
    %426 = vector.broadcast %425 : vector<1x32xf32> to vector<64x32xf32>
    %427 = arith.addf %424, %426 : vector<64x32xf32>
    %cst_154 = arith.constant 0.000000e+00 : f32
    %428 = vector.broadcast %cst_154 : f32 to vector<64x32xf32>
    %429 = arith.cmpf ogt, %427, %428 : vector<64x32xf32>
    %cst_155 = arith.constant 0.000000e+00 : f32
    %430 = vector.broadcast %cst_155 : f32 to vector<64x32xf32>
    %431 = arith.minimumf %427, %430 : vector<64x32xf32>
    %432 = math.exp %431 : vector<64x32xf32>
    %cst_156 = arith.constant 1.000000e+00 : f32
    %433 = vector.broadcast %cst_156 : f32 to vector<64x32xf32>
    %434 = arith.subf %432, %433 : vector<64x32xf32>
    %435 = arith.select %429, %427, %434 : vector<64x32xi1>, vector<64x32xf32>
    %436 = tpu.concatenate %392, %435 in 1 : vector<64x32xf32>, vector<64x32xf32> -> vector<64x64xf32>
    %437 = tpu.concatenate %342, %436 in 0 : vector<64x64xf32>, vector<64x64xf32> -> vector<128x64xf32>
    %438 = arith.truncf %437 : vector<128x64xf32> to vector<128x64xbf16>
    %c0_157 = arith.constant 0 : index
    %c0_158 = arith.constant 0 : index
    %439 = vector.load %arg14[%c0_157, %c0_158] : memref<64x128xbf16, #tpu.memory_space<vmem>>, vector<64x128xbf16>
    %cst_159 = arith.constant dense<0.000000e+00> : vector<128x128xf32>
    %440 = tpu.matmul %438, %439, %cst_159 {dimension_numbers = #tpu.dot_dimension_numbers<[1], [0], [0], [1], [0, 0, 1, 1], [], []>} : vector<128x64xbf16>, vector<64x128xbf16>, vector<128x128xf32> -> vector<128x128xf32>
    %c0_160 = arith.constant 0 : index
    %c0_161 = arith.constant 0 : index
    %441 = vector.load %arg15[%c0_160, %c0_161] : memref<1x128xf32, #tpu.memory_space<vmem>>, vector<1x128xf32>
    %442 = vector.broadcast %441 : vector<1x128xf32> to vector<128x128xf32>
    %443 = arith.addf %440, %442 : vector<128x128xf32>
    %444 = math.tanh %443 : vector<128x128xf32>
    %c0_162 = arith.constant 0 : index
    %c0_163 = arith.constant 0 : index
    %445 = vector.load %arg16[%c0_162, %c0_163] : memref<1x128xf32, #tpu.memory_space<vmem>>, vector<1x128xf32>
    %446 = vector.broadcast %445 : vector<1x128xf32> to vector<128x128xf32>
    %447 = arith.mulf %444, %446 : vector<128x128xf32>
    %cst_164 = arith.constant dense<0.000000e+00> : vector<128xf32>
    %448 = vector.multi_reduction <add>, %447, %cst_164 [1] : vector<128x128xf32> to vector<128xf32>
    %449 = vector.shape_cast %448 : vector<128xf32> to vector<128x1xf32>
    %450 = vector.extract_strided_slice %449 {offsets = [0, 0], sizes = [64, 1], strides = [1, 1]} : vector<128x1xf32> to vector<64x1xf32>
    %cst_165 = arith.constant dense<0.000000e+00> : vector<1xf32>
    %451 = vector.multi_reduction <add>, %450, %cst_165 [0] : vector<64x1xf32> to vector<1xf32>
    %452 = vector.shape_cast %451 : vector<1xf32> to vector<1x1xf32>
    %cst_166 = arith.constant 1.562500e-02 : f32
    %453 = vector.broadcast %cst_166 : f32 to vector<1x1xf32>
    %454 = arith.mulf %452, %453 : vector<1x1xf32>
    %455 = vector.extract_strided_slice %449 {offsets = [64, 0], sizes = [64, 1], strides = [1, 1]} : vector<128x1xf32> to vector<64x1xf32>
    %cst_167 = arith.constant dense<0.000000e+00> : vector<1xf32>
    %456 = vector.multi_reduction <add>, %455, %cst_167 [0] : vector<64x1xf32> to vector<1xf32>
    %457 = vector.shape_cast %456 : vector<1xf32> to vector<1x1xf32>
    %cst_168 = arith.constant 1.562500e-02 : f32
    %458 = vector.broadcast %cst_168 : f32 to vector<1x1xf32>
    %459 = arith.mulf %457, %458 : vector<1x1xf32>
    %460 = arith.maximumf %454, %459 : vector<1x1xf32>
    %461 = arith.subf %454, %460 : vector<1x1xf32>
    %462 = math.exp %461 : vector<1x1xf32>
    %463 = arith.subf %459, %460 : vector<1x1xf32>
    %464 = math.exp %463 : vector<1x1xf32>
    %465 = arith.addf %462, %464 : vector<1x1xf32>
    %cst_169 = arith.constant 1.000000e+00 : f32
    %466 = vector.broadcast %cst_169 : f32 to vector<1x1xf32>
    %467 = arith.divf %466, %465 : vector<1x1xf32>
    %468 = arith.mulf %462, %467 : vector<1x1xf32>
    %469 = vector.broadcast %468 : vector<1x1xf32> to vector<64x64xf32>
    %470 = arith.mulf %469, %342 : vector<64x64xf32>
    %471 = arith.mulf %464, %467 : vector<1x1xf32>
    %472 = vector.broadcast %471 : vector<1x1xf32> to vector<64x64xf32>
    %473 = arith.mulf %472, %436 : vector<64x64xf32>
    %474 = arith.addf %470, %473 : vector<64x64xf32>
    %c0_170 = arith.constant 0 : index
    %c0_171 = arith.constant 0 : index
    %475 = vector.load %arg17[%c0_170, %c0_171] : memref<64x4xf32, #tpu.memory_space<vmem>>, vector<64x4xf32>
    %cst_172 = arith.constant dense<0.000000e+00> : vector<64x4xf32>
    %476 = tpu.matmul %474, %475, %cst_172 {dimension_numbers = #tpu.dot_dimension_numbers<[1], [0], [0], [1], [0, 0, 1, 1], [], []>} : vector<64x64xf32>, vector<64x4xf32>, vector<64x4xf32> -> vector<64x4xf32>
    %c0_173 = arith.constant 0 : index
    %c0_174 = arith.constant 0 : index
    %477 = vector.load %arg18[%c0_173, %c0_174] : memref<1x4xf32, #tpu.memory_space<vmem>>, vector<1x4xf32>
    %478 = vector.broadcast %477 : vector<1x4xf32> to vector<64x4xf32>
    %479 = arith.addf %476, %478 : vector<64x4xf32>
    %c0_175 = arith.constant 0 : index
    %c0_176 = arith.constant 0 : index
    %480 = vector.load %arg19[%c0_175, %c0_176] : memref<64x4xf32, #tpu.memory_space<vmem>>, vector<64x4xf32>
    tpu.vector_store %arg19[%c0_175, %c0_176], %479 {strides = array<i32>} : memref<64x4xf32, #tpu.memory_space<vmem>>, vector<64x4xf32>,
    return
  }
  func.func @transform_0(%arg0: i32) -> (i32, i32) {
    %c0_i32 = arith.constant 0 : i32
    %c0_i32_0 = arith.constant 0 : i32
    %c0_i32_1 = arith.constant 0 : i32
    return %c0_i32, %c0_i32_0 : i32, i32
  }
  func.func @transform_1(%arg0: i32) -> (i32, i32, i32) {
    %c0_i32 = arith.constant 0 : i32
    %c0_i32_0 = arith.constant 0 : i32
    %c0_i32_1 = arith.constant 0 : i32
    %c0_i32_2 = arith.constant 0 : i32
    return %c0_i32, %c0_i32_0, %c0_i32_1 : i32, i32, i32
  }
  func.func @transform_2(%arg0: i32) -> (i32, i32) {
    %c0_i32 = arith.constant 0 : i32
    %c0_i32_0 = arith.constant 0 : i32
    %c0_i32_1 = arith.constant 0 : i32
    return %c0_i32, %c0_i32_0 : i32, i32
  }
  func.func @transform_3(%arg0: i32) -> (i32, i32) {
    %c0_i32 = arith.constant 0 : i32
    %c0_i32_0 = arith.constant 0 : i32
    %c0_i32_1 = arith.constant 0 : i32
    return %c0_i32, %c0_i32_0 : i32, i32
  }
  func.func @transform_4(%arg0: i32) -> (i32, i32) {
    %c0_i32 = arith.constant 0 : i32
    %c0_i32_0 = arith.constant 0 : i32
    %c0_i32_1 = arith.constant 0 : i32
    return %c0_i32, %c0_i32_0 : i32, i32
  }
  func.func @transform_5(%arg0: i32) -> (i32, i32) {
    %c0_i32 = arith.constant 0 : i32
    %c0_i32_0 = arith.constant 0 : i32
    %c0_i32_1 = arith.constant 0 : i32
    return %c0_i32, %c0_i32_0 : i32, i32
  }
  func.func @transform_6(%arg0: i32) -> (i32, i32) {
    %c0_i32 = arith.constant 0 : i32
    %c0_i32_0 = arith.constant 0 : i32
    %c0_i32_1 = arith.constant 0 : i32
    return %c0_i32, %c0_i32_0 : i32, i32
  }
  func.func @transform_7(%arg0: i32) -> (i32, i32) {
    %c0_i32 = arith.constant 0 : i32
    %c0_i32_0 = arith.constant 0 : i32
    %c0_i32_1 = arith.constant 0 : i32
    return %c0_i32, %c0_i32_0 : i32, i32
  }
  func.func @transform_8(%arg0: i32) -> (i32, i32) {
    %c0_i32 = arith.constant 0 : i32
    %c0_i32_0 = arith.constant 0 : i32
    %c0_i32_1 = arith.constant 0 : i32
    return %c0_i32, %c0_i32_0 : i32, i32
  }
  func.func @transform_9(%arg0: i32) -> (i32, i32) {
    %c0_i32 = arith.constant 0 : i32
    %c0_i32_0 = arith.constant 0 : i32
    %c0_i32_1 = arith.constant 0 : i32
    return %c0_i32, %c0_i32_0 : i32, i32
  }
  func.func @transform_10(%arg0: i32) -> (i32, i32) {
    %c0_i32 = arith.constant 0 : i32
    %c0_i32_0 = arith.constant 0 : i32
    %c0_i32_1 = arith.constant 0 : i32
    return %c0_i32, %c0_i32_0 : i32, i32
  }
  func.func @transform_11(%arg0: i32) -> (i32, i32) {
    %c0_i32 = arith.constant 0 : i32
    %c0_i32_0 = arith.constant 0 : i32
    %c0_i32_1 = arith.constant 0 : i32
    return %c0_i32, %c0_i32_0 : i32, i32
  }
  func.func @transform_12(%arg0: i32) -> (i32, i32) {
    %c0_i32 = arith.constant 0 : i32
    %c0_i32_0 = arith.constant 0 : i32
    %c0_i32_1 = arith.constant 0 : i32
    return %c0_i32, %c0_i32_0 : i32, i32
  }
  func.func @transform_13(%arg0: i32) -> (i32, i32) {
    %c0_i32 = arith.constant 0 : i32
    %c0_i32_0 = arith.constant 0 : i32
    %c0_i32_1 = arith.constant 0 : i32
    return %c0_i32, %c0_i32_0 : i32, i32
  }
  func.func @transform_14(%arg0: i32) -> (i32, i32) {
    %c0_i32 = arith.constant 0 : i32
    %c0_i32_0 = arith.constant 0 : i32
    %c0_i32_1 = arith.constant 0 : i32
    return %c0_i32, %c0_i32_0 : i32, i32
  }
  func.func @transform_15(%arg0: i32) -> (i32, i32) {
    %c0_i32 = arith.constant 0 : i32
    %c0_i32_0 = arith.constant 0 : i32
    %c0_i32_1 = arith.constant 0 : i32
    return %c0_i32, %c0_i32_0 : i32, i32
  }
  func.func @transform_16(%arg0: i32) -> (i32, i32) {
    %c0_i32 = arith.constant 0 : i32
    %c0_i32_0 = arith.constant 0 : i32
    %c0_i32_1 = arith.constant 0 : i32
    return %c0_i32, %c0_i32_0 : i32, i32
  }
  func.func @transform_17(%arg0: i32) -> (i32, i32) {
    %c0_i32 = arith.constant 0 : i32
    %c0_i32_0 = arith.constant 0 : i32
    %c0_i32_1 = arith.constant 0 : i32
    return %c0_i32, %c0_i32_0 : i32, i32
  }
  func.func @transform_18(%arg0: i32) -> (i32, i32) {
    %c0_i32 = arith.constant 0 : i32
    %c0_i32_0 = arith.constant 0 : i32
    %c0_i32_1 = arith.constant 0 : i32
    return %c0_i32, %c0_i32_0 : i32, i32
  }
}

</mosaic_0001>

<llo_original>
// kernel: tpu_custom_call.1
$region0: #{tpu_custom_call.1}
  #allocation0 [shape = 'u32[]', space=smem, size = 0x4, offset = 0x4, fixed_abs, tag = 'smem constant byte address 0x4 - core index']
  #allocation1 [shape = 'u32[144,128]{1,0:T(1,128)}', space=vmem, size = 0x12000, scoped, tag = 'internal scratch']
  %s0 = inlined_call_operand.vmem [shape: f32[64,64], index: 0, kind: input, shape index: {}]
  %s1 = inlined_call_operand.vmem [shape: s8[2,64,64], index: 1, kind: input, shape index: {}]
  %s2 = inlined_call_operand.vmem [shape: bf16[64,128], index: 2, kind: input, shape index: {}]
  %s3 = inlined_call_operand.vmem [shape: f32[1,128], index: 3, kind: input, shape index: {}]
  %s4 = inlined_call_operand.vmem [shape: f32[128,132], index: 4, kind: input, shape index: {}]
  %s5 = inlined_call_operand.vmem [shape: f32[1,128], index: 5, kind: input, shape index: {}]
  %s6 = inlined_call_operand.vmem [shape: bf16[64,128], index: 6, kind: input, shape index: {}]
  %s7 = inlined_call_operand.vmem [shape: f32[1,128], index: 7, kind: input, shape index: {}]
  %s8 = inlined_call_operand.vmem [shape: f32[1,128], index: 8, kind: input, shape index: {}]
  %s9 = inlined_call_operand.vmem [shape: bf16[64,128], index: 9, kind: input, shape index: {}]
  %s10 = inlined_call_operand.vmem [shape: f32[1,128], index: 10, kind: input, shape index: {}]
  %s11 = inlined_call_operand.vmem [shape: f32[128,132], index: 11, kind: input, shape index: {}]
  %s12 = inlined_call_operand.vmem [shape: f32[1,128], index: 12, kind: input, shape index: {}]
  %s13 = inlined_call_operand.vmem [shape: bf16[64,128], index: 13, kind: input, shape index: {}]
  %s14 = inlined_call_operand.vmem [shape: f32[1,128], index: 14, kind: input, shape index: {}]
  %s15 = inlined_call_operand.vmem [shape: f32[1,128], index: 15, kind: input, shape index: {}]
  %s16 = inlined_call_operand.vmem [shape: f32[64,4], index: 16, kind: input, shape index: {}]
  %s17 = inlined_call_operand.vmem [shape: f32[1,4], index: 17, kind: input, shape index: {}]
  %s18 = inlined_call_operand.vmem [shape: f32[64,4], index: 18, kind: output, shape index: {}]
  %s19 = sld [smem:[#allocation0]]
  $region82: #{tpu_custom_call.1} parent=0
    _
  %s21 = ssub.s32 1, %s19
  %s22 = scalar_select 0, %s21, %s19
  // Predicated region
  $region2: #{tpu_custom_call.1} parent=0 // pred_check
    _
  $region3: #{tpu_custom_call.1} parent=0 // pred_check_branch
    %24 = sbr.rel (0) target = $region5
  $region4: #{tpu_custom_call.1} parent=0 // pred_region
    _
  $region5: #{tpu_custom_call.1} parent=0 // pred_fallthru
    _
  // Predicated region
  $region6: #{tpu_custom_call.1} parent=0 // pred_check
    _
  $region7: #{tpu_custom_call.1} parent=0 // pred_check_branch
    %26 = sbr.rel (0) target = $region9
  $region8: #{tpu_custom_call.1} parent=0 // pred_region
    _
  $region9: #{tpu_custom_call.1} parent=0 // pred_fallthru
    _
  // Predicated region
  $region10: #{tpu_custom_call.1} parent=0 // pred_check
    _
  $region11: #{tpu_custom_call.1} parent=0 // pred_check_branch
    %28 = sbr.rel (0) target = $region13
  $region12: #{tpu_custom_call.1} parent=0 // pred_region
    _
  $region13: #{tpu_custom_call.1} parent=0 // pred_fallthru
    _
  // Predicated region
  $region14: #{tpu_custom_call.1} parent=0 // pred_check
    _
  $region15: #{tpu_custom_call.1} parent=0 // pred_check_branch
    %30 = sbr.rel (0) target = $region17
  $region16: #{tpu_custom_call.1} parent=0 // pred_region
    _
  $region17: #{tpu_custom_call.1} parent=0 // pred_fallthru
    _
  // Predicated region
  $region18: #{tpu_custom_call.1} parent=0 // pred_check
    _
  $region19: #{tpu_custom_call.1} parent=0 // pred_check_branch
    %32 = sbr.rel (0) target = $region21
  $region20: #{tpu_custom_call.1} parent=0 // pred_region
    _
  $region21: #{tpu_custom_call.1} parent=0 // pred_fallthru
    _
  // Predicated region
  $region22: #{tpu_custom_call.1} parent=0 // pred_check
    _
  $region23: #{tpu_custom_call.1} parent=0 // pred_check_branch
    %34 = sbr.rel (0) target = $region25
  $region24: #{tpu_custom_call.1} parent=0 // pred_region
    _
  $region25: #{tpu_custom_call.1} parent=0 // pred_fallthru
    _
  // Predicated region
  $region26: #{tpu_custom_call.1} parent=0 // pred_check
    _
  $region27: #{tpu_custom_call.1} parent=0 // pred_check_branch
    %36 = sbr.rel (0) target = $region29
  $region28: #{tpu_custom_call.1} parent=0 // pred_region
    _
  $region29: #{tpu_custom_call.1} parent=0 // pred_fallthru
    _
  // Predicated region
  $region30: #{tpu_custom_call.1} parent=0 // pred_check
    _
  $region31: #{tpu_custom_call.1} parent=0 // pred_check_branch
    %38 = sbr.rel (0) target = $region33
  $region32: #{tpu_custom_call.1} parent=0 // pred_region
    _
  $region33: #{tpu_custom_call.1} parent=0 // pred_fallthru
    _
  // Predicated region
  $region34: #{tpu_custom_call.1} parent=0 // pred_check
    _
  $region35: #{tpu_custom_call.1} parent=0 // pred_check_branch
    %40 = sbr.rel (0) target = $region37
  $region36: #{tpu_custom_call.1} parent=0 // pred_region
    _
  $region37: #{tpu_custom_call.1} parent=0 // pred_fallthru
    _
  // Predicated region
  $region38: #{tpu_custom_call.1} parent=0 // pred_check
    _
  $region39: #{tpu_custom_call.1} parent=0 // pred_check_branch
    %42 = sbr.rel (0) target = $region41
  $region40: #{tpu_custom_call.1} parent=0 // pred_region
    _
  $region41: #{tpu_custom_call.1} parent=0 // pred_fallthru
    _
  // Predicated region
  $region42: #{tpu_custom_call.1} parent=0 // pred_check
    _
  $region43: #{tpu_custom_call.1} parent=0 // pred_check_branch
    %44 = sbr.rel (0) target = $region45
  $region44: #{tpu_custom_call.1} parent=0 // pred_region
    _
  $region45: #{tpu_custom_call.1} parent=0 // pred_fallthru
    _
  // Predicated region
  $region46: #{tpu_custom_call.1} parent=0 // pred_check
    _
  $region47: #{tpu_custom_call.1} parent=0 // pred_check_branch
    %46 = sbr.rel (0) target = $region49
  $region48: #{tpu_custom_call.1} parent=0 // pred_region
    _
  $region49: #{tpu_custom_call.1} parent=0 // pred_fallthru
    _
  // Predicated region
  $region50: #{tpu_custom_call.1} parent=0 // pred_check
    _
  $region51: #{tpu_custom_call.1} parent=0 // pred_check_branch
    %48 = sbr.rel (0) target = $region53
  $region52: #{tpu_custom_call.1} parent=0 // pred_region
    _
  $region53: #{tpu_custom_call.1} parent=0 // pred_fallthru
    _
  // Predicated region
  $region54: #{tpu_custom_call.1} parent=0 // pred_check
    _
  $region55: #{tpu_custom_call.1} parent=0 // pred_check_branch
    %50 = sbr.rel (0) target = $region57
  $region56: #{tpu_custom_call.1} parent=0 // pred_region
    _
  $region57: #{tpu_custom_call.1} parent=0 // pred_fallthru
    _
  // Predicated region
  $region58: #{tpu_custom_call.1} parent=0 // pred_check
    _
  $region59: #{tpu_custom_call.1} parent=0 // pred_check_branch
    %52 = sbr.rel (0) target = $region61
  $region60: #{tpu_custom_call.1} parent=0 // pred_region
    _
  $region61: #{tpu_custom_call.1} parent=0 // pred_fallthru
    _
  // Predicated region
  $region62: #{tpu_custom_call.1} parent=0 // pred_check
    _
  $region63: #{tpu_custom_call.1} parent=0 // pred_check_branch
    %54 = sbr.rel (0) target = $region65
  $region64: #{tpu_custom_call.1} parent=0 // pred_region
    _
  $region65: #{tpu_custom_call.1} parent=0 // pred_fallthru
    _
  // Predicated region
  $region66: #{tpu_custom_call.1} parent=0 // pred_check
    _
  $region67: #{tpu_custom_call.1} parent=0 // pred_check_branch
    %56 = sbr.rel (0) target = $region69
  $region68: #{tpu_custom_call.1} parent=0 // pred_region
    _
  $region69: #{tpu_custom_call.1} parent=0 // pred_fallthru
    _
  // Predicated region
  $region70: #{tpu_custom_call.1} parent=0 // pred_check
    _
  $region71: #{tpu_custom_call.1} parent=0 // pred_check_branch
    %58 = sbr.rel (0) target = $region73
  $region72: #{tpu_custom_call.1} parent=0 // pred_region
    _
  $region73: #{tpu_custom_call.1} parent=0 // pred_fallthru
    _
  %v60 = vld [vmem:[%s0] sm:$0xff]
  %v61 = vld [vmem:[%s0 + $0x8] sm:$0xff]
  %v62 = vld [vmem:[%s0 + $0x10] sm:$0xff]
  %v63 = vld [vmem:[%s0 + $0x18] sm:$0xff]
  %v64 = vld [vmem:[%s0 + $0x20] sm:$0xff]
  %v65 = vld [vmem:[%s0 + $0x28] sm:$0xff]
  %v66 = vld [vmem:[%s0 + $0x30] sm:$0xff]
  %v67 = vld [vmem:[%s0 + $0x38] sm:$0xff]
  %v68 = vpack.c.bf16 %v61, %v60
  %v69 = vpack.c.bf16 %v63, %v62
  %v70 = vpack.c.bf16 %v65, %v64
  %v71 = vpack.c.bf16 %v67, %v66
  %v72 = vld [vmem:[%s2] sm:$0xf]
  %v73 = vld [vmem:[%s2 + $0x4] sm:$0xf]
  %v74 = vld [vmem:[%s2 + $0x8] sm:$0xf]
  %v75 = vld [vmem:[%s2 + $0xc] sm:$0xf]
  %v76 = vld [vmem:[%s2 + $0x10] sm:$0xf]
  %v77 = vld [vmem:[%s2 + $0x14] sm:$0xf]
  %v78 = vld [vmem:[%s2 + $0x18] sm:$0xf]
  %v79 = vld [vmem:[%s2 + $0x1c] sm:$0xf]
  %v80 = vld [vmem:[%s3] sm:$0x1]
  %v82 = vlaneseq
  %v83 = vshrl.u32 %v82, 7
  %v84 = vsub.s32 0, %v83
  %v85 = vrot.slane %v80, %v84
  %v95 = vunpack.c.l.b16 %v72
  %v96 = vunpack.c.l.b16 %v73
  %v97 = vunpack.c.l.b16 %v74
  %v98 = vunpack.c.l.b16 %v75
  %v99 = vunpack.c.l.b16 %v76
  %v100 = vunpack.c.l.b16 %v77
  %v101 = vunpack.c.l.b16 %v78
  %v102 = vunpack.c.l.b16 %v79
  %v103 = vpack.c.b16 %v96, %v95
  %v104 = vpack.c.b16 %v98, %v97
  %v105 = vpack.c.b16 %v100, %v99
  %v106 = vpack.c.b16 %v102, %v101
  %vm111 = vcmask 523264
  %v113 = vsel %vm111, %v68, 0
  %v116 = vsel %vm111, %v69, 0
  %v119 = vsel %vm111, %v70, 0
  %v122 = vsel %vm111, %v71, 0
  %124 = vmatprep.subr.bf16.mxu0 0
  %125 = vmatpush1.bf16.msra.mxu0 %v103
  %126 = vmatprep.subr.bf16.mxu0 0
  %127 = vmatpush1.bf16.msra.mxu0 %v104
  %128 = vmatprep.subr.bf16.mxu0 0
  %129 = vmatpush1.bf16.msra.mxu0 %v105
  %130 = vmatprep.subr.bf16.mxu0 0
  %131 = vmatpush1.bf16.msra.mxu0 %v106
  %132 = vmatprep.subr.bf16.mxu0 0
  %133 = vmatpush1.bf16.msra.mxu0 0
  %134 = vmatprep.subr.bf16.mxu0 0
  %135 = vmatpush1.bf16.msra.mxu0 0
  %136 = vmatprep.subr.bf16.mxu0 0
  %137 = vmatpush1.bf16.msra.mxu0 0
  %138 = vmatprep.subr.bf16.mxu0 0
  %139 = vmatpush1.bf16.msra.mxu0 0
  %140 = vmatprep.subr.bf16.mxu0 0
  %141 = vmatpush1.bf16.msra.mxu0 0
  %142 = vmatprep.subr.bf16.mxu0 0
  %143 = vmatpush1.bf16.msra.mxu0 0
  %144 = vmatprep.subr.bf16.mxu0 0
  %145 = vmatpush1.bf16.msra.mxu0 0
  %146 = vmatprep.subr.bf16.mxu0 0
  %147 = vmatpush1.bf16.msra.mxu0 0
  %148 = vmatprep.subr.bf16.mxu0 0
  %149 = vmatpush1.bf16.msra.mxu0 0
  %150 = vmatprep.subr.bf16.mxu0 0
  %151 = vmatpush1.bf16.msra.mxu0 0
  %152 = vmatprep.subr.bf16.mxu0 0
  %153 = vmatpush1.bf16.msra.mxu0 0
  %154 = vmatprep.subr.bf16.mxu0 0
  %155 = vmatpush1.bf16.msra.mxu0 0
  %156 = vmatprep.mubr.bf16.mxu0 0
  %157 = vmatmul.mubr.bf16.gmra.mrb[0].mxu0 %v113
  %v158 = vpop.f32.mrb[0].mxu0
  %v159 = vadd.f32 %v85, %v158
  %v160 = vpop.f32.mrb[0].mxu0
  %v161 = vpop.f32.mrb[0].mxu0
  %v162 = vadd.f32 %v85, %v161
  %v163 = vpop.f32.mrb[0].mxu0
  %164 = vmatprep.mubr.bf16.mxu0 0
  %165 = vmatmul.mubr.bf16.gmra.mrb[0].mxu0 %v116
  %v166 = vpop.f32.mrb[0].mxu0
  %v167 = vadd.f32 %v85, %v166
  %v168 = vpop.f32.mrb[0].mxu0
  %v169 = vpop.f32.mrb[0].mxu0
  %v170 = vadd.f32 %v85, %v169
  %v171 = vpop.f32.mrb[0].mxu0
  %172 = vmatprep.mubr.bf16.mxu0 0
  %173 = vmatmul.mubr.bf16.gmra.mrb[0].mxu0 %v119
  %v174 = vpop.f32.mrb[0].mxu0
  %v175 = vadd.f32 %v85, %v174
  %v176 = vpop.f32.mrb[0].mxu0
  %v177 = vpop.f32.mrb[0].mxu0
  %v178 = vadd.f32 %v85, %v177
  %v179 = vpop.f32.mrb[0].mxu0
  %180 = vmatprep.mubr.bf16.mxu0 0
  %181 = vmatmul.mubr.bf16.gmra.mrb[0].mxu0 %v122
  %v182 = vpop.f32.mrb[0].mxu0
  %v183 = vadd.f32 %v85, %v182
  %v184 = vpop.f32.mrb[0].mxu0
  %v185 = vpop.f32.mrb[0].mxu0
  %v186 = vadd.f32 %v85, %v185
  %v187 = vpop.f32.mrb[0].mxu0
  %188 = vdwg.mxu0
  %v189 = vld [vmem:[%s4] sm:$0xff]
  %v190 = vld [vmem:[%s4 + $0x8] sm:$0xff]
  %v191 = vld [vmem:[%s4 + $0x10] sm:$0xff]
  %v192 = vld [vmem:[%s4 + $0x18] sm:$0xff]
  %v193 = vld [vmem:[%s4 + $0x20] sm:$0xff]
  %v194 = vld [vmem:[%s4 + $0x28] sm:$0xff]
  %v195 = vld [vmem:[%s4 + $0x30] sm:$0xff]
  %v196 = vld [vmem:[%s4 + $0x38] sm:$0xff]
  %v197 = vld [vmem:[%s4 + $0x40] sm:$0xff]
  %v198 = vld [vmem:[%s4 + $0x48] sm:$0xff]
  %v199 = vld [vmem:[%s4 + $0x50] sm:$0xff]
  %v200 = vld [vmem:[%s4 + $0x58] sm:$0xff]
  %v201 = vld [vmem:[%s4 + $0x60] sm:$0xff]
  %v202 = vld [vmem:[%s4 + $0x68] sm:$0xff]
  %v203 = vld [vmem:[%s4 + $0x70] sm:$0xff]
  %v204 = vld [vmem:[%s4 + $0x78] sm:$0xff]
  %v205 = vld [vmem:[%s4 + $0x80] sm:$0xff]
  %v206 = vld [vmem:[%s4 + $0x88] sm:$0xff]
  %v207 = vld [vmem:[%s4 + $0x90] sm:$0xff]
  %v208 = vld [vmem:[%s4 + $0x98] sm:$0xff]
  %v209 = vld [vmem:[%s4 + $0xa0] sm:$0xff]
  %v210 = vld [vmem:[%s4 + $0xa8] sm:$0xff]
  %v211 = vld [vmem:[%s4 + $0xb0] sm:$0xff]
  %v212 = vld [vmem:[%s4 + $0xb8] sm:$0xff]
  %v213 = vld [vmem:[%s4 + $0xc0] sm:$0xff]
  %v214 = vld [vmem:[%s4 + $0xc8] sm:$0xff]
  %v215 = vld [vmem:[%s4 + $0xd0] sm:$0xff]
  %v216 = vld [vmem:[%s4 + $0xd8] sm:$0xff]
  %v217 = vld [vmem:[%s4 + $0xe0] sm:$0xff]
  %v218 = vld [vmem:[%s4 + $0xe8] sm:$0xff]
  %v219 = vld [vmem:[%s4 + $0xf0] sm:$0xff]
  %v220 = vld [vmem:[%s4 + $0xf8] sm:$0xff]
  %221 = vmatprep.subr.mxu0 %v190
  %222 = vmatpush1.msra.mxu0 %v189
  %223 = vmatprep.subr.mxu0 %v192
  %224 = vmatpush1.msra.mxu0 %v191
  %225 = vmatprep.subr.mxu0 %v194
  %226 = vmatpush1.msra.mxu0 %v193
  %227 = vmatprep.subr.mxu0 %v196
  %228 = vmatpush1.msra.mxu0 %v195
  %229 = vmatprep.subr.mxu0 %v198
  %230 = vmatpush1.msra.mxu0 %v197
  %231 = vmatprep.subr.mxu0 %v200
  %232 = vmatpush1.msra.mxu0 %v199
  %233 = vmatprep.subr.mxu0 %v202
  %234 = vmatpush1.msra.mxu0 %v201
  %235 = vmatprep.subr.mxu0 %v204
  %236 = vmatpush1.msra.mxu0 %v203
  %237 = vmatprep.subr.mxu0 %v206
  %238 = vmatpush1.msra.mxu0 %v205
  %239 = vmatprep.subr.mxu0 %v208
  %240 = vmatpush1.msra.mxu0 %v207
  %241 = vmatprep.subr.mxu0 %v210
  %242 = vmatpush1.msra.mxu0 %v209
  %243 = vmatprep.subr.mxu0 %v212
  %244 = vmatpush1.msra.mxu0 %v211
  %245 = vmatprep.subr.mxu0 %v214
  %246 = vmatpush1.msra.mxu0 %v213
  %247 = vmatprep.subr.mxu0 %v216
  %248 = vmatpush1.msra.mxu0 %v215
  %249 = vmatprep.subr.mxu0 %v218
  %250 = vmatpush1.msra.mxu0 %v217
  %251 = vmatprep.subr.mxu0 %v220
  %252 = vmatpush1.msra.mxu0 %v219
  %253 = vmatprep.subr.mxu0 0.0
  %254 = vmatpush1.msra.mxu0 0.0
  %255 = vmatprep.subr.mxu0 0.0
  %256 = vmatpush1.msra.mxu0 0.0
  %257 = vmatprep.subr.mxu0 0.0
  %258 = vmatpush1.msra.mxu0 0.0
  %259 = vmatprep.subr.mxu0 0.0
  %260 = vmatpush1.msra.mxu0 0.0
  %261 = vmatprep.subr.mxu0 0.0
  %262 = vmatpush1.msra.mxu0 0.0
  %263 = vmatprep.subr.mxu0 0.0
  %264 = vmatpush1.msra.mxu0 0.0
  %265 = vmatprep.subr.mxu0 0.0
  %266 = vmatpush1.msra.mxu0 0.0
  %267 = vmatprep.subr.mxu0 0.0
  %268 = vmatpush1.msra.mxu0 0.0
  %269 = vmatprep.subr.mxu0 0.0
  %270 = vmatpush1.msra.mxu0 0.0
  %271 = vmatprep.subr.mxu0 0.0
  %272 = vmatpush1.msra.mxu0 0.0
  %273 = vmatprep.subr.mxu0 0.0
  %274 = vmatpush1.msra.mxu0 0.0
  %275 = vmatprep.subr.mxu0 0.0
  %276 = vmatpush1.msra.mxu0 0.0
  %277 = vmatprep.subr.mxu0 0.0
  %278 = vmatpush1.msra.mxu0 0.0
  %279 = vmatprep.subr.mxu0 0.0
  %280 = vmatpush1.msra.mxu0 0.0
  %281 = vmatprep.subr.mxu0 0.0
  %282 = vmatpush1.msra.mxu0 0.0
  %283 = vmatprep.subr.mxu0 0.0
  %284 = vmatpush1.msra.mxu0 0.0
  %285 = vmatprep.mubr.f32.mxu0 0.0
  %286 = vmatmul.mubr.f32.gmra.mrb[0].mxu0 %v159
  %v287 = vpop.f32.mrb[0].mxu0
  %v288 = vadd.f32 0.0, %v287
  %v289 = vpop.f32.mrb[0].mxu0
  %v290 = vadd.f32 0.0, %v289
  %291 = vmatprep.mubr.f32.mxu0 0.0
  %292 = vmatmul.mubr.f32.gmra.mrb[0].mxu0 %v162
  %v293 = vpop.f32.mrb[0].mxu0
  %v294 = vadd.f32 0.0, %v293
  %v295 = vpop.f32.mrb[0].mxu0
  %v296 = vadd.f32 0.0, %v295
  %297 = vmatprep.mubr.f32.mxu0 0.0
  %298 = vmatmul.mubr.f32.gmra.mrb[0].mxu0 %v167
  %v299 = vpop.f32.mrb[0].mxu0
  %v300 = vadd.f32 0.0, %v299
  %v301 = vpop.f32.mrb[0].mxu0
  %v302 = vadd.f32 0.0, %v301
  %303 = vmatprep.mubr.f32.mxu0 0.0
  %304 = vmatmul.mubr.f32.gmra.mrb[0].mxu0 %v170
  %v305 = vpop.f32.mrb[0].mxu0
  %v306 = vadd.f32 0.0, %v305
  %v307 = vpop.f32.mrb[0].mxu0
  %v308 = vadd.f32 0.0, %v307
  %309 = vmatprep.mubr.f32.mxu0 0.0
  %310 = vmatmul.mubr.f32.gmra.mrb[0].mxu0 %v175
  %v311 = vpop.f32.mrb[0].mxu0
  %v312 = vadd.f32 0.0, %v311
  %v313 = vpop.f32.mrb[0].mxu0
  %v314 = vadd.f32 0.0, %v313
  %315 = vmatprep.mubr.f32.mxu0 0.0
  %316 = vmatmul.mubr.f32.gmra.mrb[0].mxu0 %v178
  %v317 = vpop.f32.mrb[0].mxu0
  %v318 = vadd.f32 0.0, %v317
  %v319 = vpop.f32.mrb[0].mxu0
  %v320 = vadd.f32 0.0, %v319
  %321 = vmatprep.mubr.f32.mxu0 0.0
  %322 = vmatmul.mubr.f32.gmra.mrb[0].mxu0 %v183
  %v323 = vpop.f32.mrb[0].mxu0
  %v324 = vadd.f32 0.0, %v323
  %v325 = vpop.f32.mrb[0].mxu0
  %v326 = vadd.f32 0.0, %v325
  %327 = vmatprep.mubr.f32.mxu0 0.0
  %328 = vmatmul.mubr.f32.gmra.mrb[0].mxu0 %v186
  %v329 = vpop.f32.mrb[0].mxu0
  %v330 = vadd.f32 0.0, %v329
  %v331 = vpop.f32.mrb[0].mxu0
  %v332 = vadd.f32 0.0, %v331
  %333 = vdwg.mxu0
  %334 = vxpose.xlu0.b32.start [1/16] %v288, 128
  %335 = vxpose.xlu0.b32.cont [2/16] %v294, 128
  %336 = vxpose.xlu0.b32.cont [3/16] %v300, 128
  %337 = vxpose.xlu0.b32.cont [4/16] %v306, 128
  %338 = vxpose.xlu0.b32.cont [5/16] %v312, 128
  %339 = vxpose.xlu0.b32.cont [6/16] %v318, 128
  %340 = vxpose.xlu0.b32.cont [7/16] %v324, 128
  %341 = vxpose.xlu0.b32.cont [8/16] %v330, 128
  %342 = vxpose.xlu0.b32.cont [9/16] 0.0, 128
  %343 = vxpose.xlu0.b32.cont [10/16] 0.0, 128
  %344 = vxpose.xlu0.b32.cont [11/16] 0.0, 128
  %345 = vxpose.xlu0.b32.cont [12/16] 0.0, 128
  %346 = vxpose.xlu0.b32.cont [13/16] 0.0, 128
  %347 = vxpose.xlu0.b32.cont [14/16] 0.0, 128
  %348 = vxpose.xlu0.b32.cont [15/16] 0.0, 128
  %349 = vxpose.xlu0.b32.end [16/16] 0.0, 128
  %v350 = vpop.trf.xlu0
  %v351 = vpop.trf.xlu0
  %v352 = vpop.trf.xlu0
  %v353 = vpop.trf.xlu0
  %v354 = vpop.trf.xlu0
  %v355 = vpop.trf.xlu0
  %v356 = vpop.trf.xlu0
  %v357 = vpop.trf.xlu0
  %v358 = vpop.trf.xlu0
  %v359 = vpop.trf.xlu0
  %v360 = vpop.trf.xlu0
  %v361 = vpop.trf.xlu0
  %v362 = vpop.trf.xlu0
  %v363 = vpop.trf.xlu0
  %v364 = vpop.trf.xlu0
  %v365 = vpop.trf.xlu0
  %v366 = vld [vmem:[%s1] sm:$0xff]
  %v367 = vld [vmem:[%s1 + $0x8] sm:$0xff]
  %v368 = vunpack.c.0.s8 %v366
  %v369 = vunpack.c.1.s8 %v366
  %v370 = vunpack.c.2.s8 %v366
  %v371 = vunpack.c.3.s8 %v366
  %v372 = vunpack.c.0.s8 %v367
  %v373 = vunpack.c.1.s8 %v367
  %v374 = vunpack.c.2.s8 %v367
  %v375 = vunpack.c.3.s8 %v367
  %v376 = vcvt.s32.f32 %v368
  %v377 = vcvt.s32.f32 %v369
  %v378 = vcvt.s32.f32 %v370
  %v379 = vcvt.s32.f32 %v371
  %v380 = vcvt.s32.f32 %v372
  %v381 = vcvt.s32.f32 %v373
  %v382 = vcvt.s32.f32 %v374
  %v383 = vcvt.s32.f32 %v375
  %v384 = vsub.f32 %v376, 1.0
  %v385 = vsub.f32 %v377, 1.0
  %v386 = vsub.f32 %v378, 1.0
  %v387 = vsub.f32 %v379, 1.0
  %v388 = vsub.f32 %v380, 1.0
  %v389 = vsub.f32 %v381, 1.0
  %v390 = vsub.f32 %v382, 1.0
  %v391 = vsub.f32 %v383, 1.0
  %v392 = vmul.f32 %v384, 1e+09
  %v393 = vmul.f32 %v385, 1e+09
  %v394 = vmul.f32 %v386, 1e+09
  %v395 = vmul.f32 %v387, 1e+09
  %v396 = vmul.f32 %v388, 1e+09
  %v397 = vmul.f32 %v389, 1e+09
  %v398 = vmul.f32 %v390, 1e+09
  %v399 = vmul.f32 %v391, 1e+09
  %401 = vset.pattern.permute.xlu0 0
  %402 = vperm.xlu0 %401, %v290
  %v403 = vpop.permute.xlu0 %402
  %406 = vset.pattern.permute.xlu0 0
  %407 = vperm.xlu0 %406, %v296
  %v408 = vpop.permute.xlu0 %407
  %411 = vset.pattern.permute.xlu0 0
  %412 = vperm.xlu0 %411, %v302
  %v413 = vpop.permute.xlu0 %412
  %416 = vset.pattern.permute.xlu0 0
  %417 = vperm.xlu0 %416, %v308
  %v418 = vpop.permute.xlu0 %417
  %421 = vset.pattern.permute.xlu0 0
  %422 = vperm.xlu0 %421, %v314
  %v423 = vpop.permute.xlu0 %422
  %426 = vset.pattern.permute.xlu0 0
  %427 = vperm.xlu0 %426, %v320
  %v428 = vpop.permute.xlu0 %427
  %431 = vset.pattern.permute.xlu0 0
  %432 = vperm.xlu0 %431, %v326
  %v433 = vpop.permute.xlu0 %432
  %436 = vset.pattern.permute.xlu0 0
  %437 = vperm.xlu0 %436, %v332
  %v438 = vpop.permute.xlu0 %437
  %v440 = vlaneseq
  %v441 = vshrl.u32 %v440, 7
  %v442 = vsub.s32 0, %v441
  %v443 = vrot.slane %v350, %v442
  %v444 = vadd.f32 %v403, %v443
  %v445 = vadd.f32 %v408, %v443
  %v446 = vadd.f32 %v413, %v443
  %v447 = vadd.f32 %v418, %v443
  %v448 = vadd.f32 %v423, %v443
  %v449 = vadd.f32 %v428, %v443
  %v450 = vadd.f32 %v433, %v443
  %v451 = vadd.f32 %v438, %v443
  %vm452 = vcmp.gt.f32.partialorder %v444, 0.0
  %vm453 = vcmp.gt.f32.partialorder %v445, 0.0
  %vm454 = vcmp.gt.f32.partialorder %v446, 0.0
  %vm455 = vcmp.gt.f32.partialorder %v447, 0.0
  %vm456 = vcmp.gt.f32.partialorder %v448, 0.0
  %vm457 = vcmp.gt.f32.partialorder %v449, 0.0
  %vm458 = vcmp.gt.f32.partialorder %v450, 0.0
  %vm459 = vcmp.gt.f32.partialorder %v451, 0.0
  %v460 = vmul.f32 %v444, 0.2
  %v461 = vmul.f32 %v445, 0.2
  %v462 = vmul.f32 %v446, 0.2
  %v463 = vmul.f32 %v447, 0.2
  %v464 = vmul.f32 %v448, 0.2
  %v465 = vmul.f32 %v449, 0.2
  %v466 = vmul.f32 %v450, 0.2
  %v467 = vmul.f32 %v451, 0.2
  %v468 = vsel %vm452, %v444, %v460
  %v469 = vsel %vm453, %v445, %v461
  %v470 = vsel %vm454, %v446, %v462
  %v471 = vsel %vm455, %v447, %v463
  %v472 = vsel %vm456, %v448, %v464
  %v473 = vsel %vm457, %v449, %v465
  %v474 = vsel %vm458, %v450, %v466
  %v475 = vsel %vm459, %v451, %v467
  %v476 = vadd.f32 %v468, %v392
  %v477 = vadd.f32 %v469, %v393
  %v478 = vadd.f32 %v470, %v394
  %v479 = vadd.f32 %v471, %v395
  %v480 = vadd.f32 %v472, %v396
  %v481 = vadd.f32 %v473, %v397
  %v482 = vadd.f32 %v474, %v398
  %v483 = vadd.f32 %v475, %v399
  %v484 = vsel %vm111, %v476, -inf
  %485 = vmax.xlane.f32.xlu0 %v484
  %v486 = vpop.xlane.xlu0 %485
  %v487 = vsel %vm111, %v477, -inf
  %488 = vmax.xlane.f32.xlu0 %v487
  %v489 = vpop.xlane.xlu0 %488
  %v490 = vsel %vm111, %v478, -inf
  %491 = vmax.xlane.f32.xlu0 %v490
  %v492 = vpop.xlane.xlu0 %491
  %v493 = vsel %vm111, %v479, -inf
  %494 = vmax.xlane.f32.xlu0 %v493
  %v495 = vpop.xlane.xlu0 %494
  %v496 = vsel %vm111, %v480, -inf
  %497 = vmax.xlane.f32.xlu0 %v496
  %v498 = vpop.xlane.xlu0 %497
  %v499 = vsel %vm111, %v481, -inf
  %500 = vmax.xlane.f32.xlu0 %v499
  %v501 = vpop.xlane.xlu0 %500
  %v502 = vsel %vm111, %v482, -inf
  %503 = vmax.xlane.f32.xlu0 %v502
  %v504 = vpop.xlane.xlu0 %503
  %v505 = vsel %vm111, %v483, -inf
  %506 = vmax.xlane.f32.xlu0 %v505
  %v507 = vpop.xlane.xlu0 %506
  %v508 = vmax.f32 %v486, -10000.0
  %v509 = vmax.f32 %v489, -10000.0
  %v510 = vmax.f32 %v492, -10000.0
  %v511 = vmax.f32 %v495, -10000.0
  %v512 = vmax.f32 %v498, -10000.0
  %v513 = vmax.f32 %v501, -10000.0
  %v514 = vmax.f32 %v504, -10000.0
  %v515 = vmax.f32 %v507, -10000.0
  %v516 = vsub.f32 %v476, %v508
  %v517 = vsub.f32 %v477, %v509
  %v518 = vsub.f32 %v478, %v510
  %v519 = vsub.f32 %v479, %v511
  %v520 = vsub.f32 %v480, %v512
  %v521 = vsub.f32 %v481, %v513
  %v522 = vsub.f32 %v482, %v514
  %v523 = vsub.f32 %v483, %v515
  %v524 = vmul.f32 %v516, 1.442695
  %v525 = vpow.pop %v524
  %v526 = vmul.f32 %v517, 1.442695
  %v527 = vpow.pop %v526
  %v528 = vmul.f32 %v518, 1.442695
  %v529 = vpow.pop %v528
  %v530 = vmul.f32 %v519, 1.442695
  %v531 = vpow.pop %v530
  %v532 = vmul.f32 %v520, 1.442695
  %v533 = vpow.pop %v532
  %v534 = vmul.f32 %v521, 1.442695
  %v535 = vpow.pop %v534
  %v536 = vmul.f32 %v522, 1.442695
  %v537 = vpow.pop %v536
  %v538 = vmul.f32 %v523, 1.442695
  %v539 = vpow.pop %v538
  %v540 = vsel %vm111, %v525, 0.0
  %541 = vadd.xlane.f32.xlu0 %v540
  %v542 = vpop.xlane.xlu0 %541
  %v543 = vsel %vm111, %v527, 0.0
  %544 = vadd.xlane.f32.xlu0 %v543
  %v545 = vpop.xlane.xlu0 %544
  %v546 = vsel %vm111, %v529, 0.0
  %547 = vadd.xlane.f32.xlu0 %v546
  %v548 = vpop.xlane.xlu0 %547
  %v549 = vsel %vm111, %v531, 0.0
  %550 = vadd.xlane.f32.xlu0 %v549
  %v551 = vpop.xlane.xlu0 %550
  %v552 = vsel %vm111, %v533, 0.0
  %553 = vadd.xlane.f32.xlu0 %v552
  %v554 = vpop.xlane.xlu0 %553
  %v555 = vsel %vm111, %v535, 0.0
  %556 = vadd.xlane.f32.xlu0 %v555
  %v557 = vpop.xlane.xlu0 %556
  %v558 = vsel %vm111, %v537, 0.0
  %559 = vadd.xlane.f32.xlu0 %v558
  %v560 = vpop.xlane.xlu0 %559
  %v561 = vsel %vm111, %v539, 0.0
  %562 = vadd.xlane.f32.xlu0 %v561
  %v563 = vpop.xlane.xlu0 %562
  %vm564 = vcmp.eq.f32.partialorder %v542, 0.0
  %vm565 = vcmp.eq.f32.partialorder %v545, 0.0
  %vm566 = vcmp.eq.f32.partialorder %v548, 0.0
  %vm567 = vcmp.eq.f32.partialorder %v551, 0.0
  %vm568 = vcmp.eq.f32.partialorder %v554, 0.0
  %vm569 = vcmp.eq.f32.partialorder %v557, 0.0
  %vm570 = vcmp.eq.f32.partialorder %v560, 0.0
  %vm571 = vcmp.eq.f32.partialorder %v563, 0.0
  %v572 = vsel %vm564, 1.0, %v542
  %v573 = vsel %vm565, 1.0, %v545
  %v574 = vsel %vm566, 1.0, %v548
  %v575 = vsel %vm567, 1.0, %v551
  %v576 = vsel %vm568, 1.0, %v554
  %v577 = vsel %vm569, 1.0, %v557
  %v578 = vsel %vm570, 1.0, %v560
  %v579 = vsel %vm571, 1.0, %v563
  %v580 = vrcp.pop %v572
  %v581 = vmul.f32 1.0, %v580
  %v582 = vrcp.pop %v573
  %v583 = vmul.f32 1.0, %v582
  %v584 = vrcp.pop %v574
  %v585 = vmul.f32 1.0, %v584
  %v586 = vrcp.pop %v575
  %v587 = vmul.f32 1.0, %v586
  %v588 = vrcp.pop %v576
  %v589 = vmul.f32 1.0, %v588
  %v590 = vrcp.pop %v577
  %v591 = vmul.f32 1.0, %v590
  %v592 = vrcp.pop %v578
  %v593 = vmul.f32 1.0, %v592
  %v594 = vrcp.pop %v579
  %v595 = vmul.f32 1.0, %v594
  %v596 = vmul.f32 %v525, %v581
  %v597 = vmul.f32 %v527, %v583
  %v598 = vmul.f32 %v529, %v585
  %v599 = vmul.f32 %v531, %v587
  %v600 = vmul.f32 %v533, %v589
  %v601 = vmul.f32 %v535, %v591
  %v602 = vmul.f32 %v537, %v593
  %v603 = vmul.f32 %v539, %v595
  %v604 = vpack.c.bf16 %v597, %v596
  %v605 = vpack.c.bf16 %v599, %v598
  %v606 = vpack.c.bf16 %v601, %v600
  %v607 = vpack.c.bf16 %v603, %v602
  %v608 = vpack.c.bf16 %v162, %v159
  %v609 = vpack.c.bf16 %v170, %v167
  %v610 = vpack.c.bf16 %v178, %v175
  %v611 = vpack.c.bf16 %v186, %v183
  %v612 = vld [vmem:[%s5] sm:$0x1]
  %v614 = vlaneseq
  %v615 = vshrl.u32 %v614, 7
  %v616 = vsub.s32 0, %v615
  %v617 = vrot.slane %v612, %v616
  %v620 = vsel %vm111, %v604, 0
  %v623 = vsel %vm111, %v605, 0
  %v626 = vsel %vm111, %v606, 0
  %v629 = vsel %vm111, %v607, 0
  %631 = vmatprep.subr.bf16.mxu0 0
  %632 = vmatpush1.bf16.msra.mxu0 %v608
  %633 = vmatprep.subr.bf16.mxu0 0
  %634 = vmatpush1.bf16.msra.mxu0 %v609
  %635 = vmatprep.subr.bf16.mxu0 0
  %636 = vmatpush1.bf16.msra.mxu0 %v610
  %637 = vmatprep.subr.bf16.mxu0 0
  %638 = vmatpush1.bf16.msra.mxu0 %v611
  %639 = vmatprep.subr.bf16.mxu0 0
  %640 = vmatpush1.bf16.msra.mxu0 0
  %641 = vmatprep.subr.bf16.mxu0 0
  %642 = vmatpush1.bf16.msra.mxu0 0
  %643 = vmatprep.subr.bf16.mxu0 0
  %644 = vmatpush1.bf16.msra.mxu0 0
  %645 = vmatprep.subr.bf16.mxu0 0
  %646 = vmatpush1.bf16.msra.mxu0 0
  %647 = vmatprep.subr.bf16.mxu0 0
  %648 = vmatpush1.bf16.msra.mxu0 0
  %649 = vmatprep.subr.bf16.mxu0 0
  %650 = vmatpush1.bf16.msra.mxu0 0
  %651 = vmatprep.subr.bf16.mxu0 0
  %652 = vmatpush1.bf16.msra.mxu0 0
  %653 = vmatprep.subr.bf16.mxu0 0
  %654 = vmatpush1.bf16.msra.mxu0 0
  %655 = vmatprep.subr.bf16.mxu0 0
  %656 = vmatpush1.bf16.msra.mxu0 0
  %657 = vmatprep.subr.bf16.mxu0 0
  %658 = vmatpush1.bf16.msra.mxu0 0
  %659 = vmatprep.subr.bf16.mxu0 0
  %660 = vmatpush1.bf16.msra.mxu0 0
  %661 = vmatprep.subr.bf16.mxu0 0
  %662 = vmatpush1.bf16.msra.mxu0 0
  %663 = vmatprep.mubr.bf16.mxu0 0
  %664 = vmatmul.mubr.bf16.gmra.mrb[0].mxu0 %v620
  %v665 = vpop.f32.mrb[0].mxu0
  %v666 = vadd.f32 %v617, %v665
  %v667 = vpop.f32.mrb[0].mxu0
  %v668 = vpop.f32.mrb[0].mxu0
  %v669 = vadd.f32 %v617, %v668
  %v670 = vpop.f32.mrb[0].mxu0
  %671 = vmatprep.mubr.bf16.mxu0 0
  %672 = vmatmul.mubr.bf16.gmra.mrb[0].mxu0 %v623
  %v673 = vpop.f32.mrb[0].mxu0
  %v674 = vadd.f32 %v617, %v673
  %v675 = vpop.f32.mrb[0].mxu0
  %v676 = vpop.f32.mrb[0].mxu0
  %v677 = vadd.f32 %v617, %v676
  %v678 = vpop.f32.mrb[0].mxu0
  %679 = vmatprep.mubr.bf16.mxu0 0
  %680 = vmatmul.mubr.bf16.gmra.mrb[0].mxu0 %v626
  %v681 = vpop.f32.mrb[0].mxu0
  %v682 = vadd.f32 %v617, %v681
  %v683 = vpop.f32.mrb[0].mxu0
  %v684 = vpop.f32.mrb[0].mxu0
  %v685 = vadd.f32 %v617, %v684
  %v686 = vpop.f32.mrb[0].mxu0
  %687 = vmatprep.mubr.bf16.mxu0 0
  %688 = vmatmul.mubr.bf16.gmra.mrb[0].mxu0 %v629
  %v689 = vpop.f32.mrb[0].mxu0
  %v690 = vadd.f32 %v617, %v689
  %v691 = vpop.f32.mrb[0].mxu0
  %v692 = vpop.f32.mrb[0].mxu0
  %v693 = vadd.f32 %v617, %v692
  %v694 = vpop.f32.mrb[0].mxu0
  %695 = vdwg.mxu0
  %vm696 = vcmp.gt.f32.partialorder %v666, 0.0
  %vm697 = vcmp.gt.f32.partialorder %v669, 0.0
  %vm698 = vcmp.gt.f32.partialorder %v674, 0.0
  %vm699 = vcmp.gt.f32.partialorder %v677, 0.0
  %vm700 = vcmp.gt.f32.partialorder %v682, 0.0
  %vm701 = vcmp.gt.f32.partialorder %v685, 0.0
  %vm702 = vcmp.gt.f32.partialorder %v690, 0.0
  %vm703 = vcmp.gt.f32.partialorder %v693, 0.0
  %v704 = vmin.f32 %v666, 0.0
  %v705 = vmin.f32 %v669, 0.0
  %v706 = vmin.f32 %v674, 0.0
  %v707 = vmin.f32 %v677, 0.0
  %v708 = vmin.f32 %v682, 0.0
  %v709 = vmin.f32 %v685, 0.0
  %v710 = vmin.f32 %v690, 0.0
  %v711 = vmin.f32 %v693, 0.0
  %v712 = vmul.f32 %v704, 1.442695
  %v713 = vpow.pop %v712
  %v714 = vmul.f32 %v705, 1.442695
  %v715 = vpow.pop %v714
  %v716 = vmul.f32 %v706, 1.442695
  %v717 = vpow.pop %v716
  %v718 = vmul.f32 %v707, 1.442695
  %v719 = vpow.pop %v718
  %v720 = vmul.f32 %v708, 1.442695
  %v721 = vpow.pop %v720
  %v722 = vmul.f32 %v709, 1.442695
  %v723 = vpow.pop %v722
  %v724 = vmul.f32 %v710, 1.442695
  %v725 = vpow.pop %v724
  %v726 = vmul.f32 %v711, 1.442695
  %v727 = vpow.pop %v726
  %v728 = vsub.f32 %v713, 1.0
  %v729 = vsub.f32 %v715, 1.0
  %v730 = vsub.f32 %v717, 1.0
  %v731 = vsub.f32 %v719, 1.0
  %v732 = vsub.f32 %v721, 1.0
  %v733 = vsub.f32 %v723, 1.0
  %v734 = vsub.f32 %v725, 1.0
  %v735 = vsub.f32 %v727, 1.0
  %v736 = vsel %vm696, %v666, %v728
  %v737 = vsel %vm697, %v669, %v729
  %v738 = vsel %vm698, %v674, %v730
  %v739 = vsel %vm699, %v677, %v731
  %v740 = vsel %vm700, %v682, %v732
  %v741 = vsel %vm701, %v685, %v733
  %v742 = vsel %vm702, %v690, %v734
  %v743 = vsel %vm703, %v693, %v735
  %744 = vset.pattern.permute.xlu0 1
  %745 = vperm.xlu0 %744, %v290
  %v746 = vpop.permute.xlu0 %745
  %748 = vset.pattern.permute.xlu0 1
  %749 = vperm.xlu0 %748, %v296
  %v750 = vpop.permute.xlu0 %749
  %752 = vset.pattern.permute.xlu0 1
  %753 = vperm.xlu0 %752, %v302
  %v754 = vpop.permute.xlu0 %753
  %756 = vset.pattern.permute.xlu0 1
  %757 = vperm.xlu0 %756, %v308
  %v758 = vpop.permute.xlu0 %757
  %760 = vset.pattern.permute.xlu0 1
  %761 = vperm.xlu0 %760, %v314
  %v762 = vpop.permute.xlu0 %761
  %764 = vset.pattern.permute.xlu0 1
  %765 = vperm.xlu0 %764, %v320
  %v766 = vpop.permute.xlu0 %765
  %768 = vset.pattern.permute.xlu0 1
  %769 = vperm.xlu0 %768, %v326
  %v770 = vpop.permute.xlu0 %769
  %772 = vset.pattern.permute.xlu0 1
  %773 = vperm.xlu0 %772, %v332
  %v774 = vpop.permute.xlu0 %773
  %v776 = vlaneseq
  %v777 = vshrl.u32 %v776, 7
  %v778 = vsub.s32 1, %v777
  %v779 = vrot.slane %v350, %v778
  %v780 = vadd.f32 %v746, %v779
  %v781 = vadd.f32 %v750, %v779
  %v782 = vadd.f32 %v754, %v779
  %v783 = vadd.f32 %v758, %v779
  %v784 = vadd.f32 %v762, %v779
  %v785 = vadd.f32 %v766, %v779
  %v786 = vadd.f32 %v770, %v779
  %v787 = vadd.f32 %v774, %v779
  %vm788 = vcmp.gt.f32.partialorder %v780, 0.0
  %vm789 = vcmp.gt.f32.partialorder %v781, 0.0
  %vm790 = vcmp.gt.f32.partialorder %v782, 0.0
  %vm791 = vcmp.gt.f32.partialorder %v783, 0.0
  %vm792 = vcmp.gt.f32.partialorder %v784, 0.0
  %vm793 = vcmp.gt.f32.partialorder %v785, 0.0
  %vm794 = vcmp.gt.f32.partialorder %v786, 0.0
  %vm795 = vcmp.gt.f32.partialorder %v787, 0.0
  %v796 = vmul.f32 %v780, 0.2
  %v797 = vmul.f32 %v781, 0.2
  %v798 = vmul.f32 %v782, 0.2
  %v799 = vmul.f32 %v783, 0.2
  %v800 = vmul.f32 %v784, 0.2
  %v801 = vmul.f32 %v785, 0.2
  %v802 = vmul.f32 %v786, 0.2
  %v803 = vmul.f32 %v787, 0.2
  %v804 = vsel %vm788, %v780, %v796
  %v805 = vsel %vm789, %v781, %v797
  %v806 = vsel %vm790, %v782, %v798
  %v807 = vsel %vm791, %v783, %v799
  %v808 = vsel %vm792, %v784, %v800
  %v809 = vsel %vm793, %v785, %v801
  %v810 = vsel %vm794, %v786, %v802
  %v811 = vsel %vm795, %v787, %v803
  %v812 = vadd.f32 %v804, %v392
  %v813 = vadd.f32 %v805, %v393
  %v814 = vadd.f32 %v806, %v394
  %v815 = vadd.f32 %v807, %v395
  %v816 = vadd.f32 %v808, %v396
  %v817 = vadd.f32 %v809, %v397
  %v818 = vadd.f32 %v810, %v398
  %v819 = vadd.f32 %v811, %v399
  %v820 = vsel %vm111, %v812, -inf
  %821 = vmax.xlane.f32.xlu0 %v820
  %v822 = vpop.xlane.xlu0 %821
  %v823 = vsel %vm111, %v813, -inf
  %824 = vmax.xlane.f32.xlu0 %v823
  %v825 = vpop.xlane.xlu0 %824
  %v826 = vsel %vm111, %v814, -inf
  %827 = vmax.xlane.f32.xlu0 %v826
  %v828 = vpop.xlane.xlu0 %827
  %v829 = vsel %vm111, %v815, -inf
  %830 = vmax.xlane.f32.xlu0 %v829
  %v831 = vpop.xlane.xlu0 %830
  %v832 = vsel %vm111, %v816, -inf
  %833 = vmax.xlane.f32.xlu0 %v832
  %v834 = vpop.xlane.xlu0 %833
  %v835 = vsel %vm111, %v817, -inf
  %836 = vmax.xlane.f32.xlu0 %v835
  %v837 = vpop.xlane.xlu0 %836
  %v838 = vsel %vm111, %v818, -inf
  %839 = vmax.xlane.f32.xlu0 %v838
  %v840 = vpop.xlane.xlu0 %839
  %v841 = vsel %vm111, %v819, -inf
  %842 = vmax.xlane.f32.xlu0 %v841
  %v843 = vpop.xlane.xlu0 %842
  %v844 = vmax.f32 %v822, -10000.0
  %v845 = vmax.f32 %v825, -10000.0
  %v846 = vmax.f32 %v828, -10000.0
  %v847 = vmax.f32 %v831, -10000.0
  %v848 = vmax.f32 %v834, -10000.0
  %v849 = vmax.f32 %v837, -10000.0
  %v850 = vmax.f32 %v840, -10000.0
  %v851 = vmax.f32 %v843, -10000.0
  %v852 = vsub.f32 %v812, %v844
  %v853 = vsub.f32 %v813, %v845
  %v854 = vsub.f32 %v814, %v846
  %v855 = vsub.f32 %v815, %v847
  %v856 = vsub.f32 %v816, %v848
  %v857 = vsub.f32 %v817, %v849
  %v858 = vsub.f32 %v818, %v850
  %v859 = vsub.f32 %v819, %v851
  %v860 = vmul.f32 %v852, 1.442695
  %v861 = vpow.pop %v860
  %v862 = vmul.f32 %v853, 1.442695
  %v863 = vpow.pop %v862
  %v864 = vmul.f32 %v854, 1.442695
  %v865 = vpow.pop %v864
  %v866 = vmul.f32 %v855, 1.442695
  %v867 = vpow.pop %v866
  %v868 = vmul.f32 %v856, 1.442695
  %v869 = vpow.pop %v868
  %v870 = vmul.f32 %v857, 1.442695
  %v871 = vpow.pop %v870
  %v872 = vmul.f32 %v858, 1.442695
  %v873 = vpow.pop %v872
  %v874 = vmul.f32 %v859, 1.442695
  %v875 = vpow.pop %v874
  %v876 = vsel %vm111, %v861, 0.0
  %877 = vadd.xlane.f32.xlu0 %v876
  %v878 = vpop.xlane.xlu0 %877
  %v879 = vsel %vm111, %v863, 0.0
  %880 = vadd.xlane.f32.xlu0 %v879
  %v881 = vpop.xlane.xlu0 %880
  %v882 = vsel %vm111, %v865, 0.0
  %883 = vadd.xlane.f32.xlu0 %v882
  %v884 = vpop.xlane.xlu0 %883
  %v885 = vsel %vm111, %v867, 0.0
  %886 = vadd.xlane.f32.xlu0 %v885
  %v887 = vpop.xlane.xlu0 %886
  %v888 = vsel %vm111, %v869, 0.0
  %889 = vadd.xlane.f32.xlu0 %v888
  %v890 = vpop.xlane.xlu0 %889
  %v891 = vsel %vm111, %v871, 0.0
  %892 = vadd.xlane.f32.xlu0 %v891
  %v893 = vpop.xlane.xlu0 %892
  %v894 = vsel %vm111, %v873, 0.0
  %895 = vadd.xlane.f32.xlu0 %v894
  %v896 = vpop.xlane.xlu0 %895
  %v897 = vsel %vm111, %v875, 0.0
  %898 = vadd.xlane.f32.xlu0 %v897
  %v899 = vpop.xlane.xlu0 %898
  %vm900 = vcmp.eq.f32.partialorder %v878, 0.0
  %vm901 = vcmp.eq.f32.partialorder %v881, 0.0
  %vm902 = vcmp.eq.f32.partialorder %v884, 0.0
  %vm903 = vcmp.eq.f32.partialorder %v887, 0.0
  %vm904 = vcmp.eq.f32.partialorder %v890, 0.0
  %vm905 = vcmp.eq.f32.partialorder %v893, 0.0
  %vm906 = vcmp.eq.f32.partialorder %v896, 0.0
  %vm907 = vcmp.eq.f32.partialorder %v899, 0.0
  %v908 = vsel %vm900, 1.0, %v878
  %v909 = vsel %vm901, 1.0, %v881
  %v910 = vsel %vm902, 1.0, %v884
  %v911 = vsel %vm903, 1.0, %v887
  %v912 = vsel %vm904, 1.0, %v890
  %v913 = vsel %vm905, 1.0, %v893
  %v914 = vsel %vm906, 1.0, %v896
  %v915 = vsel %vm907, 1.0, %v899
  %v916 = vrcp.pop %v908
  %v917 = vmul.f32 1.0, %v916
  %v918 = vrcp.pop %v909
  %v919 = vmul.f32 1.0, %v918
  %v920 = vrcp.pop %v910
  %v921 = vmul.f32 1.0, %v920
  %v922 = vrcp.pop %v911
  %v923 = vmul.f32 1.0, %v922
  %v924 = vrcp.pop %v912
  %v925 = vmul.f32 1.0, %v924
  %v926 = vrcp.pop %v913
  %v927 = vmul.f32 1.0, %v926
  %v928 = vrcp.pop %v914
  %v929 = vmul.f32 1.0, %v928
  %v930 = vrcp.pop %v915
  %v931 = vmul.f32 1.0, %v930
  %v932 = vmul.f32 %v861, %v917
  %v933 = vmul.f32 %v863, %v919
  %v934 = vmul.f32 %v865, %v921
  %v935 = vmul.f32 %v867, %v923
  %v936 = vmul.f32 %v869, %v925
  %v937 = vmul.f32 %v871, %v927
  %v938 = vmul.f32 %v873, %v929
  %v939 = vmul.f32 %v875, %v931
  %v940 = vpack.c.bf16 %v933, %v932
  %v941 = vpack.c.bf16 %v935, %v934
  %v942 = vpack.c.bf16 %v937, %v936
  %v943 = vpack.c.bf16 %v939, %v938
  %948 = vrot.lane.b32.xlu0 %v608, 96
  %v949 = vpop.permute.xlu0 %948
  %950 = vrot.lane.b32.xlu0 %v609, 96
  %v951 = vpop.permute.xlu0 %950
  %952 = vrot.lane.b32.xlu0 %v610, 96
  %v953 = vpop.permute.xlu0 %952
  %954 = vrot.lane.b32.xlu0 %v611, 96
  %v955 = vpop.permute.xlu0 %954
  %960 = vrot.lane.b32.xlu0 %v617, 96
  %v961 = vpop.permute.xlu0 %960
  %v964 = vsel %vm111, %v940, 0
  %v967 = vsel %vm111, %v941, 0
  %v970 = vsel %vm111, %v942, 0
  %v973 = vsel %vm111, %v943, 0
  %975 = vmatprep.subr.bf16.mxu0 0
  %976 = vmatpush1.bf16.msra.mxu0 %v949
  %977 = vmatprep.subr.bf16.mxu0 0
  %978 = vmatpush1.bf16.msra.mxu0 %v951
  %979 = vmatprep.subr.bf16.mxu0 0
  %980 = vmatpush1.bf16.msra.mxu0 %v953
  %981 = vmatprep.subr.bf16.mxu0 0
  %982 = vmatpush1.bf16.msra.mxu0 %v955
  %983 = vmatprep.subr.bf16.mxu0 0
  %984 = vmatpush1.bf16.msra.mxu0 0
  %985 = vmatprep.subr.bf16.mxu0 0
  %986 = vmatpush1.bf16.msra.mxu0 0
  %987 = vmatprep.subr.bf16.mxu0 0
  %988 = vmatpush1.bf16.msra.mxu0 0
  %989 = vmatprep.subr.bf16.mxu0 0
  %990 = vmatpush1.bf16.msra.mxu0 0
  %991 = vmatprep.subr.bf16.mxu0 0
  %992 = vmatpush1.bf16.msra.mxu0 0
  %993 = vmatprep.subr.bf16.mxu0 0
  %994 = vmatpush1.bf16.msra.mxu0 0
  %995 = vmatprep.subr.bf16.mxu0 0
  %996 = vmatpush1.bf16.msra.mxu0 0
  %997 = vmatprep.subr.bf16.mxu0 0
  %998 = vmatpush1.bf16.msra.mxu0 0
  %999 = vmatprep.subr.bf16.mxu0 0
  %1000 = vmatpush1.bf16.msra.mxu0 0
  %1001 = vmatprep.subr.bf16.mxu0 0
  %1002 = vmatpush1.bf16.msra.mxu0 0
  %1003 = vmatprep.subr.bf16.mxu0 0
  %1004 = vmatpush1.bf16.msra.mxu0 0
  %1005 = vmatprep.subr.bf16.mxu0 0
  %1006 = vmatpush1.bf16.msra.mxu0 0
  %1007 = vmatprep.mubr.bf16.mxu0 0
  %1008 = vmatmul.mubr.bf16.gmra.mrb[0].mxu0 %v964
  %v1009 = vpop.f32.mrb[0].mxu0
  %v1010 = vadd.f32 %v961, %v1009
  %v1011 = vpop.f32.mrb[0].mxu0
  %v1012 = vpop.f32.mrb[0].mxu0
  %v1013 = vadd.f32 %v961, %v1012
  %v1014 = vpop.f32.mrb[0].mxu0
  %1015 = vmatprep.mubr.bf16.mxu0 0
  %1016 = vmatmul.mubr.bf16.gmra.mrb[0].mxu0 %v967
  %v1017 = vpop.f32.mrb[0].mxu0
  %v1018 = vadd.f32 %v961, %v1017
  %v1019 = vpop.f32.mrb[0].mxu0
  %v1020 = vpop.f32.mrb[0].mxu0
  %v1021 = vadd.f32 %v961, %v1020
  %v1022 = vpop.f32.mrb[0].mxu0
  %1023 = vmatprep.mubr.bf16.mxu0 0
  %1024 = vmatmul.mubr.bf16.gmra.mrb[0].mxu0 %v970
  %v1025 = vpop.f32.mrb[0].mxu0
  %v1026 = vadd.f32 %v961, %v1025
  %v1027 = vpop.f32.mrb[0].mxu0
  %v1028 = vpop.f32.mrb[0].mxu0
  %v1029 = vadd.f32 %v961, %v1028
  %v1030 = vpop.f32.mrb[0].mxu0
  %1031 = vmatprep.mubr.bf16.mxu0 0
  %1032 = vmatmul.mubr.bf16.gmra.mrb[0].mxu0 %v973
  %v1033 = vpop.f32.mrb[0].mxu0
  %v1034 = vadd.f32 %v961, %v1033
  %v1035 = vpop.f32.mrb[0].mxu0
  %v1036 = vpop.f32.mrb[0].mxu0
  %v1037 = vadd.f32 %v961, %v1036
  %v1038 = vpop.f32.mrb[0].mxu0
  %1039 = vdwg.mxu0
  %vm1040 = vcmp.gt.f32.partialorder %v1010, 0.0
  %vm1041 = vcmp.gt.f32.partialorder %v1013, 0.0
  %vm1042 = vcmp.gt.f32.partialorder %v1018, 0.0
  %vm1043 = vcmp.gt.f32.partialorder %v1021, 0.0
  %vm1044 = vcmp.gt.f32.partialorder %v1026, 0.0
  %vm1045 = vcmp.gt.f32.partialorder %v1029, 0.0
  %vm1046 = vcmp.gt.f32.partialorder %v1034, 0.0
  %vm1047 = vcmp.gt.f32.partialorder %v1037, 0.0
  %v1048 = vmin.f32 %v1010, 0.0
  %v1049 = vmin.f32 %v1013, 0.0
  %v1050 = vmin.f32 %v1018, 0.0
  %v1051 = vmin.f32 %v1021, 0.0
  %v1052 = vmin.f32 %v1026, 0.0
  %v1053 = vmin.f32 %v1029, 0.0
  %v1054 = vmin.f32 %v1034, 0.0
  %v1055 = vmin.f32 %v1037, 0.0
  %v1056 = vmul.f32 %v1048, 1.442695
  %v1057 = vpow.pop %v1056
  %v1058 = vmul.f32 %v1049, 1.442695
  %v1059 = vpow.pop %v1058
  %v1060 = vmul.f32 %v1050, 1.442695
  %v1061 = vpow.pop %v1060
  %v1062 = vmul.f32 %v1051, 1.442695
  %v1063 = vpow.pop %v1062
  %v1064 = vmul.f32 %v1052, 1.442695
  %v1065 = vpow.pop %v1064
  %v1066 = vmul.f32 %v1053, 1.442695
  %v1067 = vpow.pop %v1066
  %v1068 = vmul.f32 %v1054, 1.442695
  %v1069 = vpow.pop %v1068
  %v1070 = vmul.f32 %v1055, 1.442695
  %v1071 = vpow.pop %v1070
  %v1072 = vsub.f32 %v1057, 1.0
  %v1073 = vsub.f32 %v1059, 1.0
  %v1074 = vsub.f32 %v1061, 1.0
  %v1075 = vsub.f32 %v1063, 1.0
  %v1076 = vsub.f32 %v1065, 1.0
  %v1077 = vsub.f32 %v1067, 1.0
  %v1078 = vsub.f32 %v1069, 1.0
  %v1079 = vsub.f32 %v1071, 1.0
  %v1080 = vsel %vm1040, %v1010, %v1072
  %v1081 = vsel %vm1041, %v1013, %v1073
  %v1082 = vsel %vm1042, %v1018, %v1074
  %v1083 = vsel %vm1043, %v1021, %v1075
  %v1084 = vsel %vm1044, %v1026, %v1076
  %v1085 = vsel %vm1045, %v1029, %v1077
  %v1086 = vsel %vm1046, %v1034, %v1078
  %v1087 = vsel %vm1047, %v1037, %v1079
  %1096 = vrot.lane.b32.xlu0 %v1080, 32
  %v1097 = vpop.permute.xlu0 %1096
  %1098 = vrot.lane.b32.xlu0 %v1081, 32
  %v1099 = vpop.permute.xlu0 %1098
  %1100 = vrot.lane.b32.xlu0 %v1082, 32
  %v1101 = vpop.permute.xlu0 %1100
  %1102 = vrot.lane.b32.xlu0 %v1083, 32
  %v1103 = vpop.permute.xlu0 %1102
  %1104 = vrot.lane.b32.xlu0 %v1084, 32
  %v1105 = vpop.permute.xlu0 %1104
  %1106 = vrot.lane.b32.xlu0 %v1085, 32
  %v1107 = vpop.permute.xlu0 %1106
  %1108 = vrot.lane.b32.xlu0 %v1086, 32
  %v1109 = vpop.permute.xlu0 %1108
  %1110 = vrot.lane.b32.xlu0 %v1087, 32
  %v1111 = vpop.permute.xlu0 %1110
  %vm1120 = vcmask 261120
  %v1121 = vsel %vm1120, %v736, %v1097
  %v1122 = vsel %vm1120, %v737, %v1099
  %v1123 = vsel %vm1120, %v738, %v1101
  %v1124 = vsel %vm1120, %v739, %v1103
  %v1125 = vsel %vm1120, %v740, %v1105
  %v1126 = vsel %vm1120, %v741, %v1107
  %v1127 = vsel %vm1120, %v742, %v1109
  %v1128 = vsel %vm1120, %v743, %v1111
  %s1129 = scalar_lea.vmem %s1, 16
  %v1130 = vld [vmem:[%s1129] sm:$0xff]
  %v1131 = vld [vmem:[%s1129 + $0x8] sm:$0xff]
  %v1132 = vunpack.c.0.s8 %v1130
  %v1133 = vunpack.c.1.s8 %v1130
  %v1134 = vunpack.c.2.s8 %v1130
  %v1135 = vunpack.c.3.s8 %v1130
  %v1136 = vunpack.c.0.s8 %v1131
  %v1137 = vunpack.c.1.s8 %v1131
  %v1138 = vunpack.c.2.s8 %v1131
  %v1139 = vunpack.c.3.s8 %v1131
  %v1140 = vcvt.s32.f32 %v1132
  %v1141 = vcvt.s32.f32 %v1133
  %v1142 = vcvt.s32.f32 %v1134
  %v1143 = vcvt.s32.f32 %v1135
  %v1144 = vcvt.s32.f32 %v1136
  %v1145 = vcvt.s32.f32 %v1137
  %v1146 = vcvt.s32.f32 %v1138
  %v1147 = vcvt.s32.f32 %v1139
  %v1148 = vsub.f32 %v1140, 1.0
  %v1149 = vsub.f32 %v1141, 1.0
  %v1150 = vsub.f32 %v1142, 1.0
  %v1151 = vsub.f32 %v1143, 1.0
  %v1152 = vsub.f32 %v1144, 1.0
  %v1153 = vsub.f32 %v1145, 1.0
  %v1154 = vsub.f32 %v1146, 1.0
  %v1155 = vsub.f32 %v1147, 1.0
  %v1156 = vmul.f32 %v1148, 1e+09
  %v1157 = vmul.f32 %v1149, 1e+09
  %v1158 = vmul.f32 %v1150, 1e+09
  %v1159 = vmul.f32 %v1151, 1e+09
  %v1160 = vmul.f32 %v1152, 1e+09
  %v1161 = vmul.f32 %v1153, 1e+09
  %v1162 = vmul.f32 %v1154, 1e+09
  %v1163 = vmul.f32 %v1155, 1e+09
  %1164 = vset.pattern.permute.xlu0 2
  %1165 = vperm.xlu0 %1164, %v290
  %v1166 = vpop.permute.xlu0 %1165
  %1168 = vset.pattern.permute.xlu0 2
  %1169 = vperm.xlu0 %1168, %v296
  %v1170 = vpop.permute.xlu0 %1169
  %1172 = vset.pattern.permute.xlu0 2
  %1173 = vperm.xlu0 %1172, %v302
  %v1174 = vpop.permute.xlu0 %1173
  %1176 = vset.pattern.permute.xlu0 2
  %1177 = vperm.xlu0 %1176, %v308
  %v1178 = vpop.permute.xlu0 %1177
  %1180 = vset.pattern.permute.xlu0 2
  %1181 = vperm.xlu0 %1180, %v314
  %v1182 = vpop.permute.xlu0 %1181
  %1184 = vset.pattern.permute.xlu0 2
  %1185 = vperm.xlu0 %1184, %v320
  %v1186 = vpop.permute.xlu0 %1185
  %1188 = vset.pattern.permute.xlu0 2
  %1189 = vperm.xlu0 %1188, %v326
  %v1190 = vpop.permute.xlu0 %1189
  %1192 = vset.pattern.permute.xlu0 2
  %1193 = vperm.xlu0 %1192, %v332
  %v1194 = vpop.permute.xlu0 %1193
  %v1196 = vlaneseq
  %v1197 = vshrl.u32 %v1196, 7
  %v1198 = vsub.s32 2, %v1197
  %v1199 = vrot.slane %v350, %v1198
  %v1200 = vadd.f32 %v1166, %v1199
  %v1201 = vadd.f32 %v1170, %v1199
  %v1202 = vadd.f32 %v1174, %v1199
  %v1203 = vadd.f32 %v1178, %v1199
  %v1204 = vadd.f32 %v1182, %v1199
  %v1205 = vadd.f32 %v1186, %v1199
  %v1206 = vadd.f32 %v1190, %v1199
  %v1207 = vadd.f32 %v1194, %v1199
  %vm1208 = vcmp.gt.f32.partialorder %v1200, 0.0
  %vm1209 = vcmp.gt.f32.partialorder %v1201, 0.0
  %vm1210 = vcmp.gt.f32.partialorder %v1202, 0.0
  %vm1211 = vcmp.gt.f32.partialorder %v1203, 0.0
  %vm1212 = vcmp.gt.f32.partialorder %v1204, 0.0
  %vm1213 = vcmp.gt.f32.partialorder %v1205, 0.0
  %vm1214 = vcmp.gt.f32.partialorder %v1206, 0.0
  %vm1215 = vcmp.gt.f32.partialorder %v1207, 0.0
  %v1216 = vmul.f32 %v1200, 0.2
  %v1217 = vmul.f32 %v1201, 0.2
  %v1218 = vmul.f32 %v1202, 0.2
  %v1219 = vmul.f32 %v1203, 0.2
  %v1220 = vmul.f32 %v1204, 0.2
  %v1221 = vmul.f32 %v1205, 0.2
  %v1222 = vmul.f32 %v1206, 0.2
  %v1223 = vmul.f32 %v1207, 0.2
  %v1224 = vsel %vm1208, %v1200, %v1216
  %v1225 = vsel %vm1209, %v1201, %v1217
  %v1226 = vsel %vm1210, %v1202, %v1218
  %v1227 = vsel %vm1211, %v1203, %v1219
  %v1228 = vsel %vm1212, %v1204, %v1220
  %v1229 = vsel %vm1213, %v1205, %v1221
  %v1230 = vsel %vm1214, %v1206, %v1222
  %v1231 = vsel %vm1215, %v1207, %v1223
  %v1232 = vadd.f32 %v1224, %v1156
  %v1233 = vadd.f32 %v1225, %v1157
  %v1234 = vadd.f32 %v1226, %v1158
  %v1235 = vadd.f32 %v1227, %v1159
  %v1236 = vadd.f32 %v1228, %v1160
  %v1237 = vadd.f32 %v1229, %v1161
  %v1238 = vadd.f32 %v1230, %v1162
  %v1239 = vadd.f32 %v1231, %v1163
  %v1240 = vsel %vm111, %v1232, -inf
  %1241 = vmax.xlane.f32.xlu0 %v1240
  %v1242 = vpop.xlane.xlu0 %1241
  %v1243 = vsel %vm111, %v1233, -inf
  %1244 = vmax.xlane.f32.xlu0 %v1243
  %v1245 = vpop.xlane.xlu0 %1244
  %v1246 = vsel %vm111, %v1234, -inf
  %1247 = vmax.xlane.f32.xlu0 %v1246
  %v1248 = vpop.xlane.xlu0 %1247
  %v1249 = vsel %vm111, %v1235, -inf
  %1250 = vmax.xlane.f32.xlu0 %v1249
  %v1251 = vpop.xlane.xlu0 %1250
  %v1252 = vsel %vm111, %v1236, -inf
  %1253 = vmax.xlane.f32.xlu0 %v1252
  %v1254 = vpop.xlane.xlu0 %1253
  %v1255 = vsel %vm111, %v1237, -inf
  %1256 = vmax.xlane.f32.xlu0 %v1255
  %v1257 = vpop.xlane.xlu0 %1256
  %v1258 = vsel %vm111, %v1238, -inf
  %1259 = vmax.xlane.f32.xlu0 %v1258
  %v1260 = vpop.xlane.xlu0 %1259
  %v1261 = vsel %vm111, %v1239, -inf
  %1262 = vmax.xlane.f32.xlu0 %v1261
  %v1263 = vpop.xlane.xlu0 %1262
  %v1264 = vmax.f32 %v1242, -10000.0
  %v1265 = vmax.f32 %v1245, -10000.0
  %v1266 = vmax.f32 %v1248, -10000.0
  %v1267 = vmax.f32 %v1251, -10000.0
  %v1268 = vmax.f32 %v1254, -10000.0
  %v1269 = vmax.f32 %v1257, -10000.0
  %v1270 = vmax.f32 %v1260, -10000.0
  %v1271 = vmax.f32 %v1263, -10000.0
  %v1272 = vsub.f32 %v1232, %v1264
  %v1273 = vsub.f32 %v1233, %v1265
  %v1274 = vsub.f32 %v1234, %v1266
  %v1275 = vsub.f32 %v1235, %v1267
  %v1276 = vsub.f32 %v1236, %v1268
  %v1277 = vsub.f32 %v1237, %v1269
  %v1278 = vsub.f32 %v1238, %v1270
  %v1279 = vsub.f32 %v1239, %v1271
  %v1280 = vmul.f32 %v1272, 1.442695
  %v1281 = vpow.pop %v1280
  %v1282 = vmul.f32 %v1273, 1.442695
  %v1283 = vpow.pop %v1282
  %v1284 = vmul.f32 %v1274, 1.442695
  %v1285 = vpow.pop %v1284
  %v1286 = vmul.f32 %v1275, 1.442695
  %v1287 = vpow.pop %v1286
  %v1288 = vmul.f32 %v1276, 1.442695
  %v1289 = vpow.pop %v1288
  %v1290 = vmul.f32 %v1277, 1.442695
  %v1291 = vpow.pop %v1290
  %v1292 = vmul.f32 %v1278, 1.442695
  %v1293 = vpow.pop %v1292
  %v1294 = vmul.f32 %v1279, 1.442695
  %v1295 = vpow.pop %v1294
  %v1296 = vsel %vm111, %v1281, 0.0
  %1297 = vadd.xlane.f32.xlu0 %v1296
  %v1298 = vpop.xlane.xlu0 %1297
  %v1299 = vsel %vm111, %v1283, 0.0
  %1300 = vadd.xlane.f32.xlu0 %v1299
  %v1301 = vpop.xlane.xlu0 %1300
  %v1302 = vsel %vm111, %v1285, 0.0
  %1303 = vadd.xlane.f32.xlu0 %v1302
  %v1304 = vpop.xlane.xlu0 %1303
  %v1305 = vsel %vm111, %v1287, 0.0
  %1306 = vadd.xlane.f32.xlu0 %v1305
  %v1307 = vpop.xlane.xlu0 %1306
  %v1308 = vsel %vm111, %v1289, 0.0
  %1309 = vadd.xlane.f32.xlu0 %v1308
  %v1310 = vpop.xlane.xlu0 %1309
  %v1311 = vsel %vm111, %v1291, 0.0
  %1312 = vadd.xlane.f32.xlu0 %v1311
  %v1313 = vpop.xlane.xlu0 %1312
  %v1314 = vsel %vm111, %v1293, 0.0
  %1315 = vadd.xlane.f32.xlu0 %v1314
  %v1316 = vpop.xlane.xlu0 %1315
  %v1317 = vsel %vm111, %v1295, 0.0
  %1318 = vadd.xlane.f32.xlu0 %v1317
  %v1319 = vpop.xlane.xlu0 %1318
  %vm1320 = vcmp.eq.f32.partialorder %v1298, 0.0
  %vm1321 = vcmp.eq.f32.partialorder %v1301, 0.0
  %vm1322 = vcmp.eq.f32.partialorder %v1304, 0.0
  %vm1323 = vcmp.eq.f32.partialorder %v1307, 0.0
  %vm1324 = vcmp.eq.f32.partialorder %v1310, 0.0
  %vm1325 = vcmp.eq.f32.partialorder %v1313, 0.0
  %vm1326 = vcmp.eq.f32.partialorder %v1316, 0.0
  %vm1327 = vcmp.eq.f32.partialorder %v1319, 0.0
  %v1328 = vsel %vm1320, 1.0, %v1298
  %v1329 = vsel %vm1321, 1.0, %v1301
  %v1330 = vsel %vm1322, 1.0, %v1304
  %v1331 = vsel %vm1323, 1.0, %v1307
  %v1332 = vsel %vm1324, 1.0, %v1310
  %v1333 = vsel %vm1325, 1.0, %v1313
  %v1334 = vsel %vm1326, 1.0, %v1316
  %v1335 = vsel %vm1327, 1.0, %v1319
  %v1336 = vrcp.pop %v1328
  %v1337 = vmul.f32 1.0, %v1336
  %v1338 = vrcp.pop %v1329
  %v1339 = vmul.f32 1.0, %v1338
  %v1340 = vrcp.pop %v1330
  %v1341 = vmul.f32 1.0, %v1340
  %v1342 = vrcp.pop %v1331
  %v1343 = vmul.f32 1.0, %v1342
  %v1344 = vrcp.pop %v1332
  %v1345 = vmul.f32 1.0, %v1344
  %v1346 = vrcp.pop %v1333
  %v1347 = vmul.f32 1.0, %v1346
  %v1348 = vrcp.pop %v1334
  %v1349 = vmul.f32 1.0, %v1348
  %v1350 = vrcp.pop %v1335
  %v1351 = vmul.f32 1.0, %v1350
  %v1352 = vmul.f32 %v1281, %v1337
  %v1353 = vmul.f32 %v1283, %v1339
  %v1354 = vmul.f32 %v1285, %v1341
  %v1355 = vmul.f32 %v1287, %v1343
  %v1356 = vmul.f32 %v1289, %v1345
  %v1357 = vmul.f32 %v1291, %v1347
  %v1358 = vmul.f32 %v1293, %v1349
  %v1359 = vmul.f32 %v1295, %v1351
  %v1360 = vpack.c.bf16 %v1353, %v1352
  %v1361 = vpack.c.bf16 %v1355, %v1354
  %v1362 = vpack.c.bf16 %v1357, %v1356
  %v1363 = vpack.c.bf16 %v1359, %v1358
  %1364 = vrot.lane.b32.xlu0 %v608, 64
  %v1365 = vpop.permute.xlu0 %1364
  %1366 = vrot.lane.b32.xlu0 %v609, 64
  %v1367 = vpop.permute.xlu0 %1366
  %1368 = vrot.lane.b32.xlu0 %v610, 64
  %v1369 = vpop.permute.xlu0 %1368
  %1370 = vrot.lane.b32.xlu0 %v611, 64
  %v1371 = vpop.permute.xlu0 %1370
  %1376 = vrot.lane.b32.xlu0 %v617, 64
  %v1377 = vpop.permute.xlu0 %1376
  %v1380 = vsel %vm111, %v1360, 0
  %v1383 = vsel %vm111, %v1361, 0
  %v1386 = vsel %vm111, %v1362, 0
  %v1389 = vsel %vm111, %v1363, 0
  %1391 = vmatprep.subr.bf16.mxu0 0
  %1392 = vmatpush1.bf16.msra.mxu0 %v1365
  %1393 = vmatprep.subr.bf16.mxu0 0
  %1394 = vmatpush1.bf16.msra.mxu0 %v1367
  %1395 = vmatprep.subr.bf16.mxu0 0
  %1396 = vmatpush1.bf16.msra.mxu0 %v1369
  %1397 = vmatprep.subr.bf16.mxu0 0
  %1398 = vmatpush1.bf16.msra.mxu0 %v1371
  %1399 = vmatprep.subr.bf16.mxu0 0
  %1400 = vmatpush1.bf16.msra.mxu0 0
  %1401 = vmatprep.subr.bf16.mxu0 0
  %1402 = vmatpush1.bf16.msra.mxu0 0
  %1403 = vmatprep.subr.bf16.mxu0 0
  %1404 = vmatpush1.bf16.msra.mxu0 0
  %1405 = vmatprep.subr.bf16.mxu0 0
  %1406 = vmatpush1.bf16.msra.mxu0 0
  %1407 = vmatprep.subr.bf16.mxu0 0
  %1408 = vmatpush1.bf16.msra.mxu0 0
  %1409 = vmatprep.subr.bf16.mxu0 0
  %1410 = vmatpush1.bf16.msra.mxu0 0
  %1411 = vmatprep.subr.bf16.mxu0 0
  %1412 = vmatpush1.bf16.msra.mxu0 0
  %1413 = vmatprep.subr.bf16.mxu0 0
  %1414 = vmatpush1.bf16.msra.mxu0 0
  %1415 = vmatprep.subr.bf16.mxu0 0
  %1416 = vmatpush1.bf16.msra.mxu0 0
  %1417 = vmatprep.subr.bf16.mxu0 0
  %1418 = vmatpush1.bf16.msra.mxu0 0
  %1419 = vmatprep.subr.bf16.mxu0 0
  %1420 = vmatpush1.bf16.msra.mxu0 0
  %1421 = vmatprep.subr.bf16.mxu0 0
  %1422 = vmatpush1.bf16.msra.mxu0 0
  %1423 = vmatprep.mubr.bf16.mxu0 0
  %1424 = vmatmul.mubr.bf16.gmra.mrb[0].mxu0 %v1380
  %v1425 = vpop.f32.mrb[0].mxu0
  %v1426 = vadd.f32 %v1377, %v1425
  %v1427 = vpop.f32.mrb[0].mxu0
  %v1428 = vpop.f32.mrb[0].mxu0
  %v1429 = vadd.f32 %v1377, %v1428
  %v1430 = vpop.f32.mrb[0].mxu0
  %1431 = vmatprep.mubr.bf16.mxu0 0
  %1432 = vmatmul.mubr.bf16.gmra.mrb[0].mxu0 %v1383
  %v1433 = vpop.f32.mrb[0].mxu0
  %v1434 = vadd.f32 %v1377, %v1433
  %v1435 = vpop.f32.mrb[0].mxu0
  %v1436 = vpop.f32.mrb[0].mxu0
  %v1437 = vadd.f32 %v1377, %v1436
  %v1438 = vpop.f32.mrb[0].mxu0
  %1439 = vmatprep.mubr.bf16.mxu0 0
  %1440 = vmatmul.mubr.bf16.gmra.mrb[0].mxu0 %v1386
  %v1441 = vpop.f32.mrb[0].mxu0
  %v1442 = vadd.f32 %v1377, %v1441
  %v1443 = vpop.f32.mrb[0].mxu0
  %v1444 = vpop.f32.mrb[0].mxu0
  %v1445 = vadd.f32 %v1377, %v1444
  %v1446 = vpop.f32.mrb[0].mxu0
  %1447 = vmatprep.mubr.bf16.mxu0 0
  %1448 = vmatmul.mubr.bf16.gmra.mrb[0].mxu0 %v1389
  %v1449 = vpop.f32.mrb[0].mxu0
  %v1450 = vadd.f32 %v1377, %v1449
  %v1451 = vpop.f32.mrb[0].mxu0
  %v1452 = vpop.f32.mrb[0].mxu0
  %v1453 = vadd.f32 %v1377, %v1452
  %v1454 = vpop.f32.mrb[0].mxu0
  %1455 = vdwg.mxu0
  %vm1456 = vcmp.gt.f32.partialorder %v1426, 0.0
  %vm1457 = vcmp.gt.f32.partialorder %v1429, 0.0
  %vm1458 = vcmp.gt.f32.partialorder %v1434, 0.0
  %vm1459 = vcmp.gt.f32.partialorder %v1437, 0.0
  %vm1460 = vcmp.gt.f32.partialorder %v1442, 0.0
  %vm1461 = vcmp.gt.f32.partialorder %v1445, 0.0
  %vm1462 = vcmp.gt.f32.partialorder %v1450, 0.0
  %vm1463 = vcmp.gt.f32.partialorder %v1453, 0.0
  %v1464 = vmin.f32 %v1426, 0.0
  %v1465 = vmin.f32 %v1429, 0.0
  %v1466 = vmin.f32 %v1434, 0.0
  %v1467 = vmin.f32 %v1437, 0.0
  %v1468 = vmin.f32 %v1442, 0.0
  %v1469 = vmin.f32 %v1445, 0.0
  %v1470 = vmin.f32 %v1450, 0.0
  %v1471 = vmin.f32 %v1453, 0.0
  %v1472 = vmul.f32 %v1464, 1.442695
  %v1473 = vpow.pop %v1472
  %v1474 = vmul.f32 %v1465, 1.442695
  %v1475 = vpow.pop %v1474
  %v1476 = vmul.f32 %v1466, 1.442695
  %v1477 = vpow.pop %v1476
  %v1478 = vmul.f32 %v1467, 1.442695
  %v1479 = vpow.pop %v1478
  %v1480 = vmul.f32 %v1468, 1.442695
  %v1481 = vpow.pop %v1480
  %v1482 = vmul.f32 %v1469, 1.442695
  %v1483 = vpow.pop %v1482
  %v1484 = vmul.f32 %v1470, 1.442695
  %v1485 = vpow.pop %v1484
  %v1486 = vmul.f32 %v1471, 1.442695
  %v1487 = vpow.pop %v1486
  %v1488 = vsub.f32 %v1473, 1.0
  %v1489 = vsub.f32 %v1475, 1.0
  %v1490 = vsub.f32 %v1477, 1.0
  %v1491 = vsub.f32 %v1479, 1.0
  %v1492 = vsub.f32 %v1481, 1.0
  %v1493 = vsub.f32 %v1483, 1.0
  %v1494 = vsub.f32 %v1485, 1.0
  %v1495 = vsub.f32 %v1487, 1.0
  %v1496 = vsel %vm1456, %v1426, %v1488
  %v1497 = vsel %vm1457, %v1429, %v1489
  %v1498 = vsel %vm1458, %v1434, %v1490
  %v1499 = vsel %vm1459, %v1437, %v1491
  %v1500 = vsel %vm1460, %v1442, %v1492
  %v1501 = vsel %vm1461, %v1445, %v1493
  %v1502 = vsel %vm1462, %v1450, %v1494
  %v1503 = vsel %vm1463, %v1453, %v1495
  %1504 = vset.pattern.permute.xlu0 3
  %1505 = vperm.xlu0 %1504, %v290
  %v1506 = vpop.permute.xlu0 %1505
  %1508 = vset.pattern.permute.xlu0 3
  %1509 = vperm.xlu0 %1508, %v296
  %v1510 = vpop.permute.xlu0 %1509
  %1512 = vset.pattern.permute.xlu0 3
  %1513 = vperm.xlu0 %1512, %v302
  %v1514 = vpop.permute.xlu0 %1513
  %1516 = vset.pattern.permute.xlu0 3
  %1517 = vperm.xlu0 %1516, %v308
  %v1518 = vpop.permute.xlu0 %1517
  %1520 = vset.pattern.permute.xlu0 3
  %1521 = vperm.xlu0 %1520, %v314
  %v1522 = vpop.permute.xlu0 %1521
  %1524 = vset.pattern.permute.xlu0 3
  %1525 = vperm.xlu0 %1524, %v320
  %v1526 = vpop.permute.xlu0 %1525
  %1528 = vset.pattern.permute.xlu0 3
  %1529 = vperm.xlu0 %1528, %v326
  %v1530 = vpop.permute.xlu0 %1529
  %1532 = vset.pattern.permute.xlu0 3
  %1533 = vperm.xlu0 %1532, %v332
  %v1534 = vpop.permute.xlu0 %1533
  %v1536 = vlaneseq
  %v1537 = vshrl.u32 %v1536, 7
  %v1538 = vsub.s32 3, %v1537
  %v1539 = vrot.slane %v350, %v1538
  %v1540 = vadd.f32 %v1506, %v1539
  %v1541 = vadd.f32 %v1510, %v1539
  %v1542 = vadd.f32 %v1514, %v1539
  %v1543 = vadd.f32 %v1518, %v1539
  %v1544 = vadd.f32 %v1522, %v1539
  %v1545 = vadd.f32 %v1526, %v1539
  %v1546 = vadd.f32 %v1530, %v1539
  %v1547 = vadd.f32 %v1534, %v1539
  %vm1548 = vcmp.gt.f32.partialorder %v1540, 0.0
  %vm1549 = vcmp.gt.f32.partialorder %v1541, 0.0
  %vm1550 = vcmp.gt.f32.partialorder %v1542, 0.0
  %vm1551 = vcmp.gt.f32.partialorder %v1543, 0.0
  %vm1552 = vcmp.gt.f32.partialorder %v1544, 0.0
  %vm1553 = vcmp.gt.f32.partialorder %v1545, 0.0
  %vm1554 = vcmp.gt.f32.partialorder %v1546, 0.0
  %vm1555 = vcmp.gt.f32.partialorder %v1547, 0.0
  %v1556 = vmul.f32 %v1540, 0.2
  %v1557 = vmul.f32 %v1541, 0.2
  %v1558 = vmul.f32 %v1542, 0.2
  %v1559 = vmul.f32 %v1543, 0.2
  %v1560 = vmul.f32 %v1544, 0.2
  %v1561 = vmul.f32 %v1545, 0.2
  %v1562 = vmul.f32 %v1546, 0.2
  %v1563 = vmul.f32 %v1547, 0.2
  %v1564 = vsel %vm1548, %v1540, %v1556
  %v1565 = vsel %vm1549, %v1541, %v1557
  %v1566 = vsel %vm1550, %v1542, %v1558
  %v1567 = vsel %vm1551, %v1543, %v1559
  %v1568 = vsel %vm1552, %v1544, %v1560
  %v1569 = vsel %vm1553, %v1545, %v1561
  %v1570 = vsel %vm1554, %v1546, %v1562
  %v1571 = vsel %vm1555, %v1547, %v1563
  %v1572 = vadd.f32 %v1564, %v1156
  %v1573 = vadd.f32 %v1565, %v1157
  %v1574 = vadd.f32 %v1566, %v1158
  %v1575 = vadd.f32 %v1567, %v1159
  %v1576 = vadd.f32 %v1568, %v1160
  %v1577 = vadd.f32 %v1569, %v1161
  %v1578 = vadd.f32 %v1570, %v1162
  %v1579 = vadd.f32 %v1571, %v1163
  %v1580 = vsel %vm111, %v1572, -inf
  %1581 = vmax.xlane.f32.xlu0 %v1580
  %v1582 = vpop.xlane.xlu0 %1581
  %v1583 = vsel %vm111, %v1573, -inf
  %1584 = vmax.xlane.f32.xlu0 %v1583
  %v1585 = vpop.xlane.xlu0 %1584
  %v1586 = vsel %vm111, %v1574, -inf
  %1587 = vmax.xlane.f32.xlu0 %v1586
  %v1588 = vpop.xlane.xlu0 %1587
  %v1589 = vsel %vm111, %v1575, -inf
  %1590 = vmax.xlane.f32.xlu0 %v1589
  %v1591 = vpop.xlane.xlu0 %1590
  %v1592 = vsel %vm111, %v1576, -inf
  %1593 = vmax.xlane.f32.xlu0 %v1592
  %v1594 = vpop.xlane.xlu0 %1593
  %v1595 = vsel %vm111, %v1577, -inf
  %1596 = vmax.xlane.f32.xlu0 %v1595
  %v1597 = vpop.xlane.xlu0 %1596
  %v1598 = vsel %vm111, %v1578, -inf
  %1599 = vmax.xlane.f32.xlu0 %v1598
  %v1600 = vpop.xlane.xlu0 %1599
  %v1601 = vsel %vm111, %v1579, -inf
  %1602 = vmax.xlane.f32.xlu0 %v1601
  %v1603 = vpop.xlane.xlu0 %1602
  %v1604 = vmax.f32 %v1582, -10000.0
  %v1605 = vmax.f32 %v1585, -10000.0
  %v1606 = vmax.f32 %v1588, -10000.0
  %v1607 = vmax.f32 %v1591, -10000.0
  %v1608 = vmax.f32 %v1594, -10000.0
  %v1609 = vmax.f32 %v1597, -10000.0
  %v1610 = vmax.f32 %v1600, -10000.0
  %v1611 = vmax.f32 %v1603, -10000.0
  %v1612 = vsub.f32 %v1572, %v1604
  %v1613 = vsub.f32 %v1573, %v1605
  %v1614 = vsub.f32 %v1574, %v1606
  %v1615 = vsub.f32 %v1575, %v1607
  %v1616 = vsub.f32 %v1576, %v1608
  %v1617 = vsub.f32 %v1577, %v1609
  %v1618 = vsub.f32 %v1578, %v1610
  %v1619 = vsub.f32 %v1579, %v1611
  %v1620 = vmul.f32 %v1612, 1.442695
  %v1621 = vpow.pop %v1620
  %v1622 = vmul.f32 %v1613, 1.442695
  %v1623 = vpow.pop %v1622
  %v1624 = vmul.f32 %v1614, 1.442695
  %v1625 = vpow.pop %v1624
  %v1626 = vmul.f32 %v1615, 1.442695
  %v1627 = vpow.pop %v1626
  %v1628 = vmul.f32 %v1616, 1.442695
  %v1629 = vpow.pop %v1628
  %v1630 = vmul.f32 %v1617, 1.442695
  %v1631 = vpow.pop %v1630
  %v1632 = vmul.f32 %v1618, 1.442695
  %v1633 = vpow.pop %v1632
  %v1634 = vmul.f32 %v1619, 1.442695
  %v1635 = vpow.pop %v1634
  %v1636 = vsel %vm111, %v1621, 0.0
  %1637 = vadd.xlane.f32.xlu0 %v1636
  %v1638 = vpop.xlane.xlu0 %1637
  %v1639 = vsel %vm111, %v1623, 0.0
  %1640 = vadd.xlane.f32.xlu0 %v1639
  %v1641 = vpop.xlane.xlu0 %1640
  %v1642 = vsel %vm111, %v1625, 0.0
  %1643 = vadd.xlane.f32.xlu0 %v1642
  %v1644 = vpop.xlane.xlu0 %1643
  %v1645 = vsel %vm111, %v1627, 0.0
  %1646 = vadd.xlane.f32.xlu0 %v1645
  %v1647 = vpop.xlane.xlu0 %1646
  %v1648 = vsel %vm111, %v1629, 0.0
  %1649 = vadd.xlane.f32.xlu0 %v1648
  %v1650 = vpop.xlane.xlu0 %1649
  %v1651 = vsel %vm111, %v1631, 0.0
  %1652 = vadd.xlane.f32.xlu0 %v1651
  %v1653 = vpop.xlane.xlu0 %1652
  %v1654 = vsel %vm111, %v1633, 0.0
  %1655 = vadd.xlane.f32.xlu0 %v1654
  %v1656 = vpop.xlane.xlu0 %1655
  %v1657 = vsel %vm111, %v1635, 0.0
  %1658 = vadd.xlane.f32.xlu0 %v1657
  %v1659 = vpop.xlane.xlu0 %1658
  %vm1660 = vcmp.eq.f32.partialorder %v1638, 0.0
  %vm1661 = vcmp.eq.f32.partialorder %v1641, 0.0
  %vm1662 = vcmp.eq.f32.partialorder %v1644, 0.0
  %vm1663 = vcmp.eq.f32.partialorder %v1647, 0.0
  %vm1664 = vcmp.eq.f32.partialorder %v1650, 0.0
  %vm1665 = vcmp.eq.f32.partialorder %v1653, 0.0
  %vm1666 = vcmp.eq.f32.partialorder %v1656, 0.0
  %vm1667 = vcmp.eq.f32.partialorder %v1659, 0.0
  %v1668 = vsel %vm1660, 1.0, %v1638
  %v1669 = vsel %vm1661, 1.0, %v1641
  %v1670 = vsel %vm1662, 1.0, %v1644
  %v1671 = vsel %vm1663, 1.0, %v1647
  %v1672 = vsel %vm1664, 1.0, %v1650
  %v1673 = vsel %vm1665, 1.0, %v1653
  %v1674 = vsel %vm1666, 1.0, %v1656
  %v1675 = vsel %vm1667, 1.0, %v1659
  %v1676 = vrcp.pop %v1668
  %v1677 = vmul.f32 1.0, %v1676
  %v1678 = vrcp.pop %v1669
  %v1679 = vmul.f32 1.0, %v1678
  %v1680 = vrcp.pop %v1670
  %v1681 = vmul.f32 1.0, %v1680
  %v1682 = vrcp.pop %v1671
  %v1683 = vmul.f32 1.0, %v1682
  %v1684 = vrcp.pop %v1672
  %v1685 = vmul.f32 1.0, %v1684
  %v1686 = vrcp.pop %v1673
  %v1687 = vmul.f32 1.0, %v1686
  %v1688 = vrcp.pop %v1674
  %v1689 = vmul.f32 1.0, %v1688
  %v1690 = vrcp.pop %v1675
  %v1691 = vmul.f32 1.0, %v1690
  %v1692 = vmul.f32 %v1621, %v1677
  %v1693 = vmul.f32 %v1623, %v1679
  %v1694 = vmul.f32 %v1625, %v1681
  %v1695 = vmul.f32 %v1627, %v1683
  %v1696 = vmul.f32 %v1629, %v1685
  %v1697 = vmul.f32 %v1631, %v1687
  %v1698 = vmul.f32 %v1633, %v1689
  %v1699 = vmul.f32 %v1635, %v1691
  %v1700 = vpack.c.bf16 %v1693, %v1692
  %v1701 = vpack.c.bf16 %v1695, %v1694
  %v1702 = vpack.c.bf16 %v1697, %v1696
  %v1703 = vpack.c.bf16 %v1699, %v1698
  %1704 = vrot.lane.b32.xlu0 %v608, 32
  %v1705 = vpop.permute.xlu0 %1704
  %1706 = vrot.lane.b32.xlu0 %v609, 32
  %v1707 = vpop.permute.xlu0 %1706
  %1708 = vrot.lane.b32.xlu0 %v610, 32
  %v1709 = vpop.permute.xlu0 %1708
  %1710 = vrot.lane.b32.xlu0 %v611, 32
  %v1711 = vpop.permute.xlu0 %1710
  %1716 = vrot.lane.b32.xlu0 %v617, 32
  %v1717 = vpop.permute.xlu0 %1716
  %v1720 = vsel %vm111, %v1700, 0
  %v1723 = vsel %vm111, %v1701, 0
  %v1726 = vsel %vm111, %v1702, 0
  %v1729 = vsel %vm111, %v1703, 0
  %1731 = vmatprep.subr.bf16.mxu0 0
  %1732 = vmatpush1.bf16.msra.mxu0 %v1705
  %1733 = vmatprep.subr.bf16.mxu0 0
  %1734 = vmatpush1.bf16.msra.mxu0 %v1707
  %1735 = vmatprep.subr.bf16.mxu0 0
  %1736 = vmatpush1.bf16.msra.mxu0 %v1709
  %1737 = vmatprep.subr.bf16.mxu0 0
  %1738 = vmatpush1.bf16.msra.mxu0 %v1711
  %1739 = vmatprep.subr.bf16.mxu0 0
  %1740 = vmatpush1.bf16.msra.mxu0 0
  %1741 = vmatprep.subr.bf16.mxu0 0
  %1742 = vmatpush1.bf16.msra.mxu0 0
  %1743 = vmatprep.subr.bf16.mxu0 0
  %1744 = vmatpush1.bf16.msra.mxu0 0
  %1745 = vmatprep.subr.bf16.mxu0 0
  %1746 = vmatpush1.bf16.msra.mxu0 0
  %1747 = vmatprep.subr.bf16.mxu0 0
  %1748 = vmatpush1.bf16.msra.mxu0 0
  %1749 = vmatprep.subr.bf16.mxu0 0
  %1750 = vmatpush1.bf16.msra.mxu0 0
  %1751 = vmatprep.subr.bf16.mxu0 0
  %1752 = vmatpush1.bf16.msra.mxu0 0
  %1753 = vmatprep.subr.bf16.mxu0 0
  %1754 = vmatpush1.bf16.msra.mxu0 0
  %1755 = vmatprep.subr.bf16.mxu0 0
  %1756 = vmatpush1.bf16.msra.mxu0 0
  %1757 = vmatprep.subr.bf16.mxu0 0
  %1758 = vmatpush1.bf16.msra.mxu0 0
  %1759 = vmatprep.subr.bf16.mxu0 0
  %1760 = vmatpush1.bf16.msra.mxu0 0
  %1761 = vmatprep.subr.bf16.mxu0 0
  %1762 = vmatpush1.bf16.msra.mxu0 0
  %1763 = vmatprep.mubr.bf16.mxu0 0
  %1764 = vmatmul.mubr.bf16.gmra.mrb[0].mxu0 %v1720
  %v1765 = vpop.f32.mrb[0].mxu0
  %v1766 = vadd.f32 %v1717, %v1765
  %v1767 = vpop.f32.mrb[0].mxu0
  %v1768 = vpop.f32.mrb[0].mxu0
  %v1769 = vadd.f32 %v1717, %v1768
  %v1770 = vpop.f32.mrb[0].mxu0
  %1771 = vmatprep.mubr.bf16.mxu0 0
  %1772 = vmatmul.mubr.bf16.gmra.mrb[0].mxu0 %v1723
  %v1773 = vpop.f32.mrb[0].mxu0
  %v1774 = vadd.f32 %v1717, %v1773
  %v1775 = vpop.f32.mrb[0].mxu0
  %v1776 = vpop.f32.mrb[0].mxu0
  %v1777 = vadd.f32 %v1717, %v1776
  %v1778 = vpop.f32.mrb[0].mxu0
  %1779 = vmatprep.mubr.bf16.mxu0 0
  %1780 = vmatmul.mubr.bf16.gmra.mrb[0].mxu0 %v1726
  %v1781 = vpop.f32.mrb[0].mxu0
  %v1782 = vadd.f32 %v1717, %v1781
  %v1783 = vpop.f32.mrb[0].mxu0
  %v1784 = vpop.f32.mrb[0].mxu0
  %v1785 = vadd.f32 %v1717, %v1784
  %v1786 = vpop.f32.mrb[0].mxu0
  %1787 = vmatprep.mubr.bf16.mxu0 0
  %1788 = vmatmul.mubr.bf16.gmra.mrb[0].mxu0 %v1729
  %v1789 = vpop.f32.mrb[0].mxu0
  %v1790 = vadd.f32 %v1717, %v1789
  %v1791 = vpop.f32.mrb[0].mxu0
  %v1792 = vpop.f32.mrb[0].mxu0
  %v1793 = vadd.f32 %v1717, %v1792
  %v1794 = vpop.f32.mrb[0].mxu0
  %1795 = vdwg.mxu0
  %vm1796 = vcmp.gt.f32.partialorder %v1766, 0.0
  %vm1797 = vcmp.gt.f32.partialorder %v1769, 0.0
  %vm1798 = vcmp.gt.f32.partialorder %v1774, 0.0
  %vm1799 = vcmp.gt.f32.partialorder %v1777, 0.0
  %vm1800 = vcmp.gt.f32.partialorder %v1782, 0.0
  %vm1801 = vcmp.gt.f32.partialorder %v1785, 0.0
  %vm1802 = vcmp.gt.f32.partialorder %v1790, 0.0
  %vm1803 = vcmp.gt.f32.partialorder %v1793, 0.0
  %v1804 = vmin.f32 %v1766, 0.0
  %v1805 = vmin.f32 %v1769, 0.0
  %v1806 = vmin.f32 %v1774, 0.0
  %v1807 = vmin.f32 %v1777, 0.0
  %v1808 = vmin.f32 %v1782, 0.0
  %v1809 = vmin.f32 %v1785, 0.0
  %v1810 = vmin.f32 %v1790, 0.0
  %v1811 = vmin.f32 %v1793, 0.0
  %v1812 = vmul.f32 %v1804, 1.442695
  %v1813 = vpow.pop %v1812
  %v1814 = vmul.f32 %v1805, 1.442695
  %v1815 = vpow.pop %v1814
  %v1816 = vmul.f32 %v1806, 1.442695
  %v1817 = vpow.pop %v1816
  %v1818 = vmul.f32 %v1807, 1.442695
  %v1819 = vpow.pop %v1818
  %v1820 = vmul.f32 %v1808, 1.442695
  %v1821 = vpow.pop %v1820
  %v1822 = vmul.f32 %v1809, 1.442695
  %v1823 = vpow.pop %v1822
  %v1824 = vmul.f32 %v1810, 1.442695
  %v1825 = vpow.pop %v1824
  %v1826 = vmul.f32 %v1811, 1.442695
  %v1827 = vpow.pop %v1826
  %v1828 = vsub.f32 %v1813, 1.0
  %v1829 = vsub.f32 %v1815, 1.0
  %v1830 = vsub.f32 %v1817, 1.0
  %v1831 = vsub.f32 %v1819, 1.0
  %v1832 = vsub.f32 %v1821, 1.0
  %v1833 = vsub.f32 %v1823, 1.0
  %v1834 = vsub.f32 %v1825, 1.0
  %v1835 = vsub.f32 %v1827, 1.0
  %v1836 = vsel %vm1796, %v1766, %v1828
  %v1837 = vsel %vm1797, %v1769, %v1829
  %v1838 = vsel %vm1798, %v1774, %v1830
  %v1839 = vsel %vm1799, %v1777, %v1831
  %v1840 = vsel %vm1800, %v1782, %v1832
  %v1841 = vsel %vm1801, %v1785, %v1833
  %v1842 = vsel %vm1802, %v1790, %v1834
  %v1843 = vsel %vm1803, %v1793, %v1835
  %1852 = vrot.lane.b32.xlu0 %v1836, 32
  %v1853 = vpop.permute.xlu0 %1852
  %1854 = vrot.lane.b32.xlu0 %v1837, 32
  %v1855 = vpop.permute.xlu0 %1854
  %1856 = vrot.lane.b32.xlu0 %v1838, 32
  %v1857 = vpop.permute.xlu0 %1856
  %1858 = vrot.lane.b32.xlu0 %v1839, 32
  %v1859 = vpop.permute.xlu0 %1858
  %1860 = vrot.lane.b32.xlu0 %v1840, 32
  %v1861 = vpop.permute.xlu0 %1860
  %1862 = vrot.lane.b32.xlu0 %v1841, 32
  %v1863 = vpop.permute.xlu0 %1862
  %1864 = vrot.lane.b32.xlu0 %v1842, 32
  %v1865 = vpop.permute.xlu0 %1864
  %1866 = vrot.lane.b32.xlu0 %v1843, 32
  %v1867 = vpop.permute.xlu0 %1866
  %v1876 = vsel %vm1120, %v1496, %v1853
  %v1877 = vsel %vm1120, %v1497, %v1855
  %v1878 = vsel %vm1120, %v1498, %v1857
  %v1879 = vsel %vm1120, %v1499, %v1859
  %v1880 = vsel %vm1120, %v1500, %v1861
  %v1881 = vsel %vm1120, %v1501, %v1863
  %v1882 = vsel %vm1120, %v1502, %v1865
  %v1883 = vsel %vm1120, %v1503, %v1867
  %v1884 = vpack.c.bf16 %v1122, %v1121
  %v1885 = vpack.c.bf16 %v1124, %v1123
  %v1886 = vpack.c.bf16 %v1126, %v1125
  %v1887 = vpack.c.bf16 %v1128, %v1127
  %v1888 = vpack.c.bf16 %v1877, %v1876
  %v1889 = vpack.c.bf16 %v1879, %v1878
  %v1890 = vpack.c.bf16 %v1881, %v1880
  %v1891 = vpack.c.bf16 %v1883, %v1882
  %v1892 = vld [vmem:[%s6] sm:$0xf]
  %v1893 = vld [vmem:[%s6 + $0x4] sm:$0xf]
  %v1894 = vld [vmem:[%s6 + $0x8] sm:$0xf]
  %v1895 = vld [vmem:[%s6 + $0xc] sm:$0xf]
  %v1896 = vld [vmem:[%s6 + $0x10] sm:$0xf]
  %v1897 = vld [vmem:[%s6 + $0x14] sm:$0xf]
  %v1898 = vld [vmem:[%s6 + $0x18] sm:$0xf]
  %v1899 = vld [vmem:[%s6 + $0x1c] sm:$0xf]
  %v1900 = vld [vmem:[%s7] sm:$0x1]
  %v1902 = vlaneseq
  %v1903 = vshrl.u32 %v1902, 7
  %v1904 = vsub.s32 0, %v1903
  %v1905 = vrot.slane %v1900, %v1904
  %v1915 = vunpack.c.l.b16 %v1892
  %v1916 = vunpack.c.l.b16 %v1893
  %v1917 = vunpack.c.l.b16 %v1894
  %v1918 = vunpack.c.l.b16 %v1895
  %v1919 = vunpack.c.l.b16 %v1896
  %v1920 = vunpack.c.l.b16 %v1897
  %v1921 = vunpack.c.l.b16 %v1898
  %v1922 = vunpack.c.l.b16 %v1899
  %v1923 = vpack.c.b16 %v1916, %v1915
  %v1924 = vpack.c.b16 %v1918, %v1917
  %v1925 = vpack.c.b16 %v1920, %v1919
  %v1926 = vpack.c.b16 %v1922, %v1921
  %v1932 = vsel %vm111, %v1884, 0
  %v1935 = vsel %vm111, %v1885, 0
  %v1938 = vsel %vm111, %v1886, 0
  %v1941 = vsel %vm111, %v1887, 0
  %v1944 = vsel %vm111, %v1888, 0
  %v1947 = vsel %vm111, %v1889, 0
  %v1950 = vsel %vm111, %v1890, 0
  %v1953 = vsel %vm111, %v1891, 0
  %1955 = vmatprep.subr.bf16.mxu0 0
  %1956 = vmatpush1.bf16.msra.mxu0 %v1923
  %1957 = vmatprep.subr.bf16.mxu0 0
  %1958 = vmatpush1.bf16.msra.mxu0 %v1924
  %1959 = vmatprep.subr.bf16.mxu0 0
  %1960 = vmatpush1.bf16.msra.mxu0 %v1925
  %1961 = vmatprep.subr.bf16.mxu0 0
  %1962 = vmatpush1.bf16.msra.mxu0 %v1926
  %1963 = vmatprep.subr.bf16.mxu0 0
  %1964 = vmatpush1.bf16.msra.mxu0 0
  %1965 = vmatprep.subr.bf16.mxu0 0
  %1966 = vmatpush1.bf16.msra.mxu0 0
  %1967 = vmatprep.subr.bf16.mxu0 0
  %1968 = vmatpush1.bf16.msra.mxu0 0
  %1969 = vmatprep.subr.bf16.mxu0 0
  %1970 = vmatpush1.bf16.msra.mxu0 0
  %1971 = vmatprep.subr.bf16.mxu0 0
  %1972 = vmatpush1.bf16.msra.mxu0 0
  %1973 = vmatprep.subr.bf16.mxu0 0
  %1974 = vmatpush1.bf16.msra.mxu0 0
  %1975 = vmatprep.subr.bf16.mxu0 0
  %1976 = vmatpush1.bf16.msra.mxu0 0
  %1977 = vmatprep.subr.bf16.mxu0 0
  %1978 = vmatpush1.bf16.msra.mxu0 0
  %1979 = vmatprep.subr.bf16.mxu0 0
  %1980 = vmatpush1.bf16.msra.mxu0 0
  %1981 = vmatprep.subr.bf16.mxu0 0
  %1982 = vmatpush1.bf16.msra.mxu0 0
  %1983 = vmatprep.subr.bf16.mxu0 0
  %1984 = vmatpush1.bf16.msra.mxu0 0
  %1985 = vmatprep.subr.bf16.mxu0 0
  %1986 = vmatpush1.bf16.msra.mxu0 0
  %1987 = vmatprep.mubr.bf16.mxu0 0
  %1988 = vmatmul.mubr.bf16.gmra.mrb[0].mxu0 %v1932
  %v1989 = vpop.f32.mrb[0].mxu0
  %v1990 = vadd.f32 %v1905, %v1989
  %v1991 = vpop.f32.mrb[0].mxu0
  %v1992 = vpop.f32.mrb[0].mxu0
  %v1993 = vadd.f32 %v1905, %v1992
  %v1994 = vpop.f32.mrb[0].mxu0
  %1995 = vmatprep.mubr.bf16.mxu0 0
  %1996 = vmatmul.mubr.bf16.gmra.mrb[0].mxu0 %v1935
  %v1997 = vpop.f32.mrb[0].mxu0
  %v1998 = vadd.f32 %v1905, %v1997
  %v1999 = vpop.f32.mrb[0].mxu0
  %v2000 = vpop.f32.mrb[0].mxu0
  %v2001 = vadd.f32 %v1905, %v2000
  %v2002 = vpop.f32.mrb[0].mxu0
  %2003 = vmatprep.mubr.bf16.mxu0 0
  %2004 = vmatmul.mubr.bf16.gmra.mrb[0].mxu0 %v1938
  %v2005 = vpop.f32.mrb[0].mxu0
  %v2006 = vadd.f32 %v1905, %v2005
  %v2007 = vpop.f32.mrb[0].mxu0
  %v2008 = vpop.f32.mrb[0].mxu0
  %v2009 = vadd.f32 %v1905, %v2008
  %v2010 = vpop.f32.mrb[0].mxu0
  %2011 = vmatprep.mubr.bf16.mxu0 0
  %2012 = vmatmul.mubr.bf16.gmra.mrb[0].mxu0 %v1941
  %v2013 = vpop.f32.mrb[0].mxu0
  %v2014 = vadd.f32 %v1905, %v2013
  %v2015 = vpop.f32.mrb[0].mxu0
  %v2016 = vpop.f32.mrb[0].mxu0
  %v2017 = vadd.f32 %v1905, %v2016
  %v2018 = vpop.f32.mrb[0].mxu0
  %2019 = vmatprep.mubr.bf16.mxu0 0
  %2020 = vmatmul.mubr.bf16.gmra.mrb[0].mxu0 %v1944
  %v2021 = vpop.f32.mrb[0].mxu0
  %v2022 = vadd.f32 %v1905, %v2021
  %v2023 = vpop.f32.mrb[0].mxu0
  %v2024 = vpop.f32.mrb[0].mxu0
  %v2025 = vadd.f32 %v1905, %v2024
  %v2026 = vpop.f32.mrb[0].mxu0
  %2027 = vmatprep.mubr.bf16.mxu0 0
  %2028 = vmatmul.mubr.bf16.gmra.mrb[0].mxu0 %v1947
  %v2029 = vpop.f32.mrb[0].mxu0
  %v2030 = vadd.f32 %v1905, %v2029
  %v2031 = vpop.f32.mrb[0].mxu0
  %v2032 = vpop.f32.mrb[0].mxu0
  %v2033 = vadd.f32 %v1905, %v2032
  %v2034 = vpop.f32.mrb[0].mxu0
  %2035 = vmatprep.mubr.bf16.mxu0 0
  %2036 = vmatmul.mubr.bf16.gmra.mrb[0].mxu0 %v1950
  %v2037 = vpop.f32.mrb[0].mxu0
  %v2038 = vadd.f32 %v1905, %v2037
  %v2039 = vpop.f32.mrb[0].mxu0
  %v2040 = vpop.f32.mrb[0].mxu0
  %v2041 = vadd.f32 %v1905, %v2040
  %v2042 = vpop.f32.mrb[0].mxu0
  %2043 = vmatprep.mubr.bf16.mxu0 0
  %2044 = vmatmul.mubr.bf16.gmra.mrb[0].mxu0 %v1953
  %v2045 = vpop.f32.mrb[0].mxu0
  %v2046 = vadd.f32 %v1905, %v2045
  %v2047 = vpop.f32.mrb[0].mxu0
  %v2048 = vpop.f32.mrb[0].mxu0
  %v2049 = vadd.f32 %v1905, %v2048
  %v2050 = vpop.f32.mrb[0].mxu0
  %2051 = vdwg.mxu0
  %v2052 = vtanh.pop %v1990
  %v2053 = vtanh.pop %v1993
  %v2054 = vtanh.pop %v1998
  %v2055 = vtanh.pop %v2001
  %v2056 = vtanh.pop %v2006
  %v2057 = vtanh.pop %v2009
  %v2058 = vtanh.pop %v2014
  %v2059 = vtanh.pop %v2017
  %v2060 = vtanh.pop %v2022
  %v2061 = vtanh.pop %v2025
  %v2062 = vtanh.pop %v2030
  %v2063 = vtanh.pop %v2033
  %v2064 = vtanh.pop %v2038
  %v2065 = vtanh.pop %v2041
  %v2066 = vtanh.pop %v2046
  %v2067 = vtanh.pop %v2049
  %v2068 = vld [vmem:[%s8] sm:$0x1]
  %v2070 = vlaneseq
  %v2071 = vshrl.u32 %v2070, 7
  %v2072 = vsub.s32 0, %v2071
  %v2073 = vrot.slane %v2068, %v2072
  %v2075 = vmul.f32 %v2052, %v2073
  %v2076 = vmul.f32 %v2053, %v2073
  %v2077 = vmul.f32 %v2054, %v2073
  %v2078 = vmul.f32 %v2055, %v2073
  %v2079 = vmul.f32 %v2056, %v2073
  %v2080 = vmul.f32 %v2057, %v2073
  %v2081 = vmul.f32 %v2058, %v2073
  %v2082 = vmul.f32 %v2059, %v2073
  %v2083 = vmul.f32 %v2060, %v2073
  %v2084 = vmul.f32 %v2061, %v2073
  %v2085 = vmul.f32 %v2062, %v2073
  %v2086 = vmul.f32 %v2063, %v2073
  %v2087 = vmul.f32 %v2064, %v2073
  %v2088 = vmul.f32 %v2065, %v2073
  %v2089 = vmul.f32 %v2066, %v2073
  %v2090 = vmul.f32 %v2067, %v2073
  %2091 = vadd.xlane.f32.xlu0 %v2075
  %v2092 = vpop.xlane.xlu0 %2091
  %2093 = vadd.xlane.f32.xlu0 %v2076
  %v2094 = vpop.xlane.xlu0 %2093
  %2095 = vadd.xlane.f32.xlu0 %v2077
  %v2096 = vpop.xlane.xlu0 %2095
  %2097 = vadd.xlane.f32.xlu0 %v2078
  %v2098 = vpop.xlane.xlu0 %2097
  %2099 = vadd.xlane.f32.xlu0 %v2079
  %v2100 = vpop.xlane.xlu0 %2099
  %2101 = vadd.xlane.f32.xlu0 %v2080
  %v2102 = vpop.xlane.xlu0 %2101
  %2103 = vadd.xlane.f32.xlu0 %v2081
  %v2104 = vpop.xlane.xlu0 %2103
  %2105 = vadd.xlane.f32.xlu0 %v2082
  %v2106 = vpop.xlane.xlu0 %2105
  %2107 = vadd.xlane.f32.xlu0 %v2083
  %v2108 = vpop.xlane.xlu0 %2107
  %2109 = vadd.xlane.f32.xlu0 %v2084
  %v2110 = vpop.xlane.xlu0 %2109
  %2111 = vadd.xlane.f32.xlu0 %v2085
  %v2112 = vpop.xlane.xlu0 %2111
  %2113 = vadd.xlane.f32.xlu0 %v2086
  %v2114 = vpop.xlane.xlu0 %2113
  %2115 = vadd.xlane.f32.xlu0 %v2087
  %v2116 = vpop.xlane.xlu0 %2115
  %2117 = vadd.xlane.f32.xlu0 %v2088
  %v2118 = vpop.xlane.xlu0 %2117
  %2119 = vadd.xlane.f32.xlu0 %v2089
  %v2120 = vpop.xlane.xlu0 %2119
  %2121 = vadd.xlane.f32.xlu0 %v2090
  %v2122 = vpop.xlane.xlu0 %2121
  %v2123 = vadd.f32 %v2092, %v2094
  %v2124 = vadd.f32 %v2123, %v2096
  %v2125 = vadd.f32 %v2124, %v2098
  %v2126 = vadd.f32 %v2125, %v2100
  %v2127 = vadd.f32 %v2126, %v2102
  %v2128 = vadd.f32 %v2127, %v2104
  %v2129 = vadd.f32 %v2128, %v2106
  %v2130 = vrot.slane %v2129, 4
  %v2131 = vadd.f32 %v2129, %v2130
  %v2132 = vrot.slane %v2131, 2
  %v2133 = vadd.f32 %v2131, %v2132
  %v2134 = vrot.slane %v2133, 1
  %v2135 = vadd.f32 %v2133, %v2134
  %v2136 = vmul.f32 %v2135, 0.015625
  %v2137 = vadd.f32 %v2108, %v2110
  %v2138 = vadd.f32 %v2137, %v2112
  %v2139 = vadd.f32 %v2138, %v2114
  %v2140 = vadd.f32 %v2139, %v2116
  %v2141 = vadd.f32 %v2140, %v2118
  %v2142 = vadd.f32 %v2141, %v2120
  %v2143 = vadd.f32 %v2142, %v2122
  %v2144 = vrot.slane %v2143, 4
  %v2145 = vadd.f32 %v2143, %v2144
  %v2146 = vrot.slane %v2145, 2
  %v2147 = vadd.f32 %v2145, %v2146
  %v2148 = vrot.slane %v2147, 1
  %v2149 = vadd.f32 %v2147, %v2148
  %v2150 = vmul.f32 %v2149, 0.015625
  %v2151 = vmax.f32 %v2136, %v2150
  %v2152 = vsub.f32 %v2136, %v2151
  %v2153 = vmul.f32 %v2152, 1.442695
  %v2154 = vpow.pop %v2153
  %v2155 = vsub.f32 %v2150, %v2151
  %v2156 = vmul.f32 %v2155, 1.442695
  %v2157 = vpow.pop %v2156
  %v2158 = vadd.f32 %v2154, %v2157
  %v2159 = vrcp.pop %v2158
  %v2160 = vmul.f32 1.0, %v2159
  %v2161 = vmul.f32 %v2154, %v2160
  %v2162 = vmul.f32 %v2161, %v1121
  %v2163 = vmul.f32 %v2161, %v1122
  %v2164 = vmul.f32 %v2161, %v1123
  %v2165 = vmul.f32 %v2161, %v1124
  %v2166 = vmul.f32 %v2161, %v1125
  %v2167 = vmul.f32 %v2161, %v1126
  %v2168 = vmul.f32 %v2161, %v1127
  %v2169 = vmul.f32 %v2161, %v1128
  %v2170 = vmul.f32 %v2157, %v2160
  %v2171 = vmul.f32 %v2170, %v1876
  %v2172 = vmul.f32 %v2170, %v1877
  %v2173 = vmul.f32 %v2170, %v1878
  %v2174 = vmul.f32 %v2170, %v1879
  %v2175 = vmul.f32 %v2170, %v1880
  %v2176 = vmul.f32 %v2170, %v1881
  %v2177 = vmul.f32 %v2170, %v1882
  %v2178 = vmul.f32 %v2170, %v1883
  %v2179 = vadd.f32 %v2162, %v2171
  %v2180 = vadd.f32 %v2163, %v2172
  %v2181 = vadd.f32 %v2164, %v2173
  %v2182 = vadd.f32 %v2165, %v2174
  %v2183 = vadd.f32 %v2166, %v2175
  %v2184 = vadd.f32 %v2167, %v2176
  %v2185 = vadd.f32 %v2168, %v2177
  %v2186 = vadd.f32 %v2169, %v2178
  %v2187 = vpack.c.bf16 %v2180, %v2179
  %v2188 = vpack.c.bf16 %v2182, %v2181
  %v2189 = vpack.c.bf16 %v2184, %v2183
  %v2190 = vpack.c.bf16 %v2186, %v2185
  %v2191 = vld [vmem:[%s9] sm:$0xf]
  %v2192 = vld [vmem:[%s9 + $0x4] sm:$0xf]
  %v2193 = vld [vmem:[%s9 + $0x8] sm:$0xf]
  %v2194 = vld [vmem:[%s9 + $0xc] sm:$0xf]
  %v2195 = vld [vmem:[%s9 + $0x10] sm:$0xf]
  %v2196 = vld [vmem:[%s9 + $0x14] sm:$0xf]
  %v2197 = vld [vmem:[%s9 + $0x18] sm:$0xf]
  %v2198 = vld [vmem:[%s9 + $0x1c] sm:$0xf]
  %v2199 = vld [vmem:[%s10] sm:$0x1]
  %v2201 = vlaneseq
  %v2202 = vshrl.u32 %v2201, 7
  %v2203 = vsub.s32 0, %v2202
  %v2204 = vrot.slane %v2199, %v2203
  %v2214 = vunpack.c.l.b16 %v2191
  %v2215 = vunpack.c.l.b16 %v2192
  %v2216 = vunpack.c.l.b16 %v2193
  %v2217 = vunpack.c.l.b16 %v2194
  %v2218 = vunpack.c.l.b16 %v2195
  %v2219 = vunpack.c.l.b16 %v2196
  %v2220 = vunpack.c.l.b16 %v2197
  %v2221 = vunpack.c.l.b16 %v2198
  %v2222 = vpack.c.b16 %v2215, %v2214
  %v2223 = vpack.c.b16 %v2217, %v2216
  %v2224 = vpack.c.b16 %v2219, %v2218
  %v2225 = vpack.c.b16 %v2221, %v2220
  %v2231 = vsel %vm111, %v2187, 0
  %v2234 = vsel %vm111, %v2188, 0
  %v2237 = vsel %vm111, %v2189, 0
  %v2240 = vsel %vm111, %v2190, 0
  %2242 = vmatprep.subr.bf16.mxu0 0
  %2243 = vmatpush1.bf16.msra.mxu0 %v2222
  %2244 = vmatprep.subr.bf16.mxu0 0
  %2245 = vmatpush1.bf16.msra.mxu0 %v2223
  %2246 = vmatprep.subr.bf16.mxu0 0
  %2247 = vmatpush1.bf16.msra.mxu0 %v2224
  %2248 = vmatprep.subr.bf16.mxu0 0
  %2249 = vmatpush1.bf16.msra.mxu0 %v2225
  %2250 = vmatprep.subr.bf16.mxu0 0
  %2251 = vmatpush1.bf16.msra.mxu0 0
  %2252 = vmatprep.subr.bf16.mxu0 0
  %2253 = vmatpush1.bf16.msra.mxu0 0
  %2254 = vmatprep.subr.bf16.mxu0 0
  %2255 = vmatpush1.bf16.msra.mxu0 0
  %2256 = vmatprep.subr.bf16.mxu0 0
  %2257 = vmatpush1.bf16.msra.mxu0 0
  %2258 = vmatprep.subr.bf16.mxu0 0
  %2259 = vmatpush1.bf16.msra.mxu0 0
  %2260 = vmatprep.subr.bf16.mxu0 0
  %2261 = vmatpush1.bf16.msra.mxu0 0
  %2262 = vmatprep.subr.bf16.mxu0 0
  %2263 = vmatpush1.bf16.msra.mxu0 0
  %2264 = vmatprep.subr.bf16.mxu0 0
  %2265 = vmatpush1.bf16.msra.mxu0 0
  %2266 = vmatprep.subr.bf16.mxu0 0
  %2267 = vmatpush1.bf16.msra.mxu0 0
  %2268 = vmatprep.subr.bf16.mxu0 0
  %2269 = vmatpush1.bf16.msra.mxu0 0
  %2270 = vmatprep.subr.bf16.mxu0 0
  %2271 = vmatpush1.bf16.msra.mxu0 0
  %2272 = vmatprep.subr.bf16.mxu0 0
  %2273 = vmatpush1.bf16.msra.mxu0 0
  %2274 = vmatprep.mubr.bf16.mxu0 0
  %2275 = vmatmul.mubr.bf16.gmra.mrb[0].mxu0 %v2231
  %v2276 = vpop.f32.mrb[0].mxu0
  %v2277 = vadd.f32 %v2204, %v2276
  %v2278 = vpop.f32.mrb[0].mxu0
  %v2279 = vpop.f32.mrb[0].mxu0
  %v2280 = vadd.f32 %v2204, %v2279
  %v2281 = vpop.f32.mrb[0].mxu0
  %2282 = vmatprep.mubr.bf16.mxu0 0
  %2283 = vmatmul.mubr.bf16.gmra.mrb[0].mxu0 %v2234
  %v2284 = vpop.f32.mrb[0].mxu0
  %v2285 = vadd.f32 %v2204, %v2284
  %v2286 = vpop.f32.mrb[0].mxu0
  %v2287 = vpop.f32.mrb[0].mxu0
  %v2288 = vadd.f32 %v2204, %v2287
  %v2289 = vpop.f32.mrb[0].mxu0
  %2290 = vmatprep.mubr.bf16.mxu0 0
  %2291 = vmatmul.mubr.bf16.gmra.mrb[0].mxu0 %v2237
  %v2292 = vpop.f32.mrb[0].mxu0
  %v2293 = vadd.f32 %v2204, %v2292
  %v2294 = vpop.f32.mrb[0].mxu0
  %v2295 = vpop.f32.mrb[0].mxu0
  %v2296 = vadd.f32 %v2204, %v2295
  %v2297 = vpop.f32.mrb[0].mxu0
  %2298 = vmatprep.mubr.bf16.mxu0 0
  %2299 = vmatmul.mubr.bf16.gmra.mrb[0].mxu0 %v2240
  %v2300 = vpop.f32.mrb[0].mxu0
  %v2301 = vadd.f32 %v2204, %v2300
  %v2302 = vpop.f32.mrb[0].mxu0
  %v2303 = vpop.f32.mrb[0].mxu0
  %v2304 = vadd.f32 %v2204, %v2303
  %v2305 = vpop.f32.mrb[0].mxu0
  %2306 = vdwg.mxu0
  %v2307 = vld [vmem:[%s11] sm:$0xff]
  %v2308 = vld [vmem:[%s11 + $0x8] sm:$0xff]
  %v2309 = vld [vmem:[%s11 + $0x10] sm:$0xff]
  %v2310 = vld [vmem:[%s11 + $0x18] sm:$0xff]
  %v2311 = vld [vmem:[%s11 + $0x20] sm:$0xff]
  %v2312 = vld [vmem:[%s11 + $0x28] sm:$0xff]
  %v2313 = vld [vmem:[%s11 + $0x30] sm:$0xff]
  %v2314 = vld [vmem:[%s11 + $0x38] sm:$0xff]
  %v2315 = vld [vmem:[%s11 + $0x40] sm:$0xff]
  %v2316 = vld [vmem:[%s11 + $0x48] sm:$0xff]
  %v2317 = vld [vmem:[%s11 + $0x50] sm:$0xff]
  %v2318 = vld [vmem:[%s11 + $0x58] sm:$0xff]
  %v2319 = vld [vmem:[%s11 + $0x60] sm:$0xff]
  %v2320 = vld [vmem:[%s11 + $0x68] sm:$0xff]
  %v2321 = vld [vmem:[%s11 + $0x70] sm:$0xff]
  %v2322 = vld [vmem:[%s11 + $0x78] sm:$0xff]
  %v2323 = vld [vmem:[%s11 + $0x80] sm:$0xff]
  %v2324 = vld [vmem:[%s11 + $0x88] sm:$0xff]
  %v2325 = vld [vmem:[%s11 + $0x90] sm:$0xff]
  %v2326 = vld [vmem:[%s11 + $0x98] sm:$0xff]
  %v2327 = vld [vmem:[%s11 + $0xa0] sm:$0xff]
  %v2328 = vld [vmem:[%s11 + $0xa8] sm:$0xff]
  %v2329 = vld [vmem:[%s11 + $0xb0] sm:$0xff]
  %v2330 = vld [vmem:[%s11 + $0xb8] sm:$0xff]
  %v2331 = vld [vmem:[%s11 + $0xc0] sm:$0xff]
  %v2332 = vld [vmem:[%s11 + $0xc8] sm:$0xff]
  %v2333 = vld [vmem:[%s11 + $0xd0] sm:$0xff]
  %v2334 = vld [vmem:[%s11 + $0xd8] sm:$0xff]
  %v2335 = vld [vmem:[%s11 + $0xe0] sm:$0xff]
  %v2336 = vld [vmem:[%s11 + $0xe8] sm:$0xff]
  %v2337 = vld [vmem:[%s11 + $0xf0] sm:$0xff]
  %v2338 = vld [vmem:[%s11 + $0xf8] sm:$0xff]
  %2339 = vmatprep.subr.mxu0 %v2308
  %2340 = vmatpush1.msra.mxu0 %v2307
  %2341 = vmatprep.subr.mxu0 %v2310
  %2342 = vmatpush1.msra.mxu0 %v2309
  %2343 = vmatprep.subr.mxu0 %v2312
  %2344 = vmatpush1.msra.mxu0 %v2311
  %2345 = vmatprep.subr.mxu0 %v2314
  %2346 = vmatpush1.msra.mxu0 %v2313
  %2347 = vmatprep.subr.mxu0 %v2316
  %2348 = vmatpush1.msra.mxu0 %v2315
  %2349 = vmatprep.subr.mxu0 %v2318
  %2350 = vmatpush1.msra.mxu0 %v2317
  %2351 = vmatprep.subr.mxu0 %v2320
  %2352 = vmatpush1.msra.mxu0 %v2319
  %2353 = vmatprep.subr.mxu0 %v2322
  %2354 = vmatpush1.msra.mxu0 %v2321
  %2355 = vmatprep.subr.mxu0 %v2324
  %2356 = vmatpush1.msra.mxu0 %v2323
  %2357 = vmatprep.subr.mxu0 %v2326
  %2358 = vmatpush1.msra.mxu0 %v2325
  %2359 = vmatprep.subr.mxu0 %v2328
  %2360 = vmatpush1.msra.mxu0 %v2327
  %2361 = vmatprep.subr.mxu0 %v2330
  %2362 = vmatpush1.msra.mxu0 %v2329
  %2363 = vmatprep.subr.mxu0 %v2332
  %2364 = vmatpush1.msra.mxu0 %v2331
  %2365 = vmatprep.subr.mxu0 %v2334
  %2366 = vmatpush1.msra.mxu0 %v2333
  %2367 = vmatprep.subr.mxu0 %v2336
  %2368 = vmatpush1.msra.mxu0 %v2335
  %2369 = vmatprep.subr.mxu0 %v2338
  %2370 = vmatpush1.msra.mxu0 %v2337
  %2371 = vmatprep.subr.mxu0 0.0
  %2372 = vmatpush1.msra.mxu0 0.0
  %2373 = vmatprep.subr.mxu0 0.0
  %2374 = vmatpush1.msra.mxu0 0.0
  %2375 = vmatprep.subr.mxu0 0.0
  %2376 = vmatpush1.msra.mxu0 0.0
  %2377 = vmatprep.subr.mxu0 0.0
  %2378 = vmatpush1.msra.mxu0 0.0
  %2379 = vmatprep.subr.mxu0 0.0
  %2380 = vmatpush1.msra.mxu0 0.0
  %2381 = vmatprep.subr.mxu0 0.0
  %2382 = vmatpush1.msra.mxu0 0.0
  %2383 = vmatprep.subr.mxu0 0.0
  %2384 = vmatpush1.msra.mxu0 0.0
  %2385 = vmatprep.subr.mxu0 0.0
  %2386 = vmatpush1.msra.mxu0 0.0
  %2387 = vmatprep.subr.mxu0 0.0
  %2388 = vmatpush1.msra.mxu0 0.0
  %2389 = vmatprep.subr.mxu0 0.0
  %2390 = vmatpush1.msra.mxu0 0.0
  %2391 = vmatprep.subr.mxu0 0.0
  %2392 = vmatpush1.msra.mxu0 0.0
  %2393 = vmatprep.subr.mxu0 0.0
  %2394 = vmatpush1.msra.mxu0 0.0
  %2395 = vmatprep.subr.mxu0 0.0
  %2396 = vmatpush1.msra.mxu0 0.0
  %2397 = vmatprep.subr.mxu0 0.0
  %2398 = vmatpush1.msra.mxu0 0.0
  %2399 = vmatprep.subr.mxu0 0.0
  %2400 = vmatpush1.msra.mxu0 0.0
  %2401 = vmatprep.subr.mxu0 0.0
  %2402 = vmatpush1.msra.mxu0 0.0
  %2403 = vmatprep.mubr.f32.mxu0 0.0
  %2404 = vmatmul.mubr.f32.gmra.mrb[0].mxu0 %v2277
  %v2405 = vpop.f32.mrb[0].mxu0
  %v2406 = vadd.f32 0.0, %v2405
  %v2407 = vpop.f32.mrb[0].mxu0
  %v2408 = vadd.f32 0.0, %v2407
  %2409 = vmatprep.mubr.f32.mxu0 0.0
  %2410 = vmatmul.mubr.f32.gmra.mrb[0].mxu0 %v2280
  %v2411 = vpop.f32.mrb[0].mxu0
  %v2412 = vadd.f32 0.0, %v2411
  %v2413 = vpop.f32.mrb[0].mxu0
  %v2414 = vadd.f32 0.0, %v2413
  %2415 = vmatprep.mubr.f32.mxu0 0.0
  %2416 = vmatmul.mubr.f32.gmra.mrb[0].mxu0 %v2285
  %v2417 = vpop.f32.mrb[0].mxu0
  %v2418 = vadd.f32 0.0, %v2417
  %v2419 = vpop.f32.mrb[0].mxu0
  %v2420 = vadd.f32 0.0, %v2419
  %2421 = vmatprep.mubr.f32.mxu0 0.0
  %2422 = vmatmul.mubr.f32.gmra.mrb[0].mxu0 %v2288
  %v2423 = vpop.f32.mrb[0].mxu0
  %v2424 = vadd.f32 0.0, %v2423
  %v2425 = vpop.f32.mrb[0].mxu0
  %v2426 = vadd.f32 0.0, %v2425
  %2427 = vmatprep.mubr.f32.mxu0 0.0
  %2428 = vmatmul.mubr.f32.gmra.mrb[0].mxu0 %v2293
  %v2429 = vpop.f32.mrb[0].mxu0
  %v2430 = vadd.f32 0.0, %v2429
  %v2431 = vpop.f32.mrb[0].mxu0
  %v2432 = vadd.f32 0.0, %v2431
  %2433 = vmatprep.mubr.f32.mxu0 0.0
  %2434 = vmatmul.mubr.f32.gmra.mrb[0].mxu0 %v2296
  %v2435 = vpop.f32.mrb[0].mxu0
  %v2436 = vadd.f32 0.0, %v2435
  %v2437 = vpop.f32.mrb[0].mxu0
  %v2438 = vadd.f32 0.0, %v2437
  %2439 = vmatprep.mubr.f32.mxu0 0.0
  %2440 = vmatmul.mubr.f32.gmra.mrb[0].mxu0 %v2301
  %v2441 = vpop.f32.mrb[0].mxu0
  %v2442 = vadd.f32 0.0, %v2441
  %v2443 = vpop.f32.mrb[0].mxu0
  %v2444 = vadd.f32 0.0, %v2443
  %2445 = vmatprep.mubr.f32.mxu0 0.0
  %2446 = vmatmul.mubr.f32.gmra.mrb[0].mxu0 %v2304
  %v2447 = vpop.f32.mrb[0].mxu0
  %v2448 = vadd.f32 0.0, %v2447
  %v2449 = vpop.f32.mrb[0].mxu0
  %v2450 = vadd.f32 0.0, %v2449
  %2451 = vdwg.mxu0
  %2452 = vxpose.xlu0.b32.start [1/16] %v2406, 128
  %2453 = vxpose.xlu0.b32.cont [2/16] %v2412, 128
  %2454 = vxpose.xlu0.b32.cont [3/16] %v2418, 128
  %2455 = vxpose.xlu0.b32.cont [4/16] %v2424, 128
  %2456 = vxpose.xlu0.b32.cont [5/16] %v2430, 128
  %2457 = vxpose.xlu0.b32.cont [6/16] %v2436, 128
  %2458 = vxpose.xlu0.b32.cont [7/16] %v2442, 128
  %2459 = vxpose.xlu0.b32.cont [8/16] %v2448, 128
  %2460 = vxpose.xlu0.b32.cont [9/16] 0.0, 128
  %2461 = vxpose.xlu0.b32.cont [10/16] 0.0, 128
  %2462 = vxpose.xlu0.b32.cont [11/16] 0.0, 128
  %2463 = vxpose.xlu0.b32.cont [12/16] 0.0, 128
  %2464 = vxpose.xlu0.b32.cont [13/16] 0.0, 128
  %2465 = vxpose.xlu0.b32.cont [14/16] 0.0, 128
  %2466 = vxpose.xlu0.b32.cont [15/16] 0.0, 128
  %2467 = vxpose.xlu0.b32.end [16/16] 0.0, 128
  %v2468 = vpop.trf.xlu0
  %v2469 = vpop.trf.xlu0
  %v2470 = vpop.trf.xlu0
  %v2471 = vpop.trf.xlu0
  %v2472 = vpop.trf.xlu0
  %v2473 = vpop.trf.xlu0
  %v2474 = vpop.trf.xlu0
  %v2475 = vpop.trf.xlu0
  %v2476 = vpop.trf.xlu0
  %v2477 = vpop.trf.xlu0
  %v2478 = vpop.trf.xlu0
  %v2479 = vpop.trf.xlu0
  %v2480 = vpop.trf.xlu0
  %v2481 = vpop.trf.xlu0
  %v2482 = vpop.trf.xlu0
  %v2483 = vpop.trf.xlu0
  %2485 = vset.pattern.permute.xlu0 0
  %2486 = vperm.xlu0 %2485, %v2408
  %v2487 = vpop.permute.xlu0 %2486
  %2490 = vset.pattern.permute.xlu0 0
  %2491 = vperm.xlu0 %2490, %v2414
  %v2492 = vpop.permute.xlu0 %2491
  %2495 = vset.pattern.permute.xlu0 0
  %2496 = vperm.xlu0 %2495, %v2420
  %v2497 = vpop.permute.xlu0 %2496
  %2500 = vset.pattern.permute.xlu0 0
  %2501 = vperm.xlu0 %2500, %v2426
  %v2502 = vpop.permute.xlu0 %2501
  %2505 = vset.pattern.permute.xlu0 0
  %2506 = vperm.xlu0 %2505, %v2432
  %v2507 = vpop.permute.xlu0 %2506
  %2510 = vset.pattern.permute.xlu0 0
  %2511 = vperm.xlu0 %2510, %v2438
  %v2512 = vpop.permute.xlu0 %2511
  %2515 = vset.pattern.permute.xlu0 0
  %2516 = vperm.xlu0 %2515, %v2444
  %v2517 = vpop.permute.xlu0 %2516
  %2520 = vset.pattern.permute.xlu0 0
  %2521 = vperm.xlu0 %2520, %v2450
  %v2522 = vpop.permute.xlu0 %2521
  %v2524 = vlaneseq
  %v2525 = vshrl.u32 %v2524, 7
  %v2526 = vsub.s32 0, %v2525
  %v2527 = vrot.slane %v2468, %v2526
  %v2528 = vadd.f32 %v2487, %v2527
  %v2529 = vadd.f32 %v2492, %v2527
  %v2530 = vadd.f32 %v2497, %v2527
  %v2531 = vadd.f32 %v2502, %v2527
  %v2532 = vadd.f32 %v2507, %v2527
  %v2533 = vadd.f32 %v2512, %v2527
  %v2534 = vadd.f32 %v2517, %v2527
  %v2535 = vadd.f32 %v2522, %v2527
  %vm2536 = vcmp.gt.f32.partialorder %v2528, 0.0
  %vm2537 = vcmp.gt.f32.partialorder %v2529, 0.0
  %vm2538 = vcmp.gt.f32.partialorder %v2530, 0.0
  %vm2539 = vcmp.gt.f32.partialorder %v2531, 0.0
  %vm2540 = vcmp.gt.f32.partialorder %v2532, 0.0
  %vm2541 = vcmp.gt.f32.partialorder %v2533, 0.0
  %vm2542 = vcmp.gt.f32.partialorder %v2534, 0.0
  %vm2543 = vcmp.gt.f32.partialorder %v2535, 0.0
  %v2544 = vmul.f32 %v2528, 0.2
  %v2545 = vmul.f32 %v2529, 0.2
  %v2546 = vmul.f32 %v2530, 0.2
  %v2547 = vmul.f32 %v2531, 0.2
  %v2548 = vmul.f32 %v2532, 0.2
  %v2549 = vmul.f32 %v2533, 0.2
  %v2550 = vmul.f32 %v2534, 0.2
  %v2551 = vmul.f32 %v2535, 0.2
  %v2552 = vsel %vm2536, %v2528, %v2544
  %v2553 = vsel %vm2537, %v2529, %v2545
  %v2554 = vsel %vm2538, %v2530, %v2546
  %v2555 = vsel %vm2539, %v2531, %v2547
  %v2556 = vsel %vm2540, %v2532, %v2548
  %v2557 = vsel %vm2541, %v2533, %v2549
  %v2558 = vsel %vm2542, %v2534, %v2550
  %v2559 = vsel %vm2543, %v2535, %v2551
  %v2560 = vadd.f32 %v2552, %v392
  %v2561 = vadd.f32 %v2553, %v393
  %v2562 = vadd.f32 %v2554, %v394
  %v2563 = vadd.f32 %v2555, %v395
  %v2564 = vadd.f32 %v2556, %v396
  %v2565 = vadd.f32 %v2557, %v397
  %v2566 = vadd.f32 %v2558, %v398
  %v2567 = vadd.f32 %v2559, %v399
  %v2568 = vsel %vm111, %v2560, -inf
  %2569 = vmax.xlane.f32.xlu0 %v2568
  %v2570 = vpop.xlane.xlu0 %2569
  %v2571 = vsel %vm111, %v2561, -inf
  %2572 = vmax.xlane.f32.xlu0 %v2571
  %v2573 = vpop.xlane.xlu0 %2572
  %v2574 = vsel %vm111, %v2562, -inf
  %2575 = vmax.xlane.f32.xlu0 %v2574
  %v2576 = vpop.xlane.xlu0 %2575
  %v2577 = vsel %vm111, %v2563, -inf
  %2578 = vmax.xlane.f32.xlu0 %v2577
  %v2579 = vpop.xlane.xlu0 %2578
  %v2580 = vsel %vm111, %v2564, -inf
  %2581 = vmax.xlane.f32.xlu0 %v2580
  %v2582 = vpop.xlane.xlu0 %2581
  %v2583 = vsel %vm111, %v2565, -inf
  %2584 = vmax.xlane.f32.xlu0 %v2583
  %v2585 = vpop.xlane.xlu0 %2584
  %v2586 = vsel %vm111, %v2566, -inf
  %2587 = vmax.xlane.f32.xlu0 %v2586
  %v2588 = vpop.xlane.xlu0 %2587
  %v2589 = vsel %vm111, %v2567, -inf
  %2590 = vmax.xlane.f32.xlu0 %v2589
  %v2591 = vpop.xlane.xlu0 %2590
  %v2592 = vmax.f32 %v2570, -10000.0
  %v2593 = vmax.f32 %v2573, -10000.0
  %v2594 = vmax.f32 %v2576, -10000.0
  %v2595 = vmax.f32 %v2579, -10000.0
  %v2596 = vmax.f32 %v2582, -10000.0
  %v2597 = vmax.f32 %v2585, -10000.0
  %v2598 = vmax.f32 %v2588, -10000.0
  %v2599 = vmax.f32 %v2591, -10000.0
  %v2600 = vsub.f32 %v2560, %v2592
  %v2601 = vsub.f32 %v2561, %v2593
  %v2602 = vsub.f32 %v2562, %v2594
  %v2603 = vsub.f32 %v2563, %v2595
  %v2604 = vsub.f32 %v2564, %v2596
  %v2605 = vsub.f32 %v2565, %v2597
  %v2606 = vsub.f32 %v2566, %v2598
  %v2607 = vsub.f32 %v2567, %v2599
  %v2608 = vmul.f32 %v2600, 1.442695
  %v2609 = vpow.pop %v2608
  %v2610 = vmul.f32 %v2601, 1.442695
  %v2611 = vpow.pop %v2610
  %v2612 = vmul.f32 %v2602, 1.442695
  %v2613 = vpow.pop %v2612
  %v2614 = vmul.f32 %v2603, 1.442695
  %v2615 = vpow.pop %v2614
  %v2616 = vmul.f32 %v2604, 1.442695
  %v2617 = vpow.pop %v2616
  %v2618 = vmul.f32 %v2605, 1.442695
  %v2619 = vpow.pop %v2618
  %v2620 = vmul.f32 %v2606, 1.442695
  %v2621 = vpow.pop %v2620
  %v2622 = vmul.f32 %v2607, 1.442695
  %v2623 = vpow.pop %v2622
  %v2624 = vsel %vm111, %v2609, 0.0
  %2625 = vadd.xlane.f32.xlu0 %v2624
  %v2626 = vpop.xlane.xlu0 %2625
  %v2627 = vsel %vm111, %v2611, 0.0
  %2628 = vadd.xlane.f32.xlu0 %v2627
  %v2629 = vpop.xlane.xlu0 %2628
  %v2630 = vsel %vm111, %v2613, 0.0
  %2631 = vadd.xlane.f32.xlu0 %v2630
  %v2632 = vpop.xlane.xlu0 %2631
  %v2633 = vsel %vm111, %v2615, 0.0
  %2634 = vadd.xlane.f32.xlu0 %v2633
  %v2635 = vpop.xlane.xlu0 %2634
  %v2636 = vsel %vm111, %v2617, 0.0
  %2637 = vadd.xlane.f32.xlu0 %v2636
  %v2638 = vpop.xlane.xlu0 %2637
  %v2639 = vsel %vm111, %v2619, 0.0
  %2640 = vadd.xlane.f32.xlu0 %v2639
  %v2641 = vpop.xlane.xlu0 %2640
  %v2642 = vsel %vm111, %v2621, 0.0
  %2643 = vadd.xlane.f32.xlu0 %v2642
  %v2644 = vpop.xlane.xlu0 %2643
  %v2645 = vsel %vm111, %v2623, 0.0
  %2646 = vadd.xlane.f32.xlu0 %v2645
  %v2647 = vpop.xlane.xlu0 %2646
  %vm2648 = vcmp.eq.f32.partialorder %v2626, 0.0
  %vm2649 = vcmp.eq.f32.partialorder %v2629, 0.0
  %vm2650 = vcmp.eq.f32.partialorder %v2632, 0.0
  %vm2651 = vcmp.eq.f32.partialorder %v2635, 0.0
  %vm2652 = vcmp.eq.f32.partialorder %v2638, 0.0
  %vm2653 = vcmp.eq.f32.partialorder %v2641, 0.0
  %vm2654 = vcmp.eq.f32.partialorder %v2644, 0.0
  %vm2655 = vcmp.eq.f32.partialorder %v2647, 0.0
  %v2656 = vsel %vm2648, 1.0, %v2626
  %v2657 = vsel %vm2649, 1.0, %v2629
  %v2658 = vsel %vm2650, 1.0, %v2632
  %v2659 = vsel %vm2651, 1.0, %v2635
  %v2660 = vsel %vm2652, 1.0, %v2638
  %v2661 = vsel %vm2653, 1.0, %v2641
  %v2662 = vsel %vm2654, 1.0, %v2644
  %v2663 = vsel %vm2655, 1.0, %v2647
  %v2664 = vrcp.pop %v2656
  %v2665 = vmul.f32 1.0, %v2664
  %v2666 = vrcp.pop %v2657
  %v2667 = vmul.f32 1.0, %v2666
  %v2668 = vrcp.pop %v2658
  %v2669 = vmul.f32 1.0, %v2668
  %v2670 = vrcp.pop %v2659
  %v2671 = vmul.f32 1.0, %v2670
  %v2672 = vrcp.pop %v2660
  %v2673 = vmul.f32 1.0, %v2672
  %v2674 = vrcp.pop %v2661
  %v2675 = vmul.f32 1.0, %v2674
  %v2676 = vrcp.pop %v2662
  %v2677 = vmul.f32 1.0, %v2676
  %v2678 = vrcp.pop %v2663
  %v2679 = vmul.f32 1.0, %v2678
  %v2680 = vmul.f32 %v2609, %v2665
  %v2681 = vmul.f32 %v2611, %v2667
  %v2682 = vmul.f32 %v2613, %v2669
  %v2683 = vmul.f32 %v2615, %v2671
  %v2684 = vmul.f32 %v2617, %v2673
  %v2685 = vmul.f32 %v2619, %v2675
  %v2686 = vmul.f32 %v2621, %v2677
  %v2687 = vmul.f32 %v2623, %v2679
  %v2688 = vpack.c.bf16 %v2681, %v2680
  %v2689 = vpack.c.bf16 %v2683, %v2682
  %v2690 = vpack.c.bf16 %v2685, %v2684
  %v2691 = vpack.c.bf16 %v2687, %v2686
  %v2692 = vpack.c.bf16 %v2280, %v2277
  %v2693 = vpack.c.bf16 %v2288, %v2285
  %v2694 = vpack.c.bf16 %v2296, %v2293
  %v2695 = vpack.c.bf16 %v2304, %v2301
  %v2696 = vld [vmem:[%s12] sm:$0x1]
  %v2698 = vlaneseq
  %v2699 = vshrl.u32 %v2698, 7
  %v2700 = vsub.s32 0, %v2699
  %v2701 = vrot.slane %v2696, %v2700
  %v2704 = vsel %vm111, %v2688, 0
  %v2707 = vsel %vm111, %v2689, 0
  %v2710 = vsel %vm111, %v2690, 0
  %v2713 = vsel %vm111, %v2691, 0
  %2715 = vmatprep.subr.bf16.mxu0 0
  %2716 = vmatpush1.bf16.msra.mxu0 %v2692
  %2717 = vmatprep.subr.bf16.mxu0 0
  %2718 = vmatpush1.bf16.msra.mxu0 %v2693
  %2719 = vmatprep.subr.bf16.mxu0 0
  %2720 = vmatpush1.bf16.msra.mxu0 %v2694
  %2721 = vmatprep.subr.bf16.mxu0 0
  %2722 = vmatpush1.bf16.msra.mxu0 %v2695
  %2723 = vmatprep.subr.bf16.mxu0 0
  %2724 = vmatpush1.bf16.msra.mxu0 0
  %2725 = vmatprep.subr.bf16.mxu0 0
  %2726 = vmatpush1.bf16.msra.mxu0 0
  %2727 = vmatprep.subr.bf16.mxu0 0
  %2728 = vmatpush1.bf16.msra.mxu0 0
  %2729 = vmatprep.subr.bf16.mxu0 0
  %2730 = vmatpush1.bf16.msra.mxu0 0
  %2731 = vmatprep.subr.bf16.mxu0 0
  %2732 = vmatpush1.bf16.msra.mxu0 0
  %2733 = vmatprep.subr.bf16.mxu0 0
  %2734 = vmatpush1.bf16.msra.mxu0 0
  %2735 = vmatprep.subr.bf16.mxu0 0
  %2736 = vmatpush1.bf16.msra.mxu0 0
  %2737 = vmatprep.subr.bf16.mxu0 0
  %2738 = vmatpush1.bf16.msra.mxu0 0
  %2739 = vmatprep.subr.bf16.mxu0 0
  %2740 = vmatpush1.bf16.msra.mxu0 0
  %2741 = vmatprep.subr.bf16.mxu0 0
  %2742 = vmatpush1.bf16.msra.mxu0 0
  %2743 = vmatprep.subr.bf16.mxu0 0
  %2744 = vmatpush1.bf16.msra.mxu0 0
  %2745 = vmatprep.subr.bf16.mxu0 0
  %2746 = vmatpush1.bf16.msra.mxu0 0
  %2747 = vmatprep.mubr.bf16.mxu0 0
  %2748 = vmatmul.mubr.bf16.gmra.mrb[0].mxu0 %v2704
  %v2749 = vpop.f32.mrb[0].mxu0
  %v2750 = vadd.f32 %v2701, %v2749
  %v2751 = vpop.f32.mrb[0].mxu0
  %v2752 = vpop.f32.mrb[0].mxu0
  %v2753 = vadd.f32 %v2701, %v2752
  %v2754 = vpop.f32.mrb[0].mxu0
  %2755 = vmatprep.mubr.bf16.mxu0 0
  %2756 = vmatmul.mubr.bf16.gmra.mrb[0].mxu0 %v2707
  %v2757 = vpop.f32.mrb[0].mxu0
  %v2758 = vadd.f32 %v2701, %v2757
  %v2759 = vpop.f32.mrb[0].mxu0
  %v2760 = vpop.f32.mrb[0].mxu0
  %v2761 = vadd.f32 %v2701, %v2760
  %v2762 = vpop.f32.mrb[0].mxu0
  %2763 = vmatprep.mubr.bf16.mxu0 0
  %2764 = vmatmul.mubr.bf16.gmra.mrb[0].mxu0 %v2710
  %v2765 = vpop.f32.mrb[0].mxu0
  %v2766 = vadd.f32 %v2701, %v2765
  %v2767 = vpop.f32.mrb[0].mxu0
  %v2768 = vpop.f32.mrb[0].mxu0
  %v2769 = vadd.f32 %v2701, %v2768
  %v2770 = vpop.f32.mrb[0].mxu0
  %2771 = vmatprep.mubr.bf16.mxu0 0
  %2772 = vmatmul.mubr.bf16.gmra.mrb[0].mxu0 %v2713
  %v2773 = vpop.f32.mrb[0].mxu0
  %v2774 = vadd.f32 %v2701, %v2773
  %v2775 = vpop.f32.mrb[0].mxu0
  %v2776 = vpop.f32.mrb[0].mxu0
  %v2777 = vadd.f32 %v2701, %v2776
  %v2778 = vpop.f32.mrb[0].mxu0
  %2779 = vdwg.mxu0
  %vm2780 = vcmp.gt.f32.partialorder %v2750, 0.0
  %vm2781 = vcmp.gt.f32.partialorder %v2753, 0.0
  %vm2782 = vcmp.gt.f32.partialorder %v2758, 0.0
  %vm2783 = vcmp.gt.f32.partialorder %v2761, 0.0
  %vm2784 = vcmp.gt.f32.partialorder %v2766, 0.0
  %vm2785 = vcmp.gt.f32.partialorder %v2769, 0.0
  %vm2786 = vcmp.gt.f32.partialorder %v2774, 0.0
  %vm2787 = vcmp.gt.f32.partialorder %v2777, 0.0
  %v2788 = vmin.f32 %v2750, 0.0
  %v2789 = vmin.f32 %v2753, 0.0
  %v2790 = vmin.f32 %v2758, 0.0
  %v2791 = vmin.f32 %v2761, 0.0
  %v2792 = vmin.f32 %v2766, 0.0
  %v2793 = vmin.f32 %v2769, 0.0
  %v2794 = vmin.f32 %v2774, 0.0
  %v2795 = vmin.f32 %v2777, 0.0
  %v2796 = vmul.f32 %v2788, 1.442695
  %v2797 = vpow.pop %v2796
  %v2798 = vmul.f32 %v2789, 1.442695
  %v2799 = vpow.pop %v2798
  %v2800 = vmul.f32 %v2790, 1.442695
  %v2801 = vpow.pop %v2800
  %v2802 = vmul.f32 %v2791, 1.442695
  %v2803 = vpow.pop %v2802
  %v2804 = vmul.f32 %v2792, 1.442695
  %v2805 = vpow.pop %v2804
  %v2806 = vmul.f32 %v2793, 1.442695
  %v2807 = vpow.pop %v2806
  %v2808 = vmul.f32 %v2794, 1.442695
  %v2809 = vpow.pop %v2808
  %v2810 = vmul.f32 %v2795, 1.442695
  %v2811 = vpow.pop %v2810
  %v2812 = vsub.f32 %v2797, 1.0
  %v2813 = vsub.f32 %v2799, 1.0
  %v2814 = vsub.f32 %v2801, 1.0
  %v2815 = vsub.f32 %v2803, 1.0
  %v2816 = vsub.f32 %v2805, 1.0
  %v2817 = vsub.f32 %v2807, 1.0
  %v2818 = vsub.f32 %v2809, 1.0
  %v2819 = vsub.f32 %v2811, 1.0
  %v2820 = vsel %vm2780, %v2750, %v2812
  %v2821 = vsel %vm2781, %v2753, %v2813
  %v2822 = vsel %vm2782, %v2758, %v2814
  %v2823 = vsel %vm2783, %v2761, %v2815
  %v2824 = vsel %vm2784, %v2766, %v2816
  %v2825 = vsel %vm2785, %v2769, %v2817
  %v2826 = vsel %vm2786, %v2774, %v2818
  %v2827 = vsel %vm2787, %v2777, %v2819
  %2828 = vset.pattern.permute.xlu0 1
  %2829 = vperm.xlu0 %2828, %v2408
  %v2830 = vpop.permute.xlu0 %2829
  %2832 = vset.pattern.permute.xlu0 1
  %2833 = vperm.xlu0 %2832, %v2414
  %v2834 = vpop.permute.xlu0 %2833
  %2836 = vset.pattern.permute.xlu0 1
  %2837 = vperm.xlu0 %2836, %v2420
  %v2838 = vpop.permute.xlu0 %2837
  %2840 = vset.pattern.permute.xlu0 1
  %2841 = vperm.xlu0 %2840, %v2426
  %v2842 = vpop.permute.xlu0 %2841
  %2844 = vset.pattern.permute.xlu0 1
  %2845 = vperm.xlu0 %2844, %v2432
  %v2846 = vpop.permute.xlu0 %2845
  %2848 = vset.pattern.permute.xlu0 1
  %2849 = vperm.xlu0 %2848, %v2438
  %v2850 = vpop.permute.xlu0 %2849
  %2852 = vset.pattern.permute.xlu0 1
  %2853 = vperm.xlu0 %2852, %v2444
  %v2854 = vpop.permute.xlu0 %2853
  %2856 = vset.pattern.permute.xlu0 1
  %2857 = vperm.xlu0 %2856, %v2450
  %v2858 = vpop.permute.xlu0 %2857
  %v2860 = vlaneseq
  %v2861 = vshrl.u32 %v2860, 7
  %v2862 = vsub.s32 1, %v2861
  %v2863 = vrot.slane %v2468, %v2862
  %v2864 = vadd.f32 %v2830, %v2863
  %v2865 = vadd.f32 %v2834, %v2863
  %v2866 = vadd.f32 %v2838, %v2863
  %v2867 = vadd.f32 %v2842, %v2863
  %v2868 = vadd.f32 %v2846, %v2863
  %v2869 = vadd.f32 %v2850, %v2863
  %v2870 = vadd.f32 %v2854, %v2863
  %v2871 = vadd.f32 %v2858, %v2863
  %vm2872 = vcmp.gt.f32.partialorder %v2864, 0.0
  %vm2873 = vcmp.gt.f32.partialorder %v2865, 0.0
  %vm2874 = vcmp.gt.f32.partialorder %v2866, 0.0
  %vm2875 = vcmp.gt.f32.partialorder %v2867, 0.0
  %vm2876 = vcmp.gt.f32.partialorder %v2868, 0.0
  %vm2877 = vcmp.gt.f32.partialorder %v2869, 0.0
  %vm2878 = vcmp.gt.f32.partialorder %v2870, 0.0
  %vm2879 = vcmp.gt.f32.partialorder %v2871, 0.0
  %v2880 = vmul.f32 %v2864, 0.2
  %v2881 = vmul.f32 %v2865, 0.2
  %v2882 = vmul.f32 %v2866, 0.2
  %v2883 = vmul.f32 %v2867, 0.2
  %v2884 = vmul.f32 %v2868, 0.2
  %v2885 = vmul.f32 %v2869, 0.2
  %v2886 = vmul.f32 %v2870, 0.2
  %v2887 = vmul.f32 %v2871, 0.2
  %v2888 = vsel %vm2872, %v2864, %v2880
  %v2889 = vsel %vm2873, %v2865, %v2881
  %v2890 = vsel %vm2874, %v2866, %v2882
  %v2891 = vsel %vm2875, %v2867, %v2883
  %v2892 = vsel %vm2876, %v2868, %v2884
  %v2893 = vsel %vm2877, %v2869, %v2885
  %v2894 = vsel %vm2878, %v2870, %v2886
  %v2895 = vsel %vm2879, %v2871, %v2887
  %v2896 = vadd.f32 %v2888, %v392
  %v2897 = vadd.f32 %v2889, %v393
  %v2898 = vadd.f32 %v2890, %v394
  %v2899 = vadd.f32 %v2891, %v395
  %v2900 = vadd.f32 %v2892, %v396
  %v2901 = vadd.f32 %v2893, %v397
  %v2902 = vadd.f32 %v2894, %v398
  %v2903 = vadd.f32 %v2895, %v399
  %v2904 = vsel %vm111, %v2896, -inf
  %2905 = vmax.xlane.f32.xlu0 %v2904
  %v2906 = vpop.xlane.xlu0 %2905
  %v2907 = vsel %vm111, %v2897, -inf
  %2908 = vmax.xlane.f32.xlu0 %v2907
  %v2909 = vpop.xlane.xlu0 %2908
  %v2910 = vsel %vm111, %v2898, -inf
  %2911 = vmax.xlane.f32.xlu0 %v2910
  %v2912 = vpop.xlane.xlu0 %2911
  %v2913 = vsel %vm111, %v2899, -inf
  %2914 = vmax.xlane.f32.xlu0 %v2913
  %v2915 = vpop.xlane.xlu0 %2914
  %v2916 = vsel %vm111, %v2900, -inf
  %2917 = vmax.xlane.f32.xlu0 %v2916
  %v2918 = vpop.xlane.xlu0 %2917
  %v2919 = vsel %vm111, %v2901, -inf
  %2920 = vmax.xlane.f32.xlu0 %v2919
  %v2921 = vpop.xlane.xlu0 %2920
  %v2922 = vsel %vm111, %v2902, -inf
  %2923 = vmax.xlane.f32.xlu0 %v2922
  %v2924 = vpop.xlane.xlu0 %2923
  %v2925 = vsel %vm111, %v2903, -inf
  %2926 = vmax.xlane.f32.xlu0 %v2925
  %v2927 = vpop.xlane.xlu0 %2926
  %v2928 = vmax.f32 %v2906, -10000.0
  %v2929 = vmax.f32 %v2909, -10000.0
  %v2930 = vmax.f32 %v2912, -10000.0
  %v2931 = vmax.f32 %v2915, -10000.0
  %v2932 = vmax.f32 %v2918, -10000.0
  %v2933 = vmax.f32 %v2921, -10000.0
  %v2934 = vmax.f32 %v2924, -10000.0
  %v2935 = vmax.f32 %v2927, -10000.0
  %v2936 = vsub.f32 %v2896, %v2928
  %v2937 = vsub.f32 %v2897, %v2929
  %v2938 = vsub.f32 %v2898, %v2930
  %v2939 = vsub.f32 %v2899, %v2931
  %v2940 = vsub.f32 %v2900, %v2932
  %v2941 = vsub.f32 %v2901, %v2933
  %v2942 = vsub.f32 %v2902, %v2934
  %v2943 = vsub.f32 %v2903, %v2935
  %v2944 = vmul.f32 %v2936, 1.442695
  %v2945 = vpow.pop %v2944
  %v2946 = vmul.f32 %v2937, 1.442695
  %v2947 = vpow.pop %v2946
  %v2948 = vmul.f32 %v2938, 1.442695
  %v2949 = vpow.pop %v2948
  %v2950 = vmul.f32 %v2939, 1.442695
  %v2951 = vpow.pop %v2950
  %v2952 = vmul.f32 %v2940, 1.442695
  %v2953 = vpow.pop %v2952
  %v2954 = vmul.f32 %v2941, 1.442695
  %v2955 = vpow.pop %v2954
  %v2956 = vmul.f32 %v2942, 1.442695
  %v2957 = vpow.pop %v2956
  %v2958 = vmul.f32 %v2943, 1.442695
  %v2959 = vpow.pop %v2958
  %v2960 = vsel %vm111, %v2945, 0.0
  %2961 = vadd.xlane.f32.xlu0 %v2960
  %v2962 = vpop.xlane.xlu0 %2961
  %v2963 = vsel %vm111, %v2947, 0.0
  %2964 = vadd.xlane.f32.xlu0 %v2963
  %v2965 = vpop.xlane.xlu0 %2964
  %v2966 = vsel %vm111, %v2949, 0.0
  %2967 = vadd.xlane.f32.xlu0 %v2966
  %v2968 = vpop.xlane.xlu0 %2967
  %v2969 = vsel %vm111, %v2951, 0.0
  %2970 = vadd.xlane.f32.xlu0 %v2969
  %v2971 = vpop.xlane.xlu0 %2970
  %v2972 = vsel %vm111, %v2953, 0.0
  %2973 = vadd.xlane.f32.xlu0 %v2972
  %v2974 = vpop.xlane.xlu0 %2973
  %v2975 = vsel %vm111, %v2955, 0.0
  %2976 = vadd.xlane.f32.xlu0 %v2975
  %v2977 = vpop.xlane.xlu0 %2976
  %v2978 = vsel %vm111, %v2957, 0.0
  %2979 = vadd.xlane.f32.xlu0 %v2978
  %v2980 = vpop.xlane.xlu0 %2979
  %v2981 = vsel %vm111, %v2959, 0.0
  %2982 = vadd.xlane.f32.xlu0 %v2981
  %v2983 = vpop.xlane.xlu0 %2982
  %vm2984 = vcmp.eq.f32.partialorder %v2962, 0.0
  %vm2985 = vcmp.eq.f32.partialorder %v2965, 0.0
  %vm2986 = vcmp.eq.f32.partialorder %v2968, 0.0
  %vm2987 = vcmp.eq.f32.partialorder %v2971, 0.0
  %vm2988 = vcmp.eq.f32.partialorder %v2974, 0.0
  %vm2989 = vcmp.eq.f32.partialorder %v2977, 0.0
  %vm2990 = vcmp.eq.f32.partialorder %v2980, 0.0
  %vm2991 = vcmp.eq.f32.partialorder %v2983, 0.0
  %v2992 = vsel %vm2984, 1.0, %v2962
  %v2993 = vsel %vm2985, 1.0, %v2965
  %v2994 = vsel %vm2986, 1.0, %v2968
  %v2995 = vsel %vm2987, 1.0, %v2971
  %v2996 = vsel %vm2988, 1.0, %v2974
  %v2997 = vsel %vm2989, 1.0, %v2977
  %v2998 = vsel %vm2990, 1.0, %v2980
  %v2999 = vsel %vm2991, 1.0, %v2983
  %v3000 = vrcp.pop %v2992
  %v3001 = vmul.f32 1.0, %v3000
  %v3002 = vrcp.pop %v2993
  %v3003 = vmul.f32 1.0, %v3002
  %v3004 = vrcp.pop %v2994
  %v3005 = vmul.f32 1.0, %v3004
  %v3006 = vrcp.pop %v2995
  %v3007 = vmul.f32 1.0, %v3006
  %v3008 = vrcp.pop %v2996
  %v3009 = vmul.f32 1.0, %v3008
  %v3010 = vrcp.pop %v2997
  %v3011 = vmul.f32 1.0, %v3010
  %v3012 = vrcp.pop %v2998
  %v3013 = vmul.f32 1.0, %v3012
  %v3014 = vrcp.pop %v2999
  %v3015 = vmul.f32 1.0, %v3014
  %v3016 = vmul.f32 %v2945, %v3001
  %v3017 = vmul.f32 %v2947, %v3003
  %v3018 = vmul.f32 %v2949, %v3005
  %v3019 = vmul.f32 %v2951, %v3007
  %v3020 = vmul.f32 %v2953, %v3009
  %v3021 = vmul.f32 %v2955, %v3011
  %v3022 = vmul.f32 %v2957, %v3013
  %v3023 = vmul.f32 %v2959, %v3015
  %v3024 = vpack.c.bf16 %v3017, %v3016
  %v3025 = vpack.c.bf16 %v3019, %v3018
  %v3026 = vpack.c.bf16 %v3021, %v3020
  %v3027 = vpack.c.bf16 %v3023, %v3022
  %3032 = vrot.lane.b32.xlu0 %v2692, 96
  %v3033 = vpop.permute.xlu0 %3032
  %3034 = vrot.lane.b32.xlu0 %v2693, 96
  %v3035 = vpop.permute.xlu0 %3034
  %3036 = vrot.lane.b32.xlu0 %v2694, 96
  %v3037 = vpop.permute.xlu0 %3036
  %3038 = vrot.lane.b32.xlu0 %v2695, 96
  %v3039 = vpop.permute.xlu0 %3038
  %3044 = vrot.lane.b32.xlu0 %v2701, 96
  %v3045 = vpop.permute.xlu0 %3044
  %v3048 = vsel %vm111, %v3024, 0
  %v3051 = vsel %vm111, %v3025, 0
  %v3054 = vsel %vm111, %v3026, 0
  %v3057 = vsel %vm111, %v3027, 0
  %3059 = vmatprep.subr.bf16.mxu0 0
  %3060 = vmatpush1.bf16.msra.mxu0 %v3033
  %3061 = vmatprep.subr.bf16.mxu0 0
  %3062 = vmatpush1.bf16.msra.mxu0 %v3035
  %3063 = vmatprep.subr.bf16.mxu0 0
  %3064 = vmatpush1.bf16.msra.mxu0 %v3037
  %3065 = vmatprep.subr.bf16.mxu0 0
  %3066 = vmatpush1.bf16.msra.mxu0 %v3039
  %3067 = vmatprep.subr.bf16.mxu0 0
  %3068 = vmatpush1.bf16.msra.mxu0 0
  %3069 = vmatprep.subr.bf16.mxu0 0
  %3070 = vmatpush1.bf16.msra.mxu0 0
  %3071 = vmatprep.subr.bf16.mxu0 0
  %3072 = vmatpush1.bf16.msra.mxu0 0
  %3073 = vmatprep.subr.bf16.mxu0 0
  %3074 = vmatpush1.bf16.msra.mxu0 0
  %3075 = vmatprep.subr.bf16.mxu0 0
  %3076 = vmatpush1.bf16.msra.mxu0 0
  %3077 = vmatprep.subr.bf16.mxu0 0
  %3078 = vmatpush1.bf16.msra.mxu0 0
  %3079 = vmatprep.subr.bf16.mxu0 0
  %3080 = vmatpush1.bf16.msra.mxu0 0
  %3081 = vmatprep.subr.bf16.mxu0 0
  %3082 = vmatpush1.bf16.msra.mxu0 0
  %3083 = vmatprep.subr.bf16.mxu0 0
  %3084 = vmatpush1.bf16.msra.mxu0 0
  %3085 = vmatprep.subr.bf16.mxu0 0
  %3086 = vmatpush1.bf16.msra.mxu0 0
  %3087 = vmatprep.subr.bf16.mxu0 0
  %3088 = vmatpush1.bf16.msra.mxu0 0
  %3089 = vmatprep.subr.bf16.mxu0 0
  %3090 = vmatpush1.bf16.msra.mxu0 0
  %3091 = vmatprep.mubr.bf16.mxu0 0
  %3092 = vmatmul.mubr.bf16.gmra.mrb[0].mxu0 %v3048
  %v3093 = vpop.f32.mrb[0].mxu0
  %v3094 = vadd.f32 %v3045, %v3093
  %v3095 = vpop.f32.mrb[0].mxu0
  %v3096 = vpop.f32.mrb[0].mxu0
  %v3097 = vadd.f32 %v3045, %v3096
  %v3098 = vpop.f32.mrb[0].mxu0
  %3099 = vmatprep.mubr.bf16.mxu0 0
  %3100 = vmatmul.mubr.bf16.gmra.mrb[0].mxu0 %v3051
  %v3101 = vpop.f32.mrb[0].mxu0
  %v3102 = vadd.f32 %v3045, %v3101
  %v3103 = vpop.f32.mrb[0].mxu0
  %v3104 = vpop.f32.mrb[0].mxu0
  %v3105 = vadd.f32 %v3045, %v3104
  %v3106 = vpop.f32.mrb[0].mxu0
  %3107 = vmatprep.mubr.bf16.mxu0 0
  %3108 = vmatmul.mubr.bf16.gmra.mrb[0].mxu0 %v3054
  %v3109 = vpop.f32.mrb[0].mxu0
  %v3110 = vadd.f32 %v3045, %v3109
  %v3111 = vpop.f32.mrb[0].mxu0
  %v3112 = vpop.f32.mrb[0].mxu0
  %v3113 = vadd.f32 %v3045, %v3112
  %v3114 = vpop.f32.mrb[0].mxu0
  %3115 = vmatprep.mubr.bf16.mxu0 0
  %3116 = vmatmul.mubr.bf16.gmra.mrb[0].mxu0 %v3057
  %v3117 = vpop.f32.mrb[0].mxu0
  %v3118 = vadd.f32 %v3045, %v3117
  %v3119 = vpop.f32.mrb[0].mxu0
  %v3120 = vpop.f32.mrb[0].mxu0
  %v3121 = vadd.f32 %v3045, %v3120
  %v3122 = vpop.f32.mrb[0].mxu0
  %3123 = vdwg.mxu0
  %vm3124 = vcmp.gt.f32.partialorder %v3094, 0.0
  %vm3125 = vcmp.gt.f32.partialorder %v3097, 0.0
  %vm3126 = vcmp.gt.f32.partialorder %v3102, 0.0
  %vm3127 = vcmp.gt.f32.partialorder %v3105, 0.0
  %vm3128 = vcmp.gt.f32.partialorder %v3110, 0.0
  %vm3129 = vcmp.gt.f32.partialorder %v3113, 0.0
  %vm3130 = vcmp.gt.f32.partialorder %v3118, 0.0
  %vm3131 = vcmp.gt.f32.partialorder %v3121, 0.0
  %v3132 = vmin.f32 %v3094, 0.0
  %v3133 = vmin.f32 %v3097, 0.0
  %v3134 = vmin.f32 %v3102, 0.0
  %v3135 = vmin.f32 %v3105, 0.0
  %v3136 = vmin.f32 %v3110, 0.0
  %v3137 = vmin.f32 %v3113, 0.0
  %v3138 = vmin.f32 %v3118, 0.0
  %v3139 = vmin.f32 %v3121, 0.0
  %v3140 = vmul.f32 %v3132, 1.442695
  %v3141 = vpow.pop %v3140
  %v3142 = vmul.f32 %v3133, 1.442695
  %v3143 = vpow.pop %v3142
  %v3144 = vmul.f32 %v3134, 1.442695
  %v3145 = vpow.pop %v3144
  %v3146 = vmul.f32 %v3135, 1.442695
  %v3147 = vpow.pop %v3146
  %v3148 = vmul.f32 %v3136, 1.442695
  %v3149 = vpow.pop %v3148
  %v3150 = vmul.f32 %v3137, 1.442695
  %v3151 = vpow.pop %v3150
  %v3152 = vmul.f32 %v3138, 1.442695
  %v3153 = vpow.pop %v3152
  %v3154 = vmul.f32 %v3139, 1.442695
  %v3155 = vpow.pop %v3154
  %v3156 = vsub.f32 %v3141, 1.0
  %v3157 = vsub.f32 %v3143, 1.0
  %v3158 = vsub.f32 %v3145, 1.0
  %v3159 = vsub.f32 %v3147, 1.0
  %v3160 = vsub.f32 %v3149, 1.0
  %v3161 = vsub.f32 %v3151, 1.0
  %v3162 = vsub.f32 %v3153, 1.0
  %v3163 = vsub.f32 %v3155, 1.0
  %v3164 = vsel %vm3124, %v3094, %v3156
  %v3165 = vsel %vm3125, %v3097, %v3157
  %v3166 = vsel %vm3126, %v3102, %v3158
  %v3167 = vsel %vm3127, %v3105, %v3159
  %v3168 = vsel %vm3128, %v3110, %v3160
  %v3169 = vsel %vm3129, %v3113, %v3161
  %v3170 = vsel %vm3130, %v3118, %v3162
  %v3171 = vsel %vm3131, %v3121, %v3163
  %3180 = vrot.lane.b32.xlu0 %v3164, 32
  %v3181 = vpop.permute.xlu0 %3180
  %3182 = vrot.lane.b32.xlu0 %v3165, 32
  %v3183 = vpop.permute.xlu0 %3182
  %3184 = vrot.lane.b32.xlu0 %v3166, 32
  %v3185 = vpop.permute.xlu0 %3184
  %3186 = vrot.lane.b32.xlu0 %v3167, 32
  %v3187 = vpop.permute.xlu0 %3186
  %3188 = vrot.lane.b32.xlu0 %v3168, 32
  %v3189 = vpop.permute.xlu0 %3188
  %3190 = vrot.lane.b32.xlu0 %v3169, 32
  %v3191 = vpop.permute.xlu0 %3190
  %3192 = vrot.lane.b32.xlu0 %v3170, 32
  %v3193 = vpop.permute.xlu0 %3192
  %3194 = vrot.lane.b32.xlu0 %v3171, 32
  %v3195 = vpop.permute.xlu0 %3194
  %v3204 = vsel %vm1120, %v2820, %v3181
  %v3205 = vsel %vm1120, %v2821, %v3183
  %v3206 = vsel %vm1120, %v2822, %v3185
  %v3207 = vsel %vm1120, %v2823, %v3187
  %v3208 = vsel %vm1120, %v2824, %v3189
  %v3209 = vsel %vm1120, %v2825, %v3191
  %v3210 = vsel %vm1120, %v2826, %v3193
  %v3211 = vsel %vm1120, %v2827, %v3195
  %3212 = vset.pattern.permute.xlu0 2
  %3213 = vperm.xlu0 %3212, %v2408
  %v3214 = vpop.permute.xlu0 %3213
  %3216 = vset.pattern.permute.xlu0 2
  %3217 = vperm.xlu0 %3216, %v2414
  %v3218 = vpop.permute.xlu0 %3217
  %3220 = vset.pattern.permute.xlu0 2
  %3221 = vperm.xlu0 %3220, %v2420
  %v3222 = vpop.permute.xlu0 %3221
  %3224 = vset.pattern.permute.xlu0 2
  %3225 = vperm.xlu0 %3224, %v2426
  %v3226 = vpop.permute.xlu0 %3225
  %3228 = vset.pattern.permute.xlu0 2
  %3229 = vperm.xlu0 %3228, %v2432
  %v3230 = vpop.permute.xlu0 %3229
  %3232 = vset.pattern.permute.xlu0 2
  %3233 = vperm.xlu0 %3232, %v2438
  %v3234 = vpop.permute.xlu0 %3233
  %3236 = vset.pattern.permute.xlu0 2
  %3237 = vperm.xlu0 %3236, %v2444
  %v3238 = vpop.permute.xlu0 %3237
  %3240 = vset.pattern.permute.xlu0 2
  %3241 = vperm.xlu0 %3240, %v2450
  %v3242 = vpop.permute.xlu0 %3241
  %v3244 = vlaneseq
  %v3245 = vshrl.u32 %v3244, 7
  %v3246 = vsub.s32 2, %v3245
  %v3247 = vrot.slane %v2468, %v3246
  %v3248 = vadd.f32 %v3214, %v3247
  %v3249 = vadd.f32 %v3218, %v3247
  %v3250 = vadd.f32 %v3222, %v3247
  %v3251 = vadd.f32 %v3226, %v3247
  %v3252 = vadd.f32 %v3230, %v3247
  %v3253 = vadd.f32 %v3234, %v3247
  %v3254 = vadd.f32 %v3238, %v3247
  %v3255 = vadd.f32 %v3242, %v3247
  %vm3256 = vcmp.gt.f32.partialorder %v3248, 0.0
  %vm3257 = vcmp.gt.f32.partialorder %v3249, 0.0
  %vm3258 = vcmp.gt.f32.partialorder %v3250, 0.0
  %vm3259 = vcmp.gt.f32.partialorder %v3251, 0.0
  %vm3260 = vcmp.gt.f32.partialorder %v3252, 0.0
  %vm3261 = vcmp.gt.f32.partialorder %v3253, 0.0
  %vm3262 = vcmp.gt.f32.partialorder %v3254, 0.0
  %vm3263 = vcmp.gt.f32.partialorder %v3255, 0.0
  %v3264 = vmul.f32 %v3248, 0.2
  %v3265 = vmul.f32 %v3249, 0.2
  %v3266 = vmul.f32 %v3250, 0.2
  %v3267 = vmul.f32 %v3251, 0.2
  %v3268 = vmul.f32 %v3252, 0.2
  %v3269 = vmul.f32 %v3253, 0.2
  %v3270 = vmul.f32 %v3254, 0.2
  %v3271 = vmul.f32 %v3255, 0.2
  %v3272 = vsel %vm3256, %v3248, %v3264
  %v3273 = vsel %vm3257, %v3249, %v3265
  %v3274 = vsel %vm3258, %v3250, %v3266
  %v3275 = vsel %vm3259, %v3251, %v3267
  %v3276 = vsel %vm3260, %v3252, %v3268
  %v3277 = vsel %vm3261, %v3253, %v3269
  %v3278 = vsel %vm3262, %v3254, %v3270
  %v3279 = vsel %vm3263, %v3255, %v3271
  %v3280 = vadd.f32 %v3272, %v1156
  %v3281 = vadd.f32 %v3273, %v1157
  %v3282 = vadd.f32 %v3274, %v1158
  %v3283 = vadd.f32 %v3275, %v1159
  %v3284 = vadd.f32 %v3276, %v1160
  %v3285 = vadd.f32 %v3277, %v1161
  %v3286 = vadd.f32 %v3278, %v1162
  %v3287 = vadd.f32 %v3279, %v1163
  %v3288 = vsel %vm111, %v3280, -inf
  %3289 = vmax.xlane.f32.xlu0 %v3288
  %v3290 = vpop.xlane.xlu0 %3289
  %v3291 = vsel %vm111, %v3281, -inf
  %3292 = vmax.xlane.f32.xlu0 %v3291
  %v3293 = vpop.xlane.xlu0 %3292
  %v3294 = vsel %vm111, %v3282, -inf
  %3295 = vmax.xlane.f32.xlu0 %v3294
  %v3296 = vpop.xlane.xlu0 %3295
  %v3297 = vsel %vm111, %v3283, -inf
  %3298 = vmax.xlane.f32.xlu0 %v3297
  %v3299 = vpop.xlane.xlu0 %3298
  %v3300 = vsel %vm111, %v3284, -inf
  %3301 = vmax.xlane.f32.xlu0 %v3300
  %v3302 = vpop.xlane.xlu0 %3301
  %v3303 = vsel %vm111, %v3285, -inf
  %3304 = vmax.xlane.f32.xlu0 %v3303
  %v3305 = vpop.xlane.xlu0 %3304
  %v3306 = vsel %vm111, %v3286, -inf
  %3307 = vmax.xlane.f32.xlu0 %v3306
  %v3308 = vpop.xlane.xlu0 %3307
  %v3309 = vsel %vm111, %v3287, -inf
  %3310 = vmax.xlane.f32.xlu0 %v3309
  %v3311 = vpop.xlane.xlu0 %3310
  %v3312 = vmax.f32 %v3290, -10000.0
  %v3313 = vmax.f32 %v3293, -10000.0
  %v3314 = vmax.f32 %v3296, -10000.0
  %v3315 = vmax.f32 %v3299, -10000.0
  %v3316 = vmax.f32 %v3302, -10000.0
  %v3317 = vmax.f32 %v3305, -10000.0
  %v3318 = vmax.f32 %v3308, -10000.0
  %v3319 = vmax.f32 %v3311, -10000.0
  %v3320 = vsub.f32 %v3280, %v3312
  %v3321 = vsub.f32 %v3281, %v3313
  %v3322 = vsub.f32 %v3282, %v3314
  %v3323 = vsub.f32 %v3283, %v3315
  %v3324 = vsub.f32 %v3284, %v3316
  %v3325 = vsub.f32 %v3285, %v3317
  %v3326 = vsub.f32 %v3286, %v3318
  %v3327 = vsub.f32 %v3287, %v3319
  %v3328 = vmul.f32 %v3320, 1.442695
  %v3329 = vpow.pop %v3328
  %v3330 = vmul.f32 %v3321, 1.442695
  %v3331 = vpow.pop %v3330
  %v3332 = vmul.f32 %v3322, 1.442695
  %v3333 = vpow.pop %v3332
  %v3334 = vmul.f32 %v3323, 1.442695
  %v3335 = vpow.pop %v3334
  %v3336 = vmul.f32 %v3324, 1.442695
  %v3337 = vpow.pop %v3336
  %v3338 = vmul.f32 %v3325, 1.442695
  %v3339 = vpow.pop %v3338
  %v3340 = vmul.f32 %v3326, 1.442695
  %v3341 = vpow.pop %v3340
  %v3342 = vmul.f32 %v3327, 1.442695
  %v3343 = vpow.pop %v3342
  %v3344 = vsel %vm111, %v3329, 0.0
  %3345 = vadd.xlane.f32.xlu0 %v3344
  %v3346 = vpop.xlane.xlu0 %3345
  %v3347 = vsel %vm111, %v3331, 0.0
  %3348 = vadd.xlane.f32.xlu0 %v3347
  %v3349 = vpop.xlane.xlu0 %3348
  %v3350 = vsel %vm111, %v3333, 0.0
  %3351 = vadd.xlane.f32.xlu0 %v3350
  %v3352 = vpop.xlane.xlu0 %3351
  %v3353 = vsel %vm111, %v3335, 0.0
  %3354 = vadd.xlane.f32.xlu0 %v3353
  %v3355 = vpop.xlane.xlu0 %3354
  %v3356 = vsel %vm111, %v3337, 0.0
  %3357 = vadd.xlane.f32.xlu0 %v3356
  %v3358 = vpop.xlane.xlu0 %3357
  %v3359 = vsel %vm111, %v3339, 0.0
  %3360 = vadd.xlane.f32.xlu0 %v3359
  %v3361 = vpop.xlane.xlu0 %3360
  %v3362 = vsel %vm111, %v3341, 0.0
  %3363 = vadd.xlane.f32.xlu0 %v3362
  %v3364 = vpop.xlane.xlu0 %3363
  %v3365 = vsel %vm111, %v3343, 0.0
  %3366 = vadd.xlane.f32.xlu0 %v3365
  %v3367 = vpop.xlane.xlu0 %3366
  %vm3368 = vcmp.eq.f32.partialorder %v3346, 0.0
  %vm3369 = vcmp.eq.f32.partialorder %v3349, 0.0
  %vm3370 = vcmp.eq.f32.partialorder %v3352, 0.0
  %vm3371 = vcmp.eq.f32.partialorder %v3355, 0.0
  %vm3372 = vcmp.eq.f32.partialorder %v3358, 0.0
  %vm3373 = vcmp.eq.f32.partialorder %v3361, 0.0
  %vm3374 = vcmp.eq.f32.partialorder %v3364, 0.0
  %vm3375 = vcmp.eq.f32.partialorder %v3367, 0.0
  %v3376 = vsel %vm3368, 1.0, %v3346
  %v3377 = vsel %vm3369, 1.0, %v3349
  %v3378 = vsel %vm3370, 1.0, %v3352
  %v3379 = vsel %vm3371, 1.0, %v3355
  %v3380 = vsel %vm3372, 1.0, %v3358
  %v3381 = vsel %vm3373, 1.0, %v3361
  %v3382 = vsel %vm3374, 1.0, %v3364
  %v3383 = vsel %vm3375, 1.0, %v3367
  %v3384 = vrcp.pop %v3376
  %v3385 = vmul.f32 1.0, %v3384
  %v3386 = vrcp.pop %v3377
  %v3387 = vmul.f32 1.0, %v3386
  %v3388 = vrcp.pop %v3378
  %v3389 = vmul.f32 1.0, %v3388
  %v3390 = vrcp.pop %v3379
  %v3391 = vmul.f32 1.0, %v3390
  %v3392 = vrcp.pop %v3380
  %v3393 = vmul.f32 1.0, %v3392
  %v3394 = vrcp.pop %v3381
  %v3395 = vmul.f32 1.0, %v3394
  %v3396 = vrcp.pop %v3382
  %v3397 = vmul.f32 1.0, %v3396
  %v3398 = vrcp.pop %v3383
  %v3399 = vmul.f32 1.0, %v3398
  %v3400 = vmul.f32 %v3329, %v3385
  %v3401 = vmul.f32 %v3331, %v3387
  %v3402 = vmul.f32 %v3333, %v3389
  %v3403 = vmul.f32 %v3335, %v3391
  %v3404 = vmul.f32 %v3337, %v3393
  %v3405 = vmul.f32 %v3339, %v3395
  %v3406 = vmul.f32 %v3341, %v3397
  %v3407 = vmul.f32 %v3343, %v3399
  %v3408 = vpack.c.bf16 %v3401, %v3400
  %v3409 = vpack.c.bf16 %v3403, %v3402
  %v3410 = vpack.c.bf16 %v3405, %v3404
  %v3411 = vpack.c.bf16 %v3407, %v3406
  %3412 = vrot.lane.b32.xlu0 %v2692, 64
  %v3413 = vpop.permute.xlu0 %3412
  %3414 = vrot.lane.b32.xlu0 %v2693, 64
  %v3415 = vpop.permute.xlu0 %3414
  %3416 = vrot.lane.b32.xlu0 %v2694, 64
  %v3417 = vpop.permute.xlu0 %3416
  %3418 = vrot.lane.b32.xlu0 %v2695, 64
  %v3419 = vpop.permute.xlu0 %3418
  %3424 = vrot.lane.b32.xlu0 %v2701, 64
  %v3425 = vpop.permute.xlu0 %3424
  %v3428 = vsel %vm111, %v3408, 0
  %v3431 = vsel %vm111, %v3409, 0
  %v3434 = vsel %vm111, %v3410, 0
  %v3437 = vsel %vm111, %v3411, 0
  %3439 = vmatprep.subr.bf16.mxu0 0
  %3440 = vmatpush1.bf16.msra.mxu0 %v3413
  %3441 = vmatprep.subr.bf16.mxu0 0
  %3442 = vmatpush1.bf16.msra.mxu0 %v3415
  %3443 = vmatprep.subr.bf16.mxu0 0
  %3444 = vmatpush1.bf16.msra.mxu0 %v3417
  %3445 = vmatprep.subr.bf16.mxu0 0
  %3446 = vmatpush1.bf16.msra.mxu0 %v3419
  %3447 = vmatprep.subr.bf16.mxu0 0
  %3448 = vmatpush1.bf16.msra.mxu0 0
  %3449 = vmatprep.subr.bf16.mxu0 0
  %3450 = vmatpush1.bf16.msra.mxu0 0
  %3451 = vmatprep.subr.bf16.mxu0 0
  %3452 = vmatpush1.bf16.msra.mxu0 0
  %3453 = vmatprep.subr.bf16.mxu0 0
  %3454 = vmatpush1.bf16.msra.mxu0 0
  %3455 = vmatprep.subr.bf16.mxu0 0
  %3456 = vmatpush1.bf16.msra.mxu0 0
  %3457 = vmatprep.subr.bf16.mxu0 0
  %3458 = vmatpush1.bf16.msra.mxu0 0
  %3459 = vmatprep.subr.bf16.mxu0 0
  %3460 = vmatpush1.bf16.msra.mxu0 0
  %3461 = vmatprep.subr.bf16.mxu0 0
  %3462 = vmatpush1.bf16.msra.mxu0 0
  %3463 = vmatprep.subr.bf16.mxu0 0
  %3464 = vmatpush1.bf16.msra.mxu0 0
  %3465 = vmatprep.subr.bf16.mxu0 0
  %3466 = vmatpush1.bf16.msra.mxu0 0
  %3467 = vmatprep.subr.bf16.mxu0 0
  %3468 = vmatpush1.bf16.msra.mxu0 0
  %3469 = vmatprep.subr.bf16.mxu0 0
  %3470 = vmatpush1.bf16.msra.mxu0 0
  %3471 = vmatprep.mubr.bf16.mxu0 0
  %3472 = vmatmul.mubr.bf16.gmra.mrb[0].mxu0 %v3428
  %v3473 = vpop.f32.mrb[0].mxu0
  %v3474 = vadd.f32 %v3425, %v3473
  %v3475 = vpop.f32.mrb[0].mxu0
  %v3476 = vpop.f32.mrb[0].mxu0
  %v3477 = vadd.f32 %v3425, %v3476
  %v3478 = vpop.f32.mrb[0].mxu0
  %3479 = vmatprep.mubr.bf16.mxu0 0
  %3480 = vmatmul.mubr.bf16.gmra.mrb[0].mxu0 %v3431
  %v3481 = vpop.f32.mrb[0].mxu0
  %v3482 = vadd.f32 %v3425, %v3481
  %v3483 = vpop.f32.mrb[0].mxu0
  %v3484 = vpop.f32.mrb[0].mxu0
  %v3485 = vadd.f32 %v3425, %v3484
  %v3486 = vpop.f32.mrb[0].mxu0
  %3487 = vmatprep.mubr.bf16.mxu0 0
  %3488 = vmatmul.mubr.bf16.gmra.mrb[0].mxu0 %v3434
  %v3489 = vpop.f32.mrb[0].mxu0
  %v3490 = vadd.f32 %v3425, %v3489
  %v3491 = vpop.f32.mrb[0].mxu0
  %v3492 = vpop.f32.mrb[0].mxu0
  %v3493 = vadd.f32 %v3425, %v3492
  %v3494 = vpop.f32.mrb[0].mxu0
  %3495 = vmatprep.mubr.bf16.mxu0 0
  %3496 = vmatmul.mubr.bf16.gmra.mrb[0].mxu0 %v3437
  %v3497 = vpop.f32.mrb[0].mxu0
  %v3498 = vadd.f32 %v3425, %v3497
  %v3499 = vpop.f32.mrb[0].mxu0
  %v3500 = vpop.f32.mrb[0].mxu0
  %v3501 = vadd.f32 %v3425, %v3500
  %v3502 = vpop.f32.mrb[0].mxu0
  %3503 = vdwg.mxu0
  %vm3504 = vcmp.gt.f32.partialorder %v3474, 0.0
  %vm3505 = vcmp.gt.f32.partialorder %v3477, 0.0
  %vm3506 = vcmp.gt.f32.partialorder %v3482, 0.0
  %vm3507 = vcmp.gt.f32.partialorder %v3485, 0.0
  %vm3508 = vcmp.gt.f32.partialorder %v3490, 0.0
  %vm3509 = vcmp.gt.f32.partialorder %v3493, 0.0
  %vm3510 = vcmp.gt.f32.partialorder %v3498, 0.0
  %vm3511 = vcmp.gt.f32.partialorder %v3501, 0.0
  %v3512 = vmin.f32 %v3474, 0.0
  %v3513 = vmin.f32 %v3477, 0.0
  %v3514 = vmin.f32 %v3482, 0.0
  %v3515 = vmin.f32 %v3485, 0.0
  %v3516 = vmin.f32 %v3490, 0.0
  %v3517 = vmin.f32 %v3493, 0.0
  %v3518 = vmin.f32 %v3498, 0.0
  %v3519 = vmin.f32 %v3501, 0.0
  %v3520 = vmul.f32 %v3512, 1.442695
  %v3521 = vpow.pop %v3520
  %v3522 = vmul.f32 %v3513, 1.442695
  %v3523 = vpow.pop %v3522
  %v3524 = vmul.f32 %v3514, 1.442695
  %v3525 = vpow.pop %v3524
  %v3526 = vmul.f32 %v3515, 1.442695
  %v3527 = vpow.pop %v3526
  %v3528 = vmul.f32 %v3516, 1.442695
  %v3529 = vpow.pop %v3528
  %v3530 = vmul.f32 %v3517, 1.442695
  %v3531 = vpow.pop %v3530
  %v3532 = vmul.f32 %v3518, 1.442695
  %v3533 = vpow.pop %v3532
  %v3534 = vmul.f32 %v3519, 1.442695
  %v3535 = vpow.pop %v3534
  %v3536 = vsub.f32 %v3521, 1.0
  %v3537 = vsub.f32 %v3523, 1.0
  %v3538 = vsub.f32 %v3525, 1.0
  %v3539 = vsub.f32 %v3527, 1.0
  %v3540 = vsub.f32 %v3529, 1.0
  %v3541 = vsub.f32 %v3531, 1.0
  %v3542 = vsub.f32 %v3533, 1.0
  %v3543 = vsub.f32 %v3535, 1.0
  %v3544 = vsel %vm3504, %v3474, %v3536
  %v3545 = vsel %vm3505, %v3477, %v3537
  %v3546 = vsel %vm3506, %v3482, %v3538
  %v3547 = vsel %vm3507, %v3485, %v3539
  %v3548 = vsel %vm3508, %v3490, %v3540
  %v3549 = vsel %vm3509, %v3493, %v3541
  %v3550 = vsel %vm3510, %v3498, %v3542
  %v3551 = vsel %vm3511, %v3501, %v3543
  %3552 = vset.pattern.permute.xlu0 3
  %3553 = vperm.xlu0 %3552, %v2408
  %v3554 = vpop.permute.xlu0 %3553
  %3556 = vset.pattern.permute.xlu0 3
  %3557 = vperm.xlu0 %3556, %v2414
  %v3558 = vpop.permute.xlu0 %3557
  %3560 = vset.pattern.permute.xlu0 3
  %3561 = vperm.xlu0 %3560, %v2420
  %v3562 = vpop.permute.xlu0 %3561
  %3564 = vset.pattern.permute.xlu0 3
  %3565 = vperm.xlu0 %3564, %v2426
  %v3566 = vpop.permute.xlu0 %3565
  %3568 = vset.pattern.permute.xlu0 3
  %3569 = vperm.xlu0 %3568, %v2432
  %v3570 = vpop.permute.xlu0 %3569
  %3572 = vset.pattern.permute.xlu0 3
  %3573 = vperm.xlu0 %3572, %v2438
  %v3574 = vpop.permute.xlu0 %3573
  %3576 = vset.pattern.permute.xlu0 3
  %3577 = vperm.xlu0 %3576, %v2444
  %v3578 = vpop.permute.xlu0 %3577
  %3580 = vset.pattern.permute.xlu0 3
  %3581 = vperm.xlu0 %3580, %v2450
  %v3582 = vpop.permute.xlu0 %3581
  %v3584 = vlaneseq
  %v3585 = vshrl.u32 %v3584, 7
  %v3586 = vsub.s32 3, %v3585
  %v3587 = vrot.slane %v2468, %v3586
  %v3588 = vadd.f32 %v3554, %v3587
  %v3589 = vadd.f32 %v3558, %v3587
  %v3590 = vadd.f32 %v3562, %v3587
  %v3591 = vadd.f32 %v3566, %v3587
  %v3592 = vadd.f32 %v3570, %v3587
  %v3593 = vadd.f32 %v3574, %v3587
  %v3594 = vadd.f32 %v3578, %v3587
  %v3595 = vadd.f32 %v3582, %v3587
  %vm3596 = vcmp.gt.f32.partialorder %v3588, 0.0
  %vm3597 = vcmp.gt.f32.partialorder %v3589, 0.0
  %vm3598 = vcmp.gt.f32.partialorder %v3590, 0.0
  %vm3599 = vcmp.gt.f32.partialorder %v3591, 0.0
  %vm3600 = vcmp.gt.f32.partialorder %v3592, 0.0
  %vm3601 = vcmp.gt.f32.partialorder %v3593, 0.0
  %vm3602 = vcmp.gt.f32.partialorder %v3594, 0.0
  %vm3603 = vcmp.gt.f32.partialorder %v3595, 0.0
  %v3604 = vmul.f32 %v3588, 0.2
  %v3605 = vmul.f32 %v3589, 0.2
  %v3606 = vmul.f32 %v3590, 0.2
  %v3607 = vmul.f32 %v3591, 0.2
  %v3608 = vmul.f32 %v3592, 0.2
  %v3609 = vmul.f32 %v3593, 0.2
  %v3610 = vmul.f32 %v3594, 0.2
  %v3611 = vmul.f32 %v3595, 0.2
  %v3612 = vsel %vm3596, %v3588, %v3604
  %v3613 = vsel %vm3597, %v3589, %v3605
  %v3614 = vsel %vm3598, %v3590, %v3606
  %v3615 = vsel %vm3599, %v3591, %v3607
  %v3616 = vsel %vm3600, %v3592, %v3608
  %v3617 = vsel %vm3601, %v3593, %v3609
  %v3618 = vsel %vm3602, %v3594, %v3610
  %v3619 = vsel %vm3603, %v3595, %v3611
  %v3620 = vadd.f32 %v3612, %v1156
  %v3621 = vadd.f32 %v3613, %v1157
  %v3622 = vadd.f32 %v3614, %v1158
  %v3623 = vadd.f32 %v3615, %v1159
  %v3624 = vadd.f32 %v3616, %v1160
  %v3625 = vadd.f32 %v3617, %v1161
  %v3626 = vadd.f32 %v3618, %v1162
  %v3627 = vadd.f32 %v3619, %v1163
  %v3628 = vsel %vm111, %v3620, -inf
  %3629 = vmax.xlane.f32.xlu0 %v3628
  %v3630 = vpop.xlane.xlu0 %3629
  %v3631 = vsel %vm111, %v3621, -inf
  %3632 = vmax.xlane.f32.xlu0 %v3631
  %v3633 = vpop.xlane.xlu0 %3632
  %v3634 = vsel %vm111, %v3622, -inf
  %3635 = vmax.xlane.f32.xlu0 %v3634
  %v3636 = vpop.xlane.xlu0 %3635
  %v3637 = vsel %vm111, %v3623, -inf
  %3638 = vmax.xlane.f32.xlu0 %v3637
  %v3639 = vpop.xlane.xlu0 %3638
  %v3640 = vsel %vm111, %v3624, -inf
  %3641 = vmax.xlane.f32.xlu0 %v3640
  %v3642 = vpop.xlane.xlu0 %3641
  %v3643 = vsel %vm111, %v3625, -inf
  %3644 = vmax.xlane.f32.xlu0 %v3643
  %v3645 = vpop.xlane.xlu0 %3644
  %v3646 = vsel %vm111, %v3626, -inf
  %3647 = vmax.xlane.f32.xlu0 %v3646
  %v3648 = vpop.xlane.xlu0 %3647
  %v3649 = vsel %vm111, %v3627, -inf
  %3650 = vmax.xlane.f32.xlu0 %v3649
  %v3651 = vpop.xlane.xlu0 %3650
  %v3652 = vmax.f32 %v3630, -10000.0
  %v3653 = vmax.f32 %v3633, -10000.0
  %v3654 = vmax.f32 %v3636, -10000.0
  %v3655 = vmax.f32 %v3639, -10000.0
  %v3656 = vmax.f32 %v3642, -10000.0
  %v3657 = vmax.f32 %v3645, -10000.0
  %v3658 = vmax.f32 %v3648, -10000.0
  %v3659 = vmax.f32 %v3651, -10000.0
  %v3660 = vsub.f32 %v3620, %v3652
  %v3661 = vsub.f32 %v3621, %v3653
  %v3662 = vsub.f32 %v3622, %v3654
  %v3663 = vsub.f32 %v3623, %v3655
  %v3664 = vsub.f32 %v3624, %v3656
  %v3665 = vsub.f32 %v3625, %v3657
  %v3666 = vsub.f32 %v3626, %v3658
  %v3667 = vsub.f32 %v3627, %v3659
  %v3668 = vmul.f32 %v3660, 1.442695
  %v3669 = vpow.pop %v3668
  %v3670 = vmul.f32 %v3661, 1.442695
  %v3671 = vpow.pop %v3670
  %v3672 = vmul.f32 %v3662, 1.442695
  %v3673 = vpow.pop %v3672
  %v3674 = vmul.f32 %v3663, 1.442695
  %v3675 = vpow.pop %v3674
  %v3676 = vmul.f32 %v3664, 1.442695
  %v3677 = vpow.pop %v3676
  %v3678 = vmul.f32 %v3665, 1.442695
  %v3679 = vpow.pop %v3678
  %v3680 = vmul.f32 %v3666, 1.442695
  %v3681 = vpow.pop %v3680
  %v3682 = vmul.f32 %v3667, 1.442695
  %v3683 = vpow.pop %v3682
  %v3684 = vsel %vm111, %v3669, 0.0
  %3685 = vadd.xlane.f32.xlu0 %v3684
  %v3686 = vpop.xlane.xlu0 %3685
  %v3687 = vsel %vm111, %v3671, 0.0
  %3688 = vadd.xlane.f32.xlu0 %v3687
  %v3689 = vpop.xlane.xlu0 %3688
  %v3690 = vsel %vm111, %v3673, 0.0
  %3691 = vadd.xlane.f32.xlu0 %v3690
  %v3692 = vpop.xlane.xlu0 %3691
  %v3693 = vsel %vm111, %v3675, 0.0
  %3694 = vadd.xlane.f32.xlu0 %v3693
  %v3695 = vpop.xlane.xlu0 %3694
  %v3696 = vsel %vm111, %v3677, 0.0
  %3697 = vadd.xlane.f32.xlu0 %v3696
  %v3698 = vpop.xlane.xlu0 %3697
  %v3699 = vsel %vm111, %v3679, 0.0
  %3700 = vadd.xlane.f32.xlu0 %v3699
  %v3701 = vpop.xlane.xlu0 %3700
  %v3702 = vsel %vm111, %v3681, 0.0
  %3703 = vadd.xlane.f32.xlu0 %v3702
  %v3704 = vpop.xlane.xlu0 %3703
  %v3705 = vsel %vm111, %v3683, 0.0
  %3706 = vadd.xlane.f32.xlu0 %v3705
  %v3707 = vpop.xlane.xlu0 %3706
  %vm3708 = vcmp.eq.f32.partialorder %v3686, 0.0
  %vm3709 = vcmp.eq.f32.partialorder %v3689, 0.0
  %vm3710 = vcmp.eq.f32.partialorder %v3692, 0.0
  %vm3711 = vcmp.eq.f32.partialorder %v3695, 0.0
  %vm3712 = vcmp.eq.f32.partialorder %v3698, 0.0
  %vm3713 = vcmp.eq.f32.partialorder %v3701, 0.0
  %vm3714 = vcmp.eq.f32.partialorder %v3704, 0.0
  %vm3715 = vcmp.eq.f32.partialorder %v3707, 0.0
  %v3716 = vsel %vm3708, 1.0, %v3686
  %v3717 = vsel %vm3709, 1.0, %v3689
  %v3718 = vsel %vm3710, 1.0, %v3692
  %v3719 = vsel %vm3711, 1.0, %v3695
  %v3720 = vsel %vm3712, 1.0, %v3698
  %v3721 = vsel %vm3713, 1.0, %v3701
  %v3722 = vsel %vm3714, 1.0, %v3704
  %v3723 = vsel %vm3715, 1.0, %v3707
  %v3724 = vrcp.pop %v3716
  %v3725 = vmul.f32 1.0, %v3724
  %v3726 = vrcp.pop %v3717
  %v3727 = vmul.f32 1.0, %v3726
  %v3728 = vrcp.pop %v3718
  %v3729 = vmul.f32 1.0, %v3728
  %v3730 = vrcp.pop %v3719
  %v3731 = vmul.f32 1.0, %v3730
  %v3732 = vrcp.pop %v3720
  %v3733 = vmul.f32 1.0, %v3732
  %v3734 = vrcp.pop %v3721
  %v3735 = vmul.f32 1.0, %v3734
  %v3736 = vrcp.pop %v3722
  %v3737 = vmul.f32 1.0, %v3736
  %v3738 = vrcp.pop %v3723
  %v3739 = vmul.f32 1.0, %v3738
  %v3740 = vmul.f32 %v3669, %v3725
  %v3741 = vmul.f32 %v3671, %v3727
  %v3742 = vmul.f32 %v3673, %v3729
  %v3743 = vmul.f32 %v3675, %v3731
  %v3744 = vmul.f32 %v3677, %v3733
  %v3745 = vmul.f32 %v3679, %v3735
  %v3746 = vmul.f32 %v3681, %v3737
  %v3747 = vmul.f32 %v3683, %v3739
  %v3748 = vpack.c.bf16 %v3741, %v3740
  %v3749 = vpack.c.bf16 %v3743, %v3742
  %v3750 = vpack.c.bf16 %v3745, %v3744
  %v3751 = vpack.c.bf16 %v3747, %v3746
  %3752 = vrot.lane.b32.xlu0 %v2692, 32
  %v3753 = vpop.permute.xlu0 %3752
  %3754 = vrot.lane.b32.xlu0 %v2693, 32
  %v3755 = vpop.permute.xlu0 %3754
  %3756 = vrot.lane.b32.xlu0 %v2694, 32
  %v3757 = vpop.permute.xlu0 %3756
  %3758 = vrot.lane.b32.xlu0 %v2695, 32
  %v3759 = vpop.permute.xlu0 %3758
  %3764 = vrot.lane.b32.xlu0 %v2701, 32
  %v3765 = vpop.permute.xlu0 %3764
  %v3768 = vsel %vm111, %v3748, 0
  %v3771 = vsel %vm111, %v3749, 0
  %v3774 = vsel %vm111, %v3750, 0
  %v3777 = vsel %vm111, %v3751, 0
  %3779 = vmatprep.subr.bf16.mxu0 0
  %3780 = vmatpush1.bf16.msra.mxu0 %v3753
  %3781 = vmatprep.subr.bf16.mxu0 0
  %3782 = vmatpush1.bf16.msra.mxu0 %v3755
  %3783 = vmatprep.subr.bf16.mxu0 0
  %3784 = vmatpush1.bf16.msra.mxu0 %v3757
  %3785 = vmatprep.subr.bf16.mxu0 0
  %3786 = vmatpush1.bf16.msra.mxu0 %v3759
  %3787 = vmatprep.subr.bf16.mxu0 0
  %3788 = vmatpush1.bf16.msra.mxu0 0
  %3789 = vmatprep.subr.bf16.mxu0 0
  %3790 = vmatpush1.bf16.msra.mxu0 0
  %3791 = vmatprep.subr.bf16.mxu0 0
  %3792 = vmatpush1.bf16.msra.mxu0 0
  %3793 = vmatprep.subr.bf16.mxu0 0
  %3794 = vmatpush1.bf16.msra.mxu0 0
  %3795 = vmatprep.subr.bf16.mxu0 0
  %3796 = vmatpush1.bf16.msra.mxu0 0
  %3797 = vmatprep.subr.bf16.mxu0 0
  %3798 = vmatpush1.bf16.msra.mxu0 0
  %3799 = vmatprep.subr.bf16.mxu0 0
  %3800 = vmatpush1.bf16.msra.mxu0 0
  %3801 = vmatprep.subr.bf16.mxu0 0
  %3802 = vmatpush1.bf16.msra.mxu0 0
  %3803 = vmatprep.subr.bf16.mxu0 0
  %3804 = vmatpush1.bf16.msra.mxu0 0
  %3805 = vmatprep.subr.bf16.mxu0 0
  %3806 = vmatpush1.bf16.msra.mxu0 0
  %3807 = vmatprep.subr.bf16.mxu0 0
  %3808 = vmatpush1.bf16.msra.mxu0 0
  %3809 = vmatprep.subr.bf16.mxu0 0
  %3810 = vmatpush1.bf16.msra.mxu0 0
  %3811 = vmatprep.mubr.bf16.mxu0 0
  %3812 = vmatmul.mubr.bf16.gmra.mrb[0].mxu0 %v3768
  %v3813 = vpop.f32.mrb[0].mxu0
  %v3814 = vadd.f32 %v3765, %v3813
  %v3815 = vpop.f32.mrb[0].mxu0
  %v3816 = vpop.f32.mrb[0].mxu0
  %v3817 = vadd.f32 %v3765, %v3816
  %v3818 = vpop.f32.mrb[0].mxu0
  %3819 = vmatprep.mubr.bf16.mxu0 0
  %3820 = vmatmul.mubr.bf16.gmra.mrb[0].mxu0 %v3771
  %v3821 = vpop.f32.mrb[0].mxu0
  %v3822 = vadd.f32 %v3765, %v3821
  %v3823 = vpop.f32.mrb[0].mxu0
  %v3824 = vpop.f32.mrb[0].mxu0
  %v3825 = vadd.f32 %v3765, %v3824
  %v3826 = vpop.f32.mrb[0].mxu0
  %3827 = vmatprep.mubr.bf16.mxu0 0
  %3828 = vmatmul.mubr.bf16.gmra.mrb[0].mxu0 %v3774
  %v3829 = vpop.f32.mrb[0].mxu0
  %v3830 = vadd.f32 %v3765, %v3829
  %v3831 = vpop.f32.mrb[0].mxu0
  %v3832 = vpop.f32.mrb[0].mxu0
  %v3833 = vadd.f32 %v3765, %v3832
  %v3834 = vpop.f32.mrb[0].mxu0
  %3835 = vmatprep.mubr.bf16.mxu0 0
  %3836 = vmatmul.mubr.bf16.gmra.mrb[0].mxu0 %v3777
  %v3837 = vpop.f32.mrb[0].mxu0
  %v3838 = vadd.f32 %v3765, %v3837
  %v3839 = vpop.f32.mrb[0].mxu0
  %v3840 = vpop.f32.mrb[0].mxu0
  %v3841 = vadd.f32 %v3765, %v3840
  %v3842 = vpop.f32.mrb[0].mxu0
  %3843 = vdwg.mxu0
  %vm3844 = vcmp.gt.f32.partialorder %v3814, 0.0
  %vm3845 = vcmp.gt.f32.partialorder %v3817, 0.0
  %vm3846 = vcmp.gt.f32.partialorder %v3822, 0.0
  %vm3847 = vcmp.gt.f32.partialorder %v3825, 0.0
  %vm3848 = vcmp.gt.f32.partialorder %v3830, 0.0
  %vm3849 = vcmp.gt.f32.partialorder %v3833, 0.0
  %vm3850 = vcmp.gt.f32.partialorder %v3838, 0.0
  %vm3851 = vcmp.gt.f32.partialorder %v3841, 0.0
  %v3852 = vmin.f32 %v3814, 0.0
  %v3853 = vmin.f32 %v3817, 0.0
  %v3854 = vmin.f32 %v3822, 0.0
  %v3855 = vmin.f32 %v3825, 0.0
  %v3856 = vmin.f32 %v3830, 0.0
  %v3857 = vmin.f32 %v3833, 0.0
  %v3858 = vmin.f32 %v3838, 0.0
  %v3859 = vmin.f32 %v3841, 0.0
  %v3860 = vmul.f32 %v3852, 1.442695
  %v3861 = vpow.pop %v3860
  %v3862 = vmul.f32 %v3853, 1.442695
  %v3863 = vpow.pop %v3862
  %v3864 = vmul.f32 %v3854, 1.442695
  %v3865 = vpow.pop %v3864
  %v3866 = vmul.f32 %v3855, 1.442695
  %v3867 = vpow.pop %v3866
  %v3868 = vmul.f32 %v3856, 1.442695
  %v3869 = vpow.pop %v3868
  %v3870 = vmul.f32 %v3857, 1.442695
  %v3871 = vpow.pop %v3870
  %v3872 = vmul.f32 %v3858, 1.442695
  %v3873 = vpow.pop %v3872
  %v3874 = vmul.f32 %v3859, 1.442695
  %v3875 = vpow.pop %v3874
  %v3876 = vsub.f32 %v3861, 1.0
  %v3877 = vsub.f32 %v3863, 1.0
  %v3878 = vsub.f32 %v3865, 1.0
  %v3879 = vsub.f32 %v3867, 1.0
  %v3880 = vsub.f32 %v3869, 1.0
  %v3881 = vsub.f32 %v3871, 1.0
  %v3882 = vsub.f32 %v3873, 1.0
  %v3883 = vsub.f32 %v3875, 1.0
  %v3884 = vsel %vm3844, %v3814, %v3876
  %v3885 = vsel %vm3845, %v3817, %v3877
  %v3886 = vsel %vm3846, %v3822, %v3878
  %v3887 = vsel %vm3847, %v3825, %v3879
  %v3888 = vsel %vm3848, %v3830, %v3880
  %v3889 = vsel %vm3849, %v3833, %v3881
  %v3890 = vsel %vm3850, %v3838, %v3882
  %v3891 = vsel %vm3851, %v3841, %v3883
  %3900 = vrot.lane.b32.xlu0 %v3884, 32
  %v3901 = vpop.permute.xlu0 %3900
  %3902 = vrot.lane.b32.xlu0 %v3885, 32
  %v3903 = vpop.permute.xlu0 %3902
  %3904 = vrot.lane.b32.xlu0 %v3886, 32
  %v3905 = vpop.permute.xlu0 %3904
  %3906 = vrot.lane.b32.xlu0 %v3887, 32
  %v3907 = vpop.permute.xlu0 %3906
  %3908 = vrot.lane.b32.xlu0 %v3888, 32
  %v3909 = vpop.permute.xlu0 %3908
  %3910 = vrot.lane.b32.xlu0 %v3889, 32
  %v3911 = vpop.permute.xlu0 %3910
  %3912 = vrot.lane.b32.xlu0 %v3890, 32
  %v3913 = vpop.permute.xlu0 %3912
  %3914 = vrot.lane.b32.xlu0 %v3891, 32
  %v3915 = vpop.permute.xlu0 %3914
  %v3924 = vsel %vm1120, %v3544, %v3901
  %v3925 = vsel %vm1120, %v3545, %v3903
  %v3926 = vsel %vm1120, %v3546, %v3905
  %v3927 = vsel %vm1120, %v3547, %v3907
  %v3928 = vsel %vm1120, %v3548, %v3909
  %v3929 = vsel %vm1120, %v3549, %v3911
  %v3930 = vsel %vm1120, %v3550, %v3913
  %v3931 = vsel %vm1120, %v3551, %v3915
  %v3932 = vpack.c.bf16 %v3205, %v3204
  %v3933 = vpack.c.bf16 %v3207, %v3206
  %v3934 = vpack.c.bf16 %v3209, %v3208
  %v3935 = vpack.c.bf16 %v3211, %v3210
  %v3936 = vpack.c.bf16 %v3925, %v3924
  %v3937 = vpack.c.bf16 %v3927, %v3926
  %v3938 = vpack.c.bf16 %v3929, %v3928
  %v3939 = vpack.c.bf16 %v3931, %v3930
  %v3940 = vld [vmem:[%s13] sm:$0xf]
  %v3941 = vld [vmem:[%s13 + $0x4] sm:$0xf]
  %v3942 = vld [vmem:[%s13 + $0x8] sm:$0xf]
  %v3943 = vld [vmem:[%s13 + $0xc] sm:$0xf]
  %v3944 = vld [vmem:[%s13 + $0x10] sm:$0xf]
  %v3945 = vld [vmem:[%s13 + $0x14] sm:$0xf]
  %v3946 = vld [vmem:[%s13 + $0x18] sm:$0xf]
  %v3947 = vld [vmem:[%s13 + $0x1c] sm:$0xf]
  %v3948 = vld [vmem:[%s14] sm:$0x1]
  %v3950 = vlaneseq
  %v3951 = vshrl.u32 %v3950, 7
  %v3952 = vsub.s32 0, %v3951
  %v3953 = vrot.slane %v3948, %v3952
  %v3963 = vunpack.c.l.b16 %v3940
  %v3964 = vunpack.c.l.b16 %v3941
  %v3965 = vunpack.c.l.b16 %v3942
  %v3966 = vunpack.c.l.b16 %v3943
  %v3967 = vunpack.c.l.b16 %v3944
  %v3968 = vunpack.c.l.b16 %v3945
  %v3969 = vunpack.c.l.b16 %v3946
  %v3970 = vunpack.c.l.b16 %v3947
  %v3971 = vpack.c.b16 %v3964, %v3963
  %v3972 = vpack.c.b16 %v3966, %v3965
  %v3973 = vpack.c.b16 %v3968, %v3967
  %v3974 = vpack.c.b16 %v3970, %v3969
  %v3980 = vsel %vm111, %v3932, 0
  %v3983 = vsel %vm111, %v3933, 0
  %v3986 = vsel %vm111, %v3934, 0
  %v3989 = vsel %vm111, %v3935, 0
  %v3992 = vsel %vm111, %v3936, 0
  %v3995 = vsel %vm111, %v3937, 0
  %v3998 = vsel %vm111, %v3938, 0
  %v4001 = vsel %vm111, %v3939, 0
  %4003 = vmatprep.subr.bf16.mxu0 0
  %4004 = vmatpush1.bf16.msra.mxu0 %v3971
  %4005 = vmatprep.subr.bf16.mxu0 0
  %4006 = vmatpush1.bf16.msra.mxu0 %v3972
  %4007 = vmatprep.subr.bf16.mxu0 0
  %4008 = vmatpush1.bf16.msra.mxu0 %v3973
  %4009 = vmatprep.subr.bf16.mxu0 0
  %4010 = vmatpush1.bf16.msra.mxu0 %v3974
  %4011 = vmatprep.subr.bf16.mxu0 0
  %4012 = vmatpush1.bf16.msra.mxu0 0
  %4013 = vmatprep.subr.bf16.mxu0 0
  %4014 = vmatpush1.bf16.msra.mxu0 0
  %4015 = vmatprep.subr.bf16.mxu0 0
  %4016 = vmatpush1.bf16.msra.mxu0 0
  %4017 = vmatprep.subr.bf16.mxu0 0
  %4018 = vmatpush1.bf16.msra.mxu0 0
  %4019 = vmatprep.subr.bf16.mxu0 0
  %4020 = vmatpush1.bf16.msra.mxu0 0
  %4021 = vmatprep.subr.bf16.mxu0 0
  %4022 = vmatpush1.bf16.msra.mxu0 0
  %4023 = vmatprep.subr.bf16.mxu0 0
  %4024 = vmatpush1.bf16.msra.mxu0 0
  %4025 = vmatprep.subr.bf16.mxu0 0
  %4026 = vmatpush1.bf16.msra.mxu0 0
  %4027 = vmatprep.subr.bf16.mxu0 0
  %4028 = vmatpush1.bf16.msra.mxu0 0
  %4029 = vmatprep.subr.bf16.mxu0 0
  %4030 = vmatpush1.bf16.msra.mxu0 0
  %4031 = vmatprep.subr.bf16.mxu0 0
  %4032 = vmatpush1.bf16.msra.mxu0 0
  %4033 = vmatprep.subr.bf16.mxu0 0
  %4034 = vmatpush1.bf16.msra.mxu0 0
  %4035 = vmatprep.mubr.bf16.mxu0 0
  %4036 = vmatmul.mubr.bf16.gmra.mrb[0].mxu0 %v3980
  %v4037 = vpop.f32.mrb[0].mxu0
  %v4038 = vadd.f32 %v3953, %v4037
  %v4039 = vpop.f32.mrb[0].mxu0
  %v4040 = vpop.f32.mrb[0].mxu0
  %v4041 = vadd.f32 %v3953, %v4040
  %v4042 = vpop.f32.mrb[0].mxu0
  %4043 = vmatprep.mubr.bf16.mxu0 0
  %4044 = vmatmul.mubr.bf16.gmra.mrb[0].mxu0 %v3983
  %v4045 = vpop.f32.mrb[0].mxu0
  %v4046 = vadd.f32 %v3953, %v4045
  %v4047 = vpop.f32.mrb[0].mxu0
  %v4048 = vpop.f32.mrb[0].mxu0
  %v4049 = vadd.f32 %v3953, %v4048
  %v4050 = vpop.f32.mrb[0].mxu0
  %4051 = vmatprep.mubr.bf16.mxu0 0
  %4052 = vmatmul.mubr.bf16.gmra.mrb[0].mxu0 %v3986
  %v4053 = vpop.f32.mrb[0].mxu0
  %v4054 = vadd.f32 %v3953, %v4053
  %v4055 = vpop.f32.mrb[0].mxu0
  %v4056 = vpop.f32.mrb[0].mxu0
  %v4057 = vadd.f32 %v3953, %v4056
  %v4058 = vpop.f32.mrb[0].mxu0
  %4059 = vmatprep.mubr.bf16.mxu0 0
  %4060 = vmatmul.mubr.bf16.gmra.mrb[0].mxu0 %v3989
  %v4061 = vpop.f32.mrb[0].mxu0
  %v4062 = vadd.f32 %v3953, %v4061
  %v4063 = vpop.f32.mrb[0].mxu0
  %v4064 = vpop.f32.mrb[0].mxu0
  %v4065 = vadd.f32 %v3953, %v4064
  %v4066 = vpop.f32.mrb[0].mxu0
  %4067 = vmatprep.mubr.bf16.mxu0 0
  %4068 = vmatmul.mubr.bf16.gmra.mrb[0].mxu0 %v3992
  %v4069 = vpop.f32.mrb[0].mxu0
  %v4070 = vadd.f32 %v3953, %v4069
  %v4071 = vpop.f32.mrb[0].mxu0
  %v4072 = vpop.f32.mrb[0].mxu0
  %v4073 = vadd.f32 %v3953, %v4072
  %v4074 = vpop.f32.mrb[0].mxu0
  %4075 = vmatprep.mubr.bf16.mxu0 0
  %4076 = vmatmul.mubr.bf16.gmra.mrb[0].mxu0 %v3995
  %v4077 = vpop.f32.mrb[0].mxu0
  %v4078 = vadd.f32 %v3953, %v4077
  %v4079 = vpop.f32.mrb[0].mxu0
  %v4080 = vpop.f32.mrb[0].mxu0
  %v4081 = vadd.f32 %v3953, %v4080
  %v4082 = vpop.f32.mrb[0].mxu0
  %4083 = vmatprep.mubr.bf16.mxu0 0
  %4084 = vmatmul.mubr.bf16.gmra.mrb[0].mxu0 %v3998
  %v4085 = vpop.f32.mrb[0].mxu0
  %v4086 = vadd.f32 %v3953, %v4085
  %v4087 = vpop.f32.mrb[0].mxu0
  %v4088 = vpop.f32.mrb[0].mxu0
  %v4089 = vadd.f32 %v3953, %v4088
  %v4090 = vpop.f32.mrb[0].mxu0
  %4091 = vmatprep.mubr.bf16.mxu0 0
  %4092 = vmatmul.mubr.bf16.gmra.mrb[0].mxu0 %v4001
  %v4093 = vpop.f32.mrb[0].mxu0
  %v4094 = vadd.f32 %v3953, %v4093
  %v4095 = vpop.f32.mrb[0].mxu0
  %v4096 = vpop.f32.mrb[0].mxu0
  %v4097 = vadd.f32 %v3953, %v4096
  %v4098 = vpop.f32.mrb[0].mxu0
  %4099 = vdwg.mxu0
  %v4100 = vtanh.pop %v4038
  %v4101 = vtanh.pop %v4041
  %v4102 = vtanh.pop %v4046
  %v4103 = vtanh.pop %v4049
  %v4104 = vtanh.pop %v4054
  %v4105 = vtanh.pop %v4057
  %v4106 = vtanh.pop %v4062
  %v4107 = vtanh.pop %v4065
  %v4108 = vtanh.pop %v4070
  %v4109 = vtanh.pop %v4073
  %v4110 = vtanh.pop %v4078
  %v4111 = vtanh.pop %v4081
  %v4112 = vtanh.pop %v4086
  %v4113 = vtanh.pop %v4089
  %v4114 = vtanh.pop %v4094
  %v4115 = vtanh.pop %v4097
  %v4116 = vld [vmem:[%s15] sm:$0x1]
  %v4118 = vlaneseq
  %v4119 = vshrl.u32 %v4118, 7
  %v4120 = vsub.s32 0, %v4119
  %v4121 = vrot.slane %v4116, %v4120
  %v4123 = vmul.f32 %v4100, %v4121
  %v4124 = vmul.f32 %v4101, %v4121
  %v4125 = vmul.f32 %v4102, %v4121
  %v4126 = vmul.f32 %v4103, %v4121
  %v4127 = vmul.f32 %v4104, %v4121
  %v4128 = vmul.f32 %v4105, %v4121
  %v4129 = vmul.f32 %v4106, %v4121
  %v4130 = vmul.f32 %v4107, %v4121
  %v4131 = vmul.f32 %v4108, %v4121
  %v4132 = vmul.f32 %v4109, %v4121
  %v4133 = vmul.f32 %v4110, %v4121
  %v4134 = vmul.f32 %v4111, %v4121
  %v4135 = vmul.f32 %v4112, %v4121
  %v4136 = vmul.f32 %v4113, %v4121
  %v4137 = vmul.f32 %v4114, %v4121
  %v4138 = vmul.f32 %v4115, %v4121
  %4139 = vadd.xlane.f32.xlu0 %v4123
  %v4140 = vpop.xlane.xlu0 %4139
  %4141 = vadd.xlane.f32.xlu0 %v4124
  %v4142 = vpop.xlane.xlu0 %4141
  %4143 = vadd.xlane.f32.xlu0 %v4125
  %v4144 = vpop.xlane.xlu0 %4143
  %4145 = vadd.xlane.f32.xlu0 %v4126
  %v4146 = vpop.xlane.xlu0 %4145
  %4147 = vadd.xlane.f32.xlu0 %v4127
  %v4148 = vpop.xlane.xlu0 %4147
  %4149 = vadd.xlane.f32.xlu0 %v4128
  %v4150 = vpop.xlane.xlu0 %4149
  %4151 = vadd.xlane.f32.xlu0 %v4129
  %v4152 = vpop.xlane.xlu0 %4151
  %4153 = vadd.xlane.f32.xlu0 %v4130
  %v4154 = vpop.xlane.xlu0 %4153
  %4155 = vadd.xlane.f32.xlu0 %v4131
  %v4156 = vpop.xlane.xlu0 %4155
  %4157 = vadd.xlane.f32.xlu0 %v4132
  %v4158 = vpop.xlane.xlu0 %4157
  %4159 = vadd.xlane.f32.xlu0 %v4133
  %v4160 = vpop.xlane.xlu0 %4159
  %4161 = vadd.xlane.f32.xlu0 %v4134
  %v4162 = vpop.xlane.xlu0 %4161
  %4163 = vadd.xlane.f32.xlu0 %v4135
  %v4164 = vpop.xlane.xlu0 %4163
  %4165 = vadd.xlane.f32.xlu0 %v4136
  %v4166 = vpop.xlane.xlu0 %4165
  %4167 = vadd.xlane.f32.xlu0 %v4137
  %v4168 = vpop.xlane.xlu0 %4167
  %4169 = vadd.xlane.f32.xlu0 %v4138
  %v4170 = vpop.xlane.xlu0 %4169
  %v4171 = vadd.f32 %v4140, %v4142
  %v4172 = vadd.f32 %v4171, %v4144
  %v4173 = vadd.f32 %v4172, %v4146
  %v4174 = vadd.f32 %v4173, %v4148
  %v4175 = vadd.f32 %v4174, %v4150
  %v4176 = vadd.f32 %v4175, %v4152
  %v4177 = vadd.f32 %v4176, %v4154
  %v4178 = vrot.slane %v4177, 4
  %v4179 = vadd.f32 %v4177, %v4178
  %v4180 = vrot.slane %v4179, 2
  %v4181 = vadd.f32 %v4179, %v4180
  %v4182 = vrot.slane %v4181, 1
  %v4183 = vadd.f32 %v4181, %v4182
  %v4184 = vmul.f32 %v4183, 0.015625
  %v4185 = vadd.f32 %v4156, %v4158
  %v4186 = vadd.f32 %v4185, %v4160
  %v4187 = vadd.f32 %v4186, %v4162
  %v4188 = vadd.f32 %v4187, %v4164
  %v4189 = vadd.f32 %v4188, %v4166
  %v4190 = vadd.f32 %v4189, %v4168
  %v4191 = vadd.f32 %v4190, %v4170
  %v4192 = vrot.slane %v4191, 4
  %v4193 = vadd.f32 %v4191, %v4192
  %v4194 = vrot.slane %v4193, 2
  %v4195 = vadd.f32 %v4193, %v4194
  %v4196 = vrot.slane %v4195, 1
  %v4197 = vadd.f32 %v4195, %v4196
  %v4198 = vmul.f32 %v4197, 0.015625
  %v4199 = vmax.f32 %v4184, %v4198
  %v4200 = vsub.f32 %v4184, %v4199
  %v4201 = vmul.f32 %v4200, 1.442695
  %v4202 = vpow.pop %v4201
  %v4203 = vsub.f32 %v4198, %v4199
  %v4204 = vmul.f32 %v4203, 1.442695
  %v4205 = vpow.pop %v4204
  %v4206 = vadd.f32 %v4202, %v4205
  %v4207 = vrcp.pop %v4206
  %v4208 = vmul.f32 1.0, %v4207
  %v4209 = vmul.f32 %v4202, %v4208
  %v4210 = vmul.f32 %v4209, %v3204
  %v4211 = vmul.f32 %v4209, %v3205
  %v4212 = vmul.f32 %v4209, %v3206
  %v4213 = vmul.f32 %v4209, %v3207
  %v4214 = vmul.f32 %v4209, %v3208
  %v4215 = vmul.f32 %v4209, %v3209
  %v4216 = vmul.f32 %v4209, %v3210
  %v4217 = vmul.f32 %v4209, %v3211
  %v4218 = vmul.f32 %v4205, %v4208
  %v4219 = vmul.f32 %v4218, %v3924
  %v4220 = vmul.f32 %v4218, %v3925
  %v4221 = vmul.f32 %v4218, %v3926
  %v4222 = vmul.f32 %v4218, %v3927
  %v4223 = vmul.f32 %v4218, %v3928
  %v4224 = vmul.f32 %v4218, %v3929
  %v4225 = vmul.f32 %v4218, %v3930
  %v4226 = vmul.f32 %v4218, %v3931
  %v4227 = vadd.f32 %v4210, %v4219
  %v4228 = vadd.f32 %v4211, %v4220
  %v4229 = vadd.f32 %v4212, %v4221
  %v4230 = vadd.f32 %v4213, %v4222
  %v4231 = vadd.f32 %v4214, %v4223
  %v4232 = vadd.f32 %v4215, %v4224
  %v4233 = vadd.f32 %v4216, %v4225
  %v4234 = vadd.f32 %v4217, %v4226
  %v4235 = vld [vmem:[%s16] sm:$0xff]
  %v4236 = vld [vmem:[%s16 + $0x8] sm:$0xff]
  %v4237 = vld [vmem:[%s16 + $0x10] sm:$0xff]
  %v4238 = vld [vmem:[%s16 + $0x18] sm:$0xff]
  %v4239 = vld [vmem:[%s16 + $0x20] sm:$0xff]
  %v4240 = vld [vmem:[%s16 + $0x28] sm:$0xff]
  %v4241 = vld [vmem:[%s16 + $0x30] sm:$0xff]
  %v4242 = vld [vmem:[%s16 + $0x38] sm:$0xff]
  %v4243 = vld [vmem:[%s17] sm:$0x1]
  %v4245 = vlaneseq
  %v4246 = vshrl.u32 %v4245, 7
  %v4247 = vsub.s32 0, %v4246
  %v4248 = vrot.slane %v4243, %v4247
  %v4251 = vsel %vm111, %v4227, 0
  %v4254 = vsel %vm111, %v4228, 0
  %v4257 = vsel %vm111, %v4229, 0
  %v4260 = vsel %vm111, %v4230, 0
  %v4263 = vsel %vm111, %v4231, 0
  %v4266 = vsel %vm111, %v4232, 0
  %v4269 = vsel %vm111, %v4233, 0
  %v4272 = vsel %vm111, %v4234, 0
  %4274 = vmatprep.subr.mxu0 0.0
  %4275 = vmatpush1.msra.mxu0 %v4235
  %4276 = vmatprep.subr.mxu0 0.0
  %4277 = vmatpush1.msra.mxu0 %v4236
  %4278 = vmatprep.subr.mxu0 0.0
  %4279 = vmatpush1.msra.mxu0 %v4237
  %4280 = vmatprep.subr.mxu0 0.0
  %4281 = vmatpush1.msra.mxu0 %v4238
  %4282 = vmatprep.subr.mxu0 0.0
  %4283 = vmatpush1.msra.mxu0 %v4239
  %4284 = vmatprep.subr.mxu0 0.0
  %4285 = vmatpush1.msra.mxu0 %v4240
  %4286 = vmatprep.subr.mxu0 0.0
  %4287 = vmatpush1.msra.mxu0 %v4241
  %4288 = vmatprep.subr.mxu0 0.0
  %4289 = vmatpush1.msra.mxu0 %v4242
  %4290 = vmatprep.subr.mxu0 0.0
  %4291 = vmatpush1.msra.mxu0 0.0
  %4292 = vmatprep.subr.mxu0 0.0
  %4293 = vmatpush1.msra.mxu0 0.0
  %4294 = vmatprep.subr.mxu0 0.0
  %4295 = vmatpush1.msra.mxu0 0.0
  %4296 = vmatprep.subr.mxu0 0.0
  %4297 = vmatpush1.msra.mxu0 0.0
  %4298 = vmatprep.subr.mxu0 0.0
  %4299 = vmatpush1.msra.mxu0 0.0
  %4300 = vmatprep.subr.mxu0 0.0
  %4301 = vmatpush1.msra.mxu0 0.0
  %4302 = vmatprep.subr.mxu0 0.0
  %4303 = vmatpush1.msra.mxu0 0.0
  %4304 = vmatprep.subr.mxu0 0.0
  %4305 = vmatpush1.msra.mxu0 0.0
  %4306 = vmatprep.subr.mxu0 0.0
  %4307 = vmatpush1.msra.mxu0 0.0
  %4308 = vmatprep.subr.mxu0 0.0
  %4309 = vmatpush1.msra.mxu0 0.0
  %4310 = vmatprep.subr.mxu0 0.0
  %4311 = vmatpush1.msra.mxu0 0.0
  %4312 = vmatprep.subr.mxu0 0.0
  %4313 = vmatpush1.msra.mxu0 0.0
  %4314 = vmatprep.subr.mxu0 0.0
  %4315 = vmatpush1.msra.mxu0 0.0
  %4316 = vmatprep.subr.mxu0 0.0
  %4317 = vmatpush1.msra.mxu0 0.0
  %4318 = vmatprep.subr.mxu0 0.0
  %4319 = vmatpush1.msra.mxu0 0.0
  %4320 = vmatprep.subr.mxu0 0.0
  %4321 = vmatpush1.msra.mxu0 0.0
  %4322 = vmatprep.subr.mxu0 0.0
  %4323 = vmatpush1.msra.mxu0 0.0
  %4324 = vmatprep.subr.mxu0 0.0
  %4325 = vmatpush1.msra.mxu0 0.0
  %4326 = vmatprep.subr.mxu0 0.0
  %4327 = vmatpush1.msra.mxu0 0.0
  %4328 = vmatprep.subr.mxu0 0.0
  %4329 = vmatpush1.msra.mxu0 0.0
  %4330 = vmatprep.subr.mxu0 0.0
  %4331 = vmatpush1.msra.mxu0 0.0
  %4332 = vmatprep.subr.mxu0 0.0
  %4333 = vmatpush1.msra.mxu0 0.0
  %4334 = vmatprep.subr.mxu0 0.0
  %4335 = vmatpush1.msra.mxu0 0.0
  %4336 = vmatprep.subr.mxu0 0.0
  %4337 = vmatpush1.msra.mxu0 0.0
  %4338 = vmatprep.mubr.f32.mxu0 0.0
  %4339 = vmatmul.mubr.f32.gmra.mrb[0].mxu0 %v4251
  %v4340 = vpop.f32.mrb[0].mxu0
  %v4341 = vadd.f32 %v4248, %v4340
  %v4342 = vpop.f32.mrb[0].mxu0
  %4343 = vmatprep.mubr.f32.mxu0 0.0
  %4344 = vmatmul.mubr.f32.gmra.mrb[0].mxu0 %v4254
  %v4345 = vpop.f32.mrb[0].mxu0
  %v4346 = vadd.f32 %v4248, %v4345
  %v4347 = vpop.f32.mrb[0].mxu0
  %4348 = vmatprep.mubr.f32.mxu0 0.0
  %4349 = vmatmul.mubr.f32.gmra.mrb[0].mxu0 %v4257
  %v4350 = vpop.f32.mrb[0].mxu0
  %v4351 = vadd.f32 %v4248, %v4350
  %v4352 = vpop.f32.mrb[0].mxu0
  %4353 = vmatprep.mubr.f32.mxu0 0.0
  %4354 = vmatmul.mubr.f32.gmra.mrb[0].mxu0 %v4260
  %v4355 = vpop.f32.mrb[0].mxu0
  %v4356 = vadd.f32 %v4248, %v4355
  %v4357 = vpop.f32.mrb[0].mxu0
  %4358 = vmatprep.mubr.f32.mxu0 0.0
  %4359 = vmatmul.mubr.f32.gmra.mrb[0].mxu0 %v4263
  %v4360 = vpop.f32.mrb[0].mxu0
  %v4361 = vadd.f32 %v4248, %v4360
  %v4362 = vpop.f32.mrb[0].mxu0
  %4363 = vmatprep.mubr.f32.mxu0 0.0
  %4364 = vmatmul.mubr.f32.gmra.mrb[0].mxu0 %v4266
  %v4365 = vpop.f32.mrb[0].mxu0
  %v4366 = vadd.f32 %v4248, %v4365
  %v4367 = vpop.f32.mrb[0].mxu0
  %4368 = vmatprep.mubr.f32.mxu0 0.0
  %4369 = vmatmul.mubr.f32.gmra.mrb[0].mxu0 %v4269
  %v4370 = vpop.f32.mrb[0].mxu0
  %v4371 = vadd.f32 %v4248, %v4370
  %v4372 = vpop.f32.mrb[0].mxu0
  %4373 = vmatprep.mubr.f32.mxu0 0.0
  %4374 = vmatmul.mubr.f32.gmra.mrb[0].mxu0 %v4272
  %v4375 = vpop.f32.mrb[0].mxu0
  %v4376 = vadd.f32 %v4248, %v4375
  %v4377 = vpop.f32.mrb[0].mxu0
  %4378 = vdwg.mxu0
  %vm4379 = vcmask 31744
  %4380 = vst.msk [vmem:[%s18] sm:$0xff] %vm4379, %v4341
  %4381 = vst.msk [vmem:[%s18 + $0x8] sm:$0xff] %vm4379, %v4346
  %4382 = vst.msk [vmem:[%s18 + $0x10] sm:$0xff] %vm4379, %v4351
  %4383 = vst.msk [vmem:[%s18 + $0x18] sm:$0xff] %vm4379, %v4356
  %4384 = vst.msk [vmem:[%s18 + $0x20] sm:$0xff] %vm4379, %v4361
  %4385 = vst.msk [vmem:[%s18 + $0x28] sm:$0xff] %vm4379, %v4366
  %4386 = vst.msk [vmem:[%s18 + $0x30] sm:$0xff] %vm4379, %v4371
  %4387 = vst.msk [vmem:[%s18 + $0x38] sm:$0xff] %vm4379, %v4376
  // Predicated region
  $region74: #{tpu_custom_call.1} parent=0 // pred_check
    _
  $region75: #{tpu_custom_call.1} parent=0 // pred_check_branch
    %4389 = sbr.rel (0) target = $region77
  $region76: #{tpu_custom_call.1} parent=0 // pred_region
    _
  $region77: #{tpu_custom_call.1} parent=0 // pred_fallthru
    _
  // Predicated region
  $region78: #{tpu_custom_call.1} parent=0 // pred_check
    _
  $region79: #{tpu_custom_call.1} parent=0 // pred_check_branch
    %4391 = sbr.rel (0) target = $region81
  $region80: #{tpu_custom_call.1} parent=0 // pred_region
    _
  $region81: #{tpu_custom_call.1} parent=0 // pred_fallthru
    _

</llo_original>
